<compile_context>
chip_gen: v6e
topology: v6e:2x2x1
jax: 0.10.0
libtpu: 0.0.40
codegen_flags: <defaults>
</compile_context>

<pallas_src>
from functools import partial

import numpy as np

import jax
import jax.numpy as jnp
from jax.experimental import pallas as pl
from jax.experimental.pallas import tpu as pltpu


# ----------------------------- fused Pallas kernel ---------------------------

def _lenet_kernel(x_ref, m1_ref, cb1_ref, t1_ref,
                  m2_ref, cb2_ref, t2_ref,
                  w1_ref, fb1_ref, w2_ref, fb2_ref, w3_ref, fb3_ref,
                  o_ref):
    f32 = jnp.float32
    bt = x_ref.shape[1]                                     # batch tile size

    # (32, Bt, 32) -> (32*Bt, 32); rows ordered (input row h major, batch minor).
    x = x_ref[...].reshape(32 * bt, 32)

    # ---- conv1 (1->6, k=5) as 5 row-Toeplitz matmuls -> (28*Bt, 28*6) --------
    y1 = jnp.dot(x[0:28 * bt, :], m1_ref[0], preferred_element_type=f32)
    for kh in range(1, 5):
        y1 = y1 + jnp.dot(x[kh * bt:(kh + 28) * bt, :], m1_ref[kh],
                          preferred_element_type=f32)
    y1 = jnp.maximum(y1 + cb1_ref[...], 0.0)                # bias + ReLU, (28*Bt, 168)

    # ---- 2x2 max-pool: row halves via VPU max, cols via selection matmuls ----
    y1p = y1.reshape(14, 2 * bt, 168)                       # [i, :bt]=row 2i, [i, bt:]=row 2i+1
    r1 = jnp.maximum(y1p[:, :bt, :], y1p[:, bt:, :]).reshape(14 * bt, 168)
    p1 = jnp.maximum(jnp.dot(r1, t1_ref[0], preferred_element_type=f32),
                     jnp.dot(r1, t1_ref[1], preferred_element_type=f32))   # (14*Bt, 84)

    # ---- conv2 (6->16, k=5) -> (10*Bt, 10*16) --------------------------------
    y2 = jnp.dot(p1[0:10 * bt, :], m2_ref[0], preferred_element_type=f32)
    for kh in range(1, 5):
        y2 = y2 + jnp.dot(p1[kh * bt:(kh + 10) * bt, :], m2_ref[kh],
                          preferred_element_type=f32)
    y2 = jnp.maximum(y2 + cb2_ref[...], 0.0)                # (10*Bt, 160)

    # ---- 2x2 max-pool -> (5*Bt, 5*16) ----------------------------------------
    y2p = y2.reshape(5, 2 * bt, 160)
    r2 = jnp.maximum(y2p[:, :bt, :], y2p[:, bt:, :]).reshape(5 * bt, 160)
    p2 = jnp.maximum(jnp.dot(r2, t2_ref[0], preferred_element_type=f32),
                     jnp.dot(r2, t2_ref[1], preferred_element_type=f32))   # (5*Bt, 80)

    # ---- fc1 (400->120): accumulate over the 5 pooled spatial rows -----------
    h = jnp.dot(p2[0:bt, :], w1_ref[0:80, :], preferred_element_type=f32) + fb1_ref[...]
    for r in range(1, 5):
        h = h + jnp.dot(p2[r * bt:(r + 1) * bt, :], w1_ref[r * 80:(r + 1) * 80, :],
                        preferred_element_type=f32)
    h = jnp.maximum(h, 0.0)                                 # (Bt, 120)

    # ---- fc2 (120->84) + ReLU, fc3 (84->128, lane-padded) --------------------
    h = jnp.maximum(jnp.dot(h, w2_ref[...], preferred_element_type=f32) + fb2_ref[...], 0.0)
    o_ref[...] = jnp.dot(h, w3_ref[...], preferred_element_type=f32) + fb3_ref[...]


def _const_spec(a):
    nd = a.ndim
    return pl.BlockSpec(a.shape, lambda b, nd=nd: (0,) * nd)


def _round_up(n, m):
    return ((n + m - 1) // m) * m


@partial(jax.jit, static_argnames=("bt",))
def _net_forward_padded(xt, prep, bt):
    _, bp, _ = xt.shape                                     # (32, Bp, 32)
    weights = (prep["M1"], prep["cb1"], prep["T1"],
               prep["M2"], prep["cb2"], prep["T2"],
               prep["W1"], prep["fb1"], prep["W2"], prep["fb2"],
               prep["W3"], prep["fb3"])
    return pl.pallas_call(
        _lenet_kernel,
        out_shape=jax.ShapeDtypeStruct((bp, 128), jnp.float32),
        grid=(bp // bt,),
        in_specs=[pl.BlockSpec((32, bt, 32), lambda b: (0, b, 0))]
                 + [_const_spec(w) for w in weights],
        out_specs=pl.BlockSpec((bt, 128), lambda b: (b, 0)),
        compiler_params=pltpu.CompilerParams(
            dimension_semantics=("parallel",),
            vmem_limit_bytes=64 * 1024 * 1024),
    )(xt, *weights)


def net_forward(x_nchw, prep, bt=128):
    """x_nchw: (B, 1, 32, 32) float.  Returns (B, 10)."""
    assert x_nchw.shape[1:] == (1, 32, 32), x_nchw.shape
    B = x_nchw.shape[0]
    bt = min(bt, max(8, _round_up(B, 8)))                   # don't over-pad tiny batches
    Bp = _round_up(B, bt)
    x = x_nchw.astype(jnp.float32).reshape(B, 32, 32)
    xt = jnp.transpose(x, (1, 0, 2))                        # (32, B, 32): batch on sublanes
    if Bp != B:
        xt = jnp.pad(xt, ((0, 0), (0, Bp - B), (0, 0)))
    out = _net_forward_padded(xt, prep, bt)                 # (Bp, 128)
    return out[:B, :10]


# ------------------------ one-time weight re-layout ---------------------------

def prepare_params(params):
    """Re-layout PyTorch-convention weights into the kernel's matmul form (once)."""
    f32 = jnp.float32
    w1 = params["conv1_w"].astype(f32)          # (6, 1, 5, 5)
    w2 = params["conv2_w"].astype(f32)          # (16, 6, 5, 5)

    # conv1 row-Toeplitz slabs: M1[kh][j+kw, j*6+co] = w1[co, 0, kh, kw]
    ind1 = np.zeros((32, 28, 5), np.float32)
    for j in range(28):
        for kw in range(5):
            ind1[j + kw, j, kw] = 1.0
    ind1 = jnp.asarray(ind1)
    M1 = jnp.stack(
        [jnp.einsum("pjk,ck->pjc", ind1, w1[:, 0, kh, :]).reshape(32, 28 * 6)
         for kh in range(5)], axis=0)                                   # (5, 32, 168)

    # conv2 row-Toeplitz slabs: M2[kh][(j+kw)*6+ci, j*16+co] = w2[co, ci, kh, kw]
    ind2 = np.zeros((84, 10, 5, 6), np.float32)
    for j in range(10):
        for kw in range(5):
            for ci in range(6):
                ind2[(j + kw) * 6 + ci, j, kw, ci] = 1.0
    ind2 = jnp.asarray(ind2)
    M2 = jnp.stack(
        [jnp.einsum("pjkc,ock->pjo", ind2, w2[:, :, kh, :]).reshape(84, 10 * 16)
         for kh in range(5)], axis=0)                                   # (5, 84, 160)

    # lane-tiled conv biases (one copy per output column position)
    cb1 = jnp.tile(params["conv1_b"].astype(f32), 28).reshape(1, 168)
    cb2 = jnp.tile(params["conv2_b"].astype(f32), 10).reshape(1, 160)

    # 0/1 selection matrices for the column half of the 2x2 max-pools
    T1 = np.zeros((2, 168, 84), np.float32)
    for j in range(14):
        for c in range(6):
            T1[0, (2 * j) * 6 + c, j * 6 + c] = 1.0
            T1[1, (2 * j + 1) * 6 + c, j * 6 + c] = 1.0
    T2 = np.zeros((2, 160, 80), np.float32)
    for j in range(5):
        for c in range(16):
            T2[0, (2 * j) * 16 + c, j * 16 + c] = 1.0
            T2[1, (2 * j + 1) * 16 + c, j * 16 + c] = 1.0

    # fc1: permute input rows so they match the kernel's (row h, lane w*16+c)
    # flatten order; PyTorch's view(-1, 400) order is c*25 + h*5 + w.
    h_idx = np.arange(5).reshape(5, 1, 1)
    w_idx = np.arange(5).reshape(1, 5, 1)
    c_idx = np.arange(16).reshape(1, 1, 16)
    perm = (c_idx * 25 + h_idx * 5 + w_idx).reshape(-1)     # target row h*80+w*16+c
    W1 = params["fc1_w"].astype(f32)[:, perm].T             # (400, 120)

    # fc3 zero-padded to 128 lanes (lane-dense output stores); slice [:10] host-side.
    W3 = jnp.zeros((84, 128), f32).at[:, :10].set(params["fc3_w"].astype(f32).T)
    fb3 = jnp.zeros((1, 128), f32).at[:, :10].set(params["fc3_b"].astype(f32).reshape(1, 10))

    return {
        "M1": M1, "cb1": cb1, "T1": jnp.asarray(T1),
        "M2": M2, "cb2": cb2, "T2": jnp.asarray(T2),
        "W1": W1, "fb1": params["fc1_b"].astype(f32).reshape(1, 120),
        "W2": params["fc2_w"].astype(f32).T,
        "fb2": params["fc2_b"].astype(f32).reshape(1, 84),
        "W3": W3, "fb3": fb3,
    }


# ------------------------------- init & reference ----------------------------

def init_params(key):
    ks = jax.random.split(key, 10)

    def u(k, shape, fan_in):
        bound = 1.0 / jnp.sqrt(float(fan_in))
        return jax.random.uniform(k, shape, jnp.float32, -bound, bound)

    return {
        "conv1_w": u(ks[0], (6, 1, 5, 5), 1 * 5 * 5),
        "conv1_b": u(ks[1], (6,), 1 * 5 * 5),
        "conv2_w": u(ks[2], (16, 6, 5, 5), 6 * 5 * 5),
        "conv2_b": u(ks[3], (16,), 6 * 5 * 5),
        "fc1_w": u(ks[4], (120, 400), 400),
        "fc1_b": u(ks[5], (120,), 400),
        "fc2_w": u(ks[6], (84, 120), 120),
        "fc2_b": u(ks[7], (84,), 120),
        "fc3_w": u(ks[8], (10, 84), 84),
        "fc3_b": u(ks[9], (10,), 84),
    }


def net_forward_ref(x_nchw, params):
    hp = jax.lax.Precision.HIGHEST
    x = x_nchw.astype(jnp.float32)
    y = jax.lax.conv_general_dilated(x, params["conv1_w"], (1, 1), "VALID",
                                     dimension_numbers=("NCHW", "OIHW", "NCHW"),
                                     precision=hp)
    y = jax.nn.relu(y + params["conv1_b"][None, :, None, None])
    y = jax.lax.reduce_window(y, -jnp.inf, jax.lax.max,
                              (1, 1, 2, 2), (1, 1, 2, 2), "VALID")
    y = jax.lax.conv_general_dilated(y, params["conv2_w"], (1, 1), "VALID",
                                     dimension_numbers=("NCHW", "OIHW", "NCHW"),
                                     precision=hp)
    y = jax.nn.relu(y + params["conv2_b"][None, :, None, None])
    y = jax.lax.reduce_window(y, -jnp.inf, jax.lax.max,
                              (1, 1, 2, 2), (1, 1, 2, 2), "VALID")
    f = y.reshape(y.shape[0], -1)
    h = jax.nn.relu(jnp.dot(f, params["fc1_w"].T, precision=hp) + params["fc1_b"])
    h = jax.nn.relu(jnp.dot(h, params["fc2_w"].T, precision=hp) + params["fc2_b"])
    return jnp.dot(h, params["fc3_w"].T, precision=hp) + params["fc3_b"]


if __name__ == "__main__":
    key = jax.random.PRNGKey(0)
    k_x, k_p = jax.random.split(key)
    x = jax.random.normal(k_x, (2, 1, 32, 32), dtype=jnp.float32)  # NCHW, like PyTorch
    params = init_params(k_p)
    prep = prepare_params(params)                                  # one-time layout

    out = net_forward(x, prep)
    out = jax.block_until_ready(out)
    assert out.shape == (2, 10), out.shape

    ref = net_forward_ref(x, params)
    err = float(jnp.max(jnp.abs(out - ref)))
    assert err < 5e-3, f"max abs error vs reference: {err}"

    print("KERNEL_OK")
</pallas_src>

<mosaic_0001>
module attributes {stable_mosaic.version = 11 : i64} {
  func.func @_lenet_kernel(%arg0: i32, %arg1: memref<32x8x32xf32, #tpu.memory_space<vmem>>, %arg2: memref<5x32x168xf32, #tpu.memory_space<vmem>>, %arg3: memref<1x168xf32, #tpu.memory_space<vmem>>, %arg4: memref<2x168x84xf32, #tpu.memory_space<vmem>>, %arg5: memref<5x84x160xf32, #tpu.memory_space<vmem>>, %arg6: memref<1x160xf32, #tpu.memory_space<vmem>>, %arg7: memref<2x160x80xf32, #tpu.memory_space<vmem>>, %arg8: memref<400x120xf32, #tpu.memory_space<vmem>>, %arg9: memref<1x120xf32, #tpu.memory_space<vmem>>, %arg10: memref<120x84xf32, #tpu.memory_space<vmem>>, %arg11: memref<1x84xf32, #tpu.memory_space<vmem>>, %arg12: memref<84x128xf32, #tpu.memory_space<vmem>>, %arg13: memref<1x128xf32, #tpu.memory_space<vmem>>, %arg14: memref<8x128xf32, #tpu.memory_space<vmem>>) attributes {dimension_semantics = [#tpu.dimension_semantics<parallel>], iteration_bounds = array<i64: 1>, scalar_prefetch = 0 : i64, scratch_operands = 0 : i64, tpu.core_type = #tpu.core_type<tc>, window_params = [{transform_indices = @transform_0, window_bounds = array<i64: 32, 8, 32>}, {pipeline_mode = #tpu.pipeline_mode<synchronous>, transform_indices = @transform_1, window_bounds = array<i64: 5, 32, 168>}, {pipeline_mode = #tpu.pipeline_mode<synchronous>, transform_indices = @transform_2, window_bounds = array<i64: 1, 168>}, {pipeline_mode = #tpu.pipeline_mode<synchronous>, transform_indices = @transform_3, window_bounds = array<i64: 2, 168, 84>}, {pipeline_mode = #tpu.pipeline_mode<synchronous>, transform_indices = @transform_4, window_bounds = array<i64: 5, 84, 160>}, {pipeline_mode = #tpu.pipeline_mode<synchronous>, transform_indices = @transform_5, window_bounds = array<i64: 1, 160>}, {pipeline_mode = #tpu.pipeline_mode<synchronous>, transform_indices = @transform_6, window_bounds = array<i64: 2, 160, 80>}, {pipeline_mode = #tpu.pipeline_mode<synchronous>, transform_indices = @transform_7, window_bounds = array<i64: 400, 120>}, {pipeline_mode = #tpu.pipeline_mode<synchronous>, transform_indices = @transform_8, window_bounds = array<i64: 1, 120>}, {pipeline_mode = #tpu.pipeline_mode<synchronous>, transform_indices = @transform_9, window_bounds = array<i64: 120, 84>}, {pipeline_mode = #tpu.pipeline_mode<synchronous>, transform_indices = @transform_10, window_bounds = array<i64: 1, 84>}, {pipeline_mode = #tpu.pipeline_mode<synchronous>, transform_indices = @transform_11, window_bounds = array<i64: 84, 128>}, {pipeline_mode = #tpu.pipeline_mode<synchronous>, transform_indices = @transform_12, window_bounds = array<i64: 1, 128>}, {transform_indices = @transform_13, window_bounds = array<i64: 8, 128>}]} {
    %c0 = arith.constant 0 : index
    %c0_0 = arith.constant 0 : index
    %c0_1 = arith.constant 0 : index
    %0 = vector.load %arg1[%c0, %c0_0, %c0_1] : memref<32x8x32xf32, #tpu.memory_space<vmem>>, vector<32x8x32xf32>
    %1 = vector.shape_cast %0 : vector<32x8x32xf32> to vector<256x32xf32>
    %2 = vector.extract_strided_slice %1 {offsets = [0, 0], sizes = [224, 32], strides = [1, 1]} : vector<256x32xf32> to vector<224x32xf32>
    %c0_2 = arith.constant 0 : index
    %c0_3 = arith.constant 0 : index
    %c0_4 = arith.constant 0 : index
    %3 = vector.load %arg2[%c0_2, %c0_3, %c0_4] : memref<5x32x168xf32, #tpu.memory_space<vmem>>, vector<1x32x168xf32>
    %4 = vector.shape_cast %3 : vector<1x32x168xf32> to vector<32x168xf32>
    %cst = arith.constant dense<0.000000e+00> : vector<224x168xf32>
    %5 = tpu.matmul %2, %4, %cst {dimension_numbers = #tpu.dot_dimension_numbers<[1], [0], [0], [1], [0, 0, 1, 1], [], []>} : vector<224x32xf32>, vector<32x168xf32>, vector<224x168xf32> -> vector<224x168xf32>
    %6 = vector.extract_strided_slice %1 {offsets = [8, 0], sizes = [224, 32], strides = [1, 1]} : vector<256x32xf32> to vector<224x32xf32>
    %c1 = arith.constant 1 : index
    %c0_5 = arith.constant 0 : index
    %c0_6 = arith.constant 0 : index
    %7 = vector.load %arg2[%c1, %c0_5, %c0_6] : memref<5x32x168xf32, #tpu.memory_space<vmem>>, vector<1x32x168xf32>
    %8 = vector.shape_cast %7 : vector<1x32x168xf32> to vector<32x168xf32>
    %cst_7 = arith.constant dense<0.000000e+00> : vector<224x168xf32>
    %9 = tpu.matmul %6, %8, %cst_7 {dimension_numbers = #tpu.dot_dimension_numbers<[1], [0], [0], [1], [0, 0, 1, 1], [], []>} : vector<224x32xf32>, vector<32x168xf32>, vector<224x168xf32> -> vector<224x168xf32>
    %10 = arith.addf %5, %9 : vector<224x168xf32>
    %11 = vector.extract_strided_slice %1 {offsets = [16, 0], sizes = [224, 32], strides = [1, 1]} : vector<256x32xf32> to vector<224x32xf32>
    %c2 = arith.constant 2 : index
    %c0_8 = arith.constant 0 : index
    %c0_9 = arith.constant 0 : index
    %12 = vector.load %arg2[%c2, %c0_8, %c0_9] : memref<5x32x168xf32, #tpu.memory_space<vmem>>, vector<1x32x168xf32>
    %13 = vector.shape_cast %12 : vector<1x32x168xf32> to vector<32x168xf32>
    %cst_10 = arith.constant dense<0.000000e+00> : vector<224x168xf32>
    %14 = tpu.matmul %11, %13, %cst_10 {dimension_numbers = #tpu.dot_dimension_numbers<[1], [0], [0], [1], [0, 0, 1, 1], [], []>} : vector<224x32xf32>, vector<32x168xf32>, vector<224x168xf32> -> vector<224x168xf32>
    %15 = arith.addf %10, %14 : vector<224x168xf32>
    %16 = vector.extract_strided_slice %1 {offsets = [24, 0], sizes = [224, 32], strides = [1, 1]} : vector<256x32xf32> to vector<224x32xf32>
    %c3 = arith.constant 3 : index
    %c0_11 = arith.constant 0 : index
    %c0_12 = arith.constant 0 : index
    %17 = vector.load %arg2[%c3, %c0_11, %c0_12] : memref<5x32x168xf32, #tpu.memory_space<vmem>>, vector<1x32x168xf32>
    %18 = vector.shape_cast %17 : vector<1x32x168xf32> to vector<32x168xf32>
    %cst_13 = arith.constant dense<0.000000e+00> : vector<224x168xf32>
    %19 = tpu.matmul %16, %18, %cst_13 {dimension_numbers = #tpu.dot_dimension_numbers<[1], [0], [0], [1], [0, 0, 1, 1], [], []>} : vector<224x32xf32>, vector<32x168xf32>, vector<224x168xf32> -> vector<224x168xf32>
    %20 = arith.addf %15, %19 : vector<224x168xf32>
    %21 = vector.extract_strided_slice %1 {offsets = [32, 0], sizes = [224, 32], strides = [1, 1]} : vector<256x32xf32> to vector<224x32xf32>
    %c4 = arith.constant 4 : index
    %c0_14 = arith.constant 0 : index
    %c0_15 = arith.constant 0 : index
    %22 = vector.load %arg2[%c4, %c0_14, %c0_15] : memref<5x32x168xf32, #tpu.memory_space<vmem>>, vector<1x32x168xf32>
    %23 = vector.shape_cast %22 : vector<1x32x168xf32> to vector<32x168xf32>
    %cst_16 = arith.constant dense<0.000000e+00> : vector<224x168xf32>
    %24 = tpu.matmul %21, %23, %cst_16 {dimension_numbers = #tpu.dot_dimension_numbers<[1], [0], [0], [1], [0, 0, 1, 1], [], []>} : vector<224x32xf32>, vector<32x168xf32>, vector<224x168xf32> -> vector<224x168xf32>
    %25 = arith.addf %20, %24 : vector<224x168xf32>
    %c0_17 = arith.constant 0 : index
    %c0_18 = arith.constant 0 : index
    %26 = vector.load %arg3[%c0_17, %c0_18] : memref<1x168xf32, #tpu.memory_space<vmem>>, vector<1x168xf32>
    %27 = vector.broadcast %26 : vector<1x168xf32> to vector<224x168xf32>
    %28 = arith.addf %25, %27 : vector<224x168xf32>
    %cst_19 = arith.constant 0.000000e+00 : f32
    %29 = vector.broadcast %cst_19 : f32 to vector<224x168xf32>
    %30 = arith.maximumf %28, %29 : vector<224x168xf32>
    %31 = vector.shape_cast %30 : vector<224x168xf32> to vector<14x16x168xf32>
    %32 = vector.extract_strided_slice %31 {offsets = [0, 0, 0], sizes = [14, 8, 168], strides = [1, 1, 1]} : vector<14x16x168xf32> to vector<14x8x168xf32>
    %33 = vector.extract_strided_slice %31 {offsets = [0, 8, 0], sizes = [14, 8, 168], strides = [1, 1, 1]} : vector<14x16x168xf32> to vector<14x8x168xf32>
    %34 = arith.maximumf %32, %33 : vector<14x8x168xf32>
    %35 = vector.shape_cast %34 : vector<14x8x168xf32> to vector<112x168xf32>
    %c0_20 = arith.constant 0 : index
    %c0_21 = arith.constant 0 : index
    %c0_22 = arith.constant 0 : index
    %36 = vector.load %arg4[%c0_20, %c0_21, %c0_22] : memref<2x168x84xf32, #tpu.memory_space<vmem>>, vector<1x168x84xf32>
    %37 = vector.shape_cast %36 : vector<1x168x84xf32> to vector<168x84xf32>
    %cst_23 = arith.constant dense<0.000000e+00> : vector<112x84xf32>
    %38 = tpu.matmul %35, %37, %cst_23 {dimension_numbers = #tpu.dot_dimension_numbers<[1], [0], [0], [1], [0, 0, 1, 1], [], []>} : vector<112x168xf32>, vector<168x84xf32>, vector<112x84xf32> -> vector<112x84xf32>
    %c1_24 = arith.constant 1 : index
    %c0_25 = arith.constant 0 : index
    %c0_26 = arith.constant 0 : index
    %39 = vector.load %arg4[%c1_24, %c0_25, %c0_26] : memref<2x168x84xf32, #tpu.memory_space<vmem>>, vector<1x168x84xf32>
    %40 = vector.shape_cast %39 : vector<1x168x84xf32> to vector<168x84xf32>
    %cst_27 = arith.constant dense<0.000000e+00> : vector<112x84xf32>
    %41 = tpu.matmul %35, %40, %cst_27 {dimension_numbers = #tpu.dot_dimension_numbers<[1], [0], [0], [1], [0, 0, 1, 1], [], []>} : vector<112x168xf32>, vector<168x84xf32>, vector<112x84xf32> -> vector<112x84xf32>
    %42 = arith.maximumf %38, %41 : vector<112x84xf32>
    %43 = vector.extract_strided_slice %42 {offsets = [0, 0], sizes = [80, 84], strides = [1, 1]} : vector<112x84xf32> to vector<80x84xf32>
    %c0_28 = arith.constant 0 : index
    %c0_29 = arith.constant 0 : index
    %c0_30 = arith.constant 0 : index
    %44 = vector.load %arg5[%c0_28, %c0_29, %c0_30] : memref<5x84x160xf32, #tpu.memory_space<vmem>>, vector<1x84x160xf32>
    %45 = vector.shape_cast %44 : vector<1x84x160xf32> to vector<84x160xf32>
    %cst_31 = arith.constant dense<0.000000e+00> : vector<80x160xf32>
    %46 = tpu.matmul %43, %45, %cst_31 {dimension_numbers = #tpu.dot_dimension_numbers<[1], [0], [0], [1], [0, 0, 1, 1], [], []>} : vector<80x84xf32>, vector<84x160xf32>, vector<80x160xf32> -> vector<80x160xf32>
    %47 = vector.extract_strided_slice %42 {offsets = [8, 0], sizes = [80, 84], strides = [1, 1]} : vector<112x84xf32> to vector<80x84xf32>
    %c1_32 = arith.constant 1 : index
    %c0_33 = arith.constant 0 : index
    %c0_34 = arith.constant 0 : index
    %48 = vector.load %arg5[%c1_32, %c0_33, %c0_34] : memref<5x84x160xf32, #tpu.memory_space<vmem>>, vector<1x84x160xf32>
    %49 = vector.shape_cast %48 : vector<1x84x160xf32> to vector<84x160xf32>
    %cst_35 = arith.constant dense<0.000000e+00> : vector<80x160xf32>
    %50 = tpu.matmul %47, %49, %cst_35 {dimension_numbers = #tpu.dot_dimension_numbers<[1], [0], [0], [1], [0, 0, 1, 1], [], []>} : vector<80x84xf32>, vector<84x160xf32>, vector<80x160xf32> -> vector<80x160xf32>
    %51 = arith.addf %46, %50 : vector<80x160xf32>
    %52 = vector.extract_strided_slice %42 {offsets = [16, 0], sizes = [80, 84], strides = [1, 1]} : vector<112x84xf32> to vector<80x84xf32>
    %c2_36 = arith.constant 2 : index
    %c0_37 = arith.constant 0 : index
    %c0_38 = arith.constant 0 : index
    %53 = vector.load %arg5[%c2_36, %c0_37, %c0_38] : memref<5x84x160xf32, #tpu.memory_space<vmem>>, vector<1x84x160xf32>
    %54 = vector.shape_cast %53 : vector<1x84x160xf32> to vector<84x160xf32>
    %cst_39 = arith.constant dense<0.000000e+00> : vector<80x160xf32>
    %55 = tpu.matmul %52, %54, %cst_39 {dimension_numbers = #tpu.dot_dimension_numbers<[1], [0], [0], [1], [0, 0, 1, 1], [], []>} : vector<80x84xf32>, vector<84x160xf32>, vector<80x160xf32> -> vector<80x160xf32>
    %56 = arith.addf %51, %55 : vector<80x160xf32>
    %57 = vector.extract_strided_slice %42 {offsets = [24, 0], sizes = [80, 84], strides = [1, 1]} : vector<112x84xf32> to vector<80x84xf32>
    %c3_40 = arith.constant 3 : index
    %c0_41 = arith.constant 0 : index
    %c0_42 = arith.constant 0 : index
    %58 = vector.load %arg5[%c3_40, %c0_41, %c0_42] : memref<5x84x160xf32, #tpu.memory_space<vmem>>, vector<1x84x160xf32>
    %59 = vector.shape_cast %58 : vector<1x84x160xf32> to vector<84x160xf32>
    %cst_43 = arith.constant dense<0.000000e+00> : vector<80x160xf32>
    %60 = tpu.matmul %57, %59, %cst_43 {dimension_numbers = #tpu.dot_dimension_numbers<[1], [0], [0], [1], [0, 0, 1, 1], [], []>} : vector<80x84xf32>, vector<84x160xf32>, vector<80x160xf32> -> vector<80x160xf32>
    %61 = arith.addf %56, %60 : vector<80x160xf32>
    %62 = vector.extract_strided_slice %42 {offsets = [32, 0], sizes = [80, 84], strides = [1, 1]} : vector<112x84xf32> to vector<80x84xf32>
    %c4_44 = arith.constant 4 : index
    %c0_45 = arith.constant 0 : index
    %c0_46 = arith.constant 0 : index
    %63 = vector.load %arg5[%c4_44, %c0_45, %c0_46] : memref<5x84x160xf32, #tpu.memory_space<vmem>>, vector<1x84x160xf32>
    %64 = vector.shape_cast %63 : vector<1x84x160xf32> to vector<84x160xf32>
    %cst_47 = arith.constant dense<0.000000e+00> : vector<80x160xf32>
    %65 = tpu.matmul %62, %64, %cst_47 {dimension_numbers = #tpu.dot_dimension_numbers<[1], [0], [0], [1], [0, 0, 1, 1], [], []>} : vector<80x84xf32>, vector<84x160xf32>, vector<80x160xf32> -> vector<80x160xf32>
    %66 = arith.addf %61, %65 : vector<80x160xf32>
    %c0_48 = arith.constant 0 : index
    %c0_49 = arith.constant 0 : index
    %67 = vector.load %arg6[%c0_48, %c0_49] : memref<1x160xf32, #tpu.memory_space<vmem>>, vector<1x160xf32>
    %68 = vector.broadcast %67 : vector<1x160xf32> to vector<80x160xf32>
    %69 = arith.addf %66, %68 : vector<80x160xf32>
    %cst_50 = arith.constant 0.000000e+00 : f32
    %70 = vector.broadcast %cst_50 : f32 to vector<80x160xf32>
    %71 = arith.maximumf %69, %70 : vector<80x160xf32>
    %72 = vector.shape_cast %71 : vector<80x160xf32> to vector<5x16x160xf32>
    %73 = vector.extract_strided_slice %72 {offsets = [0, 0, 0], sizes = [5, 8, 160], strides = [1, 1, 1]} : vector<5x16x160xf32> to vector<5x8x160xf32>
    %74 = vector.extract_strided_slice %72 {offsets = [0, 8, 0], sizes = [5, 8, 160], strides = [1, 1, 1]} : vector<5x16x160xf32> to vector<5x8x160xf32>
    %75 = arith.maximumf %73, %74 : vector<5x8x160xf32>
    %76 = vector.shape_cast %75 : vector<5x8x160xf32> to vector<40x160xf32>
    %c0_51 = arith.constant 0 : index
    %c0_52 = arith.constant 0 : index
    %c0_53 = arith.constant 0 : index
    %77 = vector.load %arg7[%c0_51, %c0_52, %c0_53] : memref<2x160x80xf32, #tpu.memory_space<vmem>>, vector<1x160x80xf32>
    %78 = vector.shape_cast %77 : vector<1x160x80xf32> to vector<160x80xf32>
    %cst_54 = arith.constant dense<0.000000e+00> : vector<40x80xf32>
    %79 = tpu.matmul %76, %78, %cst_54 {dimension_numbers = #tpu.dot_dimension_numbers<[1], [0], [0], [1], [0, 0, 1, 1], [], []>} : vector<40x160xf32>, vector<160x80xf32>, vector<40x80xf32> -> vector<40x80xf32>
    %c1_55 = arith.constant 1 : index
    %c0_56 = arith.constant 0 : index
    %c0_57 = arith.constant 0 : index
    %80 = vector.load %arg7[%c1_55, %c0_56, %c0_57] : memref<2x160x80xf32, #tpu.memory_space<vmem>>, vector<1x160x80xf32>
    %81 = vector.shape_cast %80 : vector<1x160x80xf32> to vector<160x80xf32>
    %cst_58 = arith.constant dense<0.000000e+00> : vector<40x80xf32>
    %82 = tpu.matmul %76, %81, %cst_58 {dimension_numbers = #tpu.dot_dimension_numbers<[1], [0], [0], [1], [0, 0, 1, 1], [], []>} : vector<40x160xf32>, vector<160x80xf32>, vector<40x80xf32> -> vector<40x80xf32>
    %83 = arith.maximumf %79, %82 : vector<40x80xf32>
    %84 = vector.extract_strided_slice %83 {offsets = [0, 0], sizes = [8, 80], strides = [1, 1]} : vector<40x80xf32> to vector<8x80xf32>
    %c0_59 = arith.constant 0 : index
    %c0_60 = arith.constant 0 : index
    %85 = vector.load %arg8[%c0_59, %c0_60] : memref<400x120xf32, #tpu.memory_space<vmem>>, vector<80x120xf32>
    %cst_61 = arith.constant dense<0.000000e+00> : vector<8x120xf32>
    %86 = tpu.matmul %84, %85, %cst_61 {dimension_numbers = #tpu.dot_dimension_numbers<[1], [0], [0], [1], [0, 0, 1, 1], [], []>} : vector<8x80xf32>, vector<80x120xf32>, vector<8x120xf32> -> vector<8x120xf32>
    %c0_62 = arith.constant 0 : index
    %c0_63 = arith.constant 0 : index
    %87 = vector.load %arg9[%c0_62, %c0_63] : memref<1x120xf32, #tpu.memory_space<vmem>>, vector<1x120xf32>
    %88 = vector.broadcast %87 : vector<1x120xf32> to vector<8x120xf32>
    %89 = arith.addf %86, %88 : vector<8x120xf32>
    %90 = vector.extract_strided_slice %83 {offsets = [8, 0], sizes = [8, 80], strides = [1, 1]} : vector<40x80xf32> to vector<8x80xf32>
    %c80 = arith.constant 80 : index
    %c0_64 = arith.constant 0 : index
    %91 = vector.load %arg8[%c80, %c0_64] : memref<400x120xf32, #tpu.memory_space<vmem>>, vector<80x120xf32>
    %cst_65 = arith.constant dense<0.000000e+00> : vector<8x120xf32>
    %92 = tpu.matmul %90, %91, %cst_65 {dimension_numbers = #tpu.dot_dimension_numbers<[1], [0], [0], [1], [0, 0, 1, 1], [], []>} : vector<8x80xf32>, vector<80x120xf32>, vector<8x120xf32> -> vector<8x120xf32>
    %93 = arith.addf %89, %92 : vector<8x120xf32>
    %94 = vector.extract_strided_slice %83 {offsets = [16, 0], sizes = [8, 80], strides = [1, 1]} : vector<40x80xf32> to vector<8x80xf32>
    %c160 = arith.constant 160 : index
    %c0_66 = arith.constant 0 : index
    %95 = vector.load %arg8[%c160, %c0_66] : memref<400x120xf32, #tpu.memory_space<vmem>>, vector<80x120xf32>
    %cst_67 = arith.constant dense<0.000000e+00> : vector<8x120xf32>
    %96 = tpu.matmul %94, %95, %cst_67 {dimension_numbers = #tpu.dot_dimension_numbers<[1], [0], [0], [1], [0, 0, 1, 1], [], []>} : vector<8x80xf32>, vector<80x120xf32>, vector<8x120xf32> -> vector<8x120xf32>
    %97 = arith.addf %93, %96 : vector<8x120xf32>
    %98 = vector.extract_strided_slice %83 {offsets = [24, 0], sizes = [8, 80], strides = [1, 1]} : vector<40x80xf32> to vector<8x80xf32>
    %c240 = arith.constant 240 : index
    %c0_68 = arith.constant 0 : index
    %99 = vector.load %arg8[%c240, %c0_68] : memref<400x120xf32, #tpu.memory_space<vmem>>, vector<80x120xf32>
    %cst_69 = arith.constant dense<0.000000e+00> : vector<8x120xf32>
    %100 = tpu.matmul %98, %99, %cst_69 {dimension_numbers = #tpu.dot_dimension_numbers<[1], [0], [0], [1], [0, 0, 1, 1], [], []>} : vector<8x80xf32>, vector<80x120xf32>, vector<8x120xf32> -> vector<8x120xf32>
    %101 = arith.addf %97, %100 : vector<8x120xf32>
    %102 = vector.extract_strided_slice %83 {offsets = [32, 0], sizes = [8, 80], strides = [1, 1]} : vector<40x80xf32> to vector<8x80xf32>
    %c320 = arith.constant 320 : index
    %c0_70 = arith.constant 0 : index
    %103 = vector.load %arg8[%c320, %c0_70] : memref<400x120xf32, #tpu.memory_space<vmem>>, vector<80x120xf32>
    %cst_71 = arith.constant dense<0.000000e+00> : vector<8x120xf32>
    %104 = tpu.matmul %102, %103, %cst_71 {dimension_numbers = #tpu.dot_dimension_numbers<[1], [0], [0], [1], [0, 0, 1, 1], [], []>} : vector<8x80xf32>, vector<80x120xf32>, vector<8x120xf32> -> vector<8x120xf32>
    %105 = arith.addf %101, %104 : vector<8x120xf32>
    %cst_72 = arith.constant 0.000000e+00 : f32
    %106 = vector.broadcast %cst_72 : f32 to vector<8x120xf32>
    %107 = arith.maximumf %105, %106 : vector<8x120xf32>
    %c0_73 = arith.constant 0 : index
    %c0_74 = arith.constant 0 : index
    %108 = vector.load %arg10[%c0_73, %c0_74] : memref<120x84xf32, #tpu.memory_space<vmem>>, vector<120x84xf32>
    %cst_75 = arith.constant dense<0.000000e+00> : vector<8x84xf32>
    %109 = tpu.matmul %107, %108, %cst_75 {dimension_numbers = #tpu.dot_dimension_numbers<[1], [0], [0], [1], [0, 0, 1, 1], [], []>} : vector<8x120xf32>, vector<120x84xf32>, vector<8x84xf32> -> vector<8x84xf32>
    %c0_76 = arith.constant 0 : index
    %c0_77 = arith.constant 0 : index
    %110 = vector.load %arg11[%c0_76, %c0_77] : memref<1x84xf32, #tpu.memory_space<vmem>>, vector<1x84xf32>
    %111 = vector.broadcast %110 : vector<1x84xf32> to vector<8x84xf32>
    %112 = arith.addf %109, %111 : vector<8x84xf32>
    %cst_78 = arith.constant 0.000000e+00 : f32
    %113 = vector.broadcast %cst_78 : f32 to vector<8x84xf32>
    %114 = arith.maximumf %112, %113 : vector<8x84xf32>
    %c0_79 = arith.constant 0 : index
    %c0_80 = arith.constant 0 : index
    %115 = vector.load %arg12[%c0_79, %c0_80] : memref<84x128xf32, #tpu.memory_space<vmem>>, vector<84x128xf32>
    %cst_81 = arith.constant dense<0.000000e+00> : vector<8x128xf32>
    %116 = tpu.matmul %114, %115, %cst_81 {dimension_numbers = #tpu.dot_dimension_numbers<[1], [0], [0], [1], [0, 0, 1, 1], [], []>} : vector<8x84xf32>, vector<84x128xf32>, vector<8x128xf32> -> vector<8x128xf32>
    %c0_82 = arith.constant 0 : index
    %c0_83 = arith.constant 0 : index
    %117 = vector.load %arg13[%c0_82, %c0_83] : memref<1x128xf32, #tpu.memory_space<vmem>>, vector<1x128xf32>
    %118 = vector.broadcast %117 : vector<1x128xf32> to vector<8x128xf32>
    %119 = arith.addf %116, %118 : vector<8x128xf32>
    %c0_84 = arith.constant 0 : index
    %c0_85 = arith.constant 0 : index
    %120 = vector.load %arg14[%c0_84, %c0_85] : memref<8x128xf32, #tpu.memory_space<vmem>>, vector<8x128xf32>
    tpu.vector_store %arg14[%c0_84, %c0_85], %119 {strides = array<i32>} : memref<8x128xf32, #tpu.memory_space<vmem>>, vector<8x128xf32>,
    return
  }
  func.func @transform_0(%arg0: i32) -> (i32, i32, i32) {
    %c0_i32 = arith.constant 0 : i32
    %c0_i32_0 = arith.constant 0 : i32
    %c0_i32_1 = arith.constant 0 : i32
    return %c0_i32, %arg0, %c0_i32_0 : i32, i32, i32
  }
  func.func @transform_1(%arg0: i32) -> (i32, i32, i32) {
    %c0_i32 = arith.constant 0 : i32
    %c0_i32_0 = arith.constant 0 : i32
    %c0_i32_1 = arith.constant 0 : i32
    %c0_i32_2 = arith.constant 0 : i32
    return %c0_i32, %c0_i32_0, %c0_i32_1 : i32, i32, i32
  }
  func.func @transform_2(%arg0: i32) -> (i32, i32) {
    %c0_i32 = arith.constant 0 : i32
    %c0_i32_0 = arith.constant 0 : i32
    %c0_i32_1 = arith.constant 0 : i32
    return %c0_i32, %c0_i32_0 : i32, i32
  }
  func.func @transform_3(%arg0: i32) -> (i32, i32, i32) {
    %c0_i32 = arith.constant 0 : i32
    %c0_i32_0 = arith.constant 0 : i32
    %c0_i32_1 = arith.constant 0 : i32
    %c0_i32_2 = arith.constant 0 : i32
    return %c0_i32, %c0_i32_0, %c0_i32_1 : i32, i32, i32
  }
  func.func @transform_4(%arg0: i32) -> (i32, i32, i32) {
    %c0_i32 = arith.constant 0 : i32
    %c0_i32_0 = arith.constant 0 : i32
    %c0_i32_1 = arith.constant 0 : i32
    %c0_i32_2 = arith.constant 0 : i32
    return %c0_i32, %c0_i32_0, %c0_i32_1 : i32, i32, i32
  }
  func.func @transform_5(%arg0: i32) -> (i32, i32) {
    %c0_i32 = arith.constant 0 : i32
    %c0_i32_0 = arith.constant 0 : i32
    %c0_i32_1 = arith.constant 0 : i32
    return %c0_i32, %c0_i32_0 : i32, i32
  }
  func.func @transform_6(%arg0: i32) -> (i32, i32, i32) {
    %c0_i32 = arith.constant 0 : i32
    %c0_i32_0 = arith.constant 0 : i32
    %c0_i32_1 = arith.constant 0 : i32
    %c0_i32_2 = arith.constant 0 : i32
    return %c0_i32, %c0_i32_0, %c0_i32_1 : i32, i32, i32
  }
  func.func @transform_7(%arg0: i32) -> (i32, i32) {
    %c0_i32 = arith.constant 0 : i32
    %c0_i32_0 = arith.constant 0 : i32
    %c0_i32_1 = arith.constant 0 : i32
    return %c0_i32, %c0_i32_0 : i32, i32
  }
  func.func @transform_8(%arg0: i32) -> (i32, i32) {
    %c0_i32 = arith.constant 0 : i32
    %c0_i32_0 = arith.constant 0 : i32
    %c0_i32_1 = arith.constant 0 : i32
    return %c0_i32, %c0_i32_0 : i32, i32
  }
  func.func @transform_9(%arg0: i32) -> (i32, i32) {
    %c0_i32 = arith.constant 0 : i32
    %c0_i32_0 = arith.constant 0 : i32
    %c0_i32_1 = arith.constant 0 : i32
    return %c0_i32, %c0_i32_0 : i32, i32
  }
  func.func @transform_10(%arg0: i32) -> (i32, i32) {
    %c0_i32 = arith.constant 0 : i32
    %c0_i32_0 = arith.constant 0 : i32
    %c0_i32_1 = arith.constant 0 : i32
    return %c0_i32, %c0_i32_0 : i32, i32
  }
  func.func @transform_11(%arg0: i32) -> (i32, i32) {
    %c0_i32 = arith.constant 0 : i32
    %c0_i32_0 = arith.constant 0 : i32
    %c0_i32_1 = arith.constant 0 : i32
    return %c0_i32, %c0_i32_0 : i32, i32
  }
  func.func @transform_12(%arg0: i32) -> (i32, i32) {
    %c0_i32 = arith.constant 0 : i32
    %c0_i32_0 = arith.constant 0 : i32
    %c0_i32_1 = arith.constant 0 : i32
    return %c0_i32, %c0_i32_0 : i32, i32
  }
  func.func @transform_13(%arg0: i32) -> (i32, i32) {
    %c0_i32 = arith.constant 0 : i32
    %c0_i32_0 = arith.constant 0 : i32
    return %arg0, %c0_i32 : i32, i32
  }
}

</mosaic_0001>

<llo_original>
// kernel: _net_forward_padded.1
$region0: #{_net_forward_padded.1}
  #allocation0 [shape = 'u32[]', space=smem, size = 0x4, offset = 0x4, fixed_abs, tag = 'smem constant byte address 0x4 - core index']
  #allocation1 [shape = 'u32[144,128]{1,0:T(1,128)}', space=vmem, size = 0x12000, scoped, tag = 'internal scratch']
  %s0 = inlined_call_operand.vmem [shape: f32[32,8,32], index: 0, kind: input, shape index: {}]
  %s1 = inlined_call_operand.vmem [shape: f32[5,32,168], index: 1, kind: input, shape index: {}]
  %s2 = inlined_call_operand.vmem [shape: f32[1,168], index: 2, kind: input, shape index: {}]
  %s3 = inlined_call_operand.vmem [shape: f32[2,168,84], index: 3, kind: input, shape index: {}]
  %s4 = inlined_call_operand.vmem [shape: f32[5,84,160], index: 4, kind: input, shape index: {}]
  %s5 = inlined_call_operand.vmem [shape: f32[1,160], index: 5, kind: input, shape index: {}]
  %s6 = inlined_call_operand.vmem [shape: f32[2,160,80], index: 6, kind: input, shape index: {}]
  %s7 = inlined_call_operand.vmem [shape: f32[400,120], index: 7, kind: input, shape index: {}]
  %s8 = inlined_call_operand.vmem [shape: f32[1,120], index: 8, kind: input, shape index: {}]
  %s9 = inlined_call_operand.vmem [shape: f32[120,84], index: 9, kind: input, shape index: {}]
  %s10 = inlined_call_operand.vmem [shape: f32[1,84], index: 10, kind: input, shape index: {}]
  %s11 = inlined_call_operand.vmem [shape: f32[84,128], index: 11, kind: input, shape index: {}]
  %s12 = inlined_call_operand.vmem [shape: f32[1,128], index: 12, kind: input, shape index: {}]
  %s13 = inlined_call_operand.hbm [shape: f32[8,128], index: 13, kind: output, shape index: {}]
  %s14 = sld [smem:[#allocation0]]
  $region62: #{_net_forward_padded.1} parent=0
    _
  %s16 = ssub.s32 1, %s14
  %s17 = scalar_select 0, %s16, %s14
  $region1: #{_net_forward_padded.1} parent=0
    #allocation2 [shape = 'u8[4096]{0}', space=vmem, size = 0x1000, scoped, tag = 'output window, operand 0, single buffered']
    #allocation3 [shape = 's32[1]{0}', space=sflag, size = 0x4, scoped, tag = 'scoped memory for _net_forward_padded.1']
    %18 = vsyncpa [#allocation3], 0
    // Predicated region
    $region2: #{_net_forward_padded.1} parent=1 // pred_check
      _
    $region3: #{_net_forward_padded.1} parent=1 // pred_check_branch
      %20 = sbr.rel (0) target = $region5
    $region4: #{_net_forward_padded.1} parent=1 // pred_region
      _
    $region5: #{_net_forward_padded.1} parent=1 // pred_fallthru
      _
    // Predicated region
    $region6: #{_net_forward_padded.1} parent=1 // pred_check
      _
    $region7: #{_net_forward_padded.1} parent=1 // pred_check_branch
      %22 = sbr.rel (0) target = $region9
    $region8: #{_net_forward_padded.1} parent=1 // pred_region
      _
    $region9: #{_net_forward_padded.1} parent=1 // pred_fallthru
      _
    // Predicated region
    $region10: #{_net_forward_padded.1} parent=1 // pred_check
      _
    $region11: #{_net_forward_padded.1} parent=1 // pred_check_branch
      %24 = sbr.rel (0) target = $region13
    $region12: #{_net_forward_padded.1} parent=1 // pred_region
      _
    $region13: #{_net_forward_padded.1} parent=1 // pred_fallthru
      _
    // Predicated region
    $region14: #{_net_forward_padded.1} parent=1 // pred_check
      _
    $region15: #{_net_forward_padded.1} parent=1 // pred_check_branch
      %26 = sbr.rel (0) target = $region17
    $region16: #{_net_forward_padded.1} parent=1 // pred_region
      _
    $region17: #{_net_forward_padded.1} parent=1 // pred_fallthru
      _
    // Predicated region
    $region18: #{_net_forward_padded.1} parent=1 // pred_check
      _
    $region19: #{_net_forward_padded.1} parent=1 // pred_check_branch
      %28 = sbr.rel (0) target = $region21
    $region20: #{_net_forward_padded.1} parent=1 // pred_region
      _
    $region21: #{_net_forward_padded.1} parent=1 // pred_fallthru
      _
    // Predicated region
    $region22: #{_net_forward_padded.1} parent=1 // pred_check
      _
    $region23: #{_net_forward_padded.1} parent=1 // pred_check_branch
      %30 = sbr.rel (0) target = $region25
    $region24: #{_net_forward_padded.1} parent=1 // pred_region
      _
    $region25: #{_net_forward_padded.1} parent=1 // pred_fallthru
      _
    // Predicated region
    $region26: #{_net_forward_padded.1} parent=1 // pred_check
      _
    $region27: #{_net_forward_padded.1} parent=1 // pred_check_branch
      %32 = sbr.rel (0) target = $region29
    $region28: #{_net_forward_padded.1} parent=1 // pred_region
      _
    $region29: #{_net_forward_padded.1} parent=1 // pred_fallthru
      _
    // Predicated region
    $region30: #{_net_forward_padded.1} parent=1 // pred_check
      _
    $region31: #{_net_forward_padded.1} parent=1 // pred_check_branch
      %34 = sbr.rel (0) target = $region33
    $region32: #{_net_forward_padded.1} parent=1 // pred_region
      _
    $region33: #{_net_forward_padded.1} parent=1 // pred_fallthru
      _
    // Predicated region
    $region34: #{_net_forward_padded.1} parent=1 // pred_check
      _
    $region35: #{_net_forward_padded.1} parent=1 // pred_check_branch
      %36 = sbr.rel (0) target = $region37
    $region36: #{_net_forward_padded.1} parent=1 // pred_region
      _
    $region37: #{_net_forward_padded.1} parent=1 // pred_fallthru
      _
    // Predicated region
    $region38: #{_net_forward_padded.1} parent=1 // pred_check
      _
    $region39: #{_net_forward_padded.1} parent=1 // pred_check_branch
      %38 = sbr.rel (0) target = $region41
    $region40: #{_net_forward_padded.1} parent=1 // pred_region
      _
    $region41: #{_net_forward_padded.1} parent=1 // pred_fallthru
      _
    // Predicated region
    $region42: #{_net_forward_padded.1} parent=1 // pred_check
      _
    $region43: #{_net_forward_padded.1} parent=1 // pred_check_branch
      %40 = sbr.rel (0) target = $region45
    $region44: #{_net_forward_padded.1} parent=1 // pred_region
      _
    $region45: #{_net_forward_padded.1} parent=1 // pred_fallthru
      _
    // Predicated region
    $region46: #{_net_forward_padded.1} parent=1 // pred_check
      _
    $region47: #{_net_forward_padded.1} parent=1 // pred_check_branch
      %42 = sbr.rel (0) target = $region49
    $region48: #{_net_forward_padded.1} parent=1 // pred_region
      _
    $region49: #{_net_forward_padded.1} parent=1 // pred_fallthru
      _
    // Predicated region
    $region50: #{_net_forward_padded.1} parent=1 // pred_check
      _
    $region51: #{_net_forward_padded.1} parent=1 // pred_check_branch
      %44 = sbr.rel (0) target = $region53
    $region52: #{_net_forward_padded.1} parent=1 // pred_region
      _
    $region53: #{_net_forward_padded.1} parent=1 // pred_fallthru
      _
    %v45 = vld [vmem:[%s0] sm:$0xff]
    %v46 = vld [vmem:[%s0 + $0x8] sm:$0xff]
    %v47 = vld [vmem:[%s0 + $0x10] sm:$0xff]
    %v48 = vld [vmem:[%s0 + $0x18] sm:$0xff]
    %v49 = vld [vmem:[%s0 + $0x20] sm:$0xff]
    %v50 = vld [vmem:[%s0 + $0x28] sm:$0xff]
    %v51 = vld [vmem:[%s0 + $0x30] sm:$0xff]
    %v52 = vld [vmem:[%s0 + $0x38] sm:$0xff]
    %v53 = vld [vmem:[%s0 + $0x40] sm:$0xff]
    %v54 = vld [vmem:[%s0 + $0x48] sm:$0xff]
    %v55 = vld [vmem:[%s0 + $0x50] sm:$0xff]
    %v56 = vld [vmem:[%s0 + $0x58] sm:$0xff]
    %v57 = vld [vmem:[%s0 + $0x60] sm:$0xff]
    %v58 = vld [vmem:[%s0 + $0x68] sm:$0xff]
    %v59 = vld [vmem:[%s0 + $0x70] sm:$0xff]
    %v60 = vld [vmem:[%s0 + $0x78] sm:$0xff]
    %v61 = vld [vmem:[%s0 + $0x80] sm:$0xff]
    %v62 = vld [vmem:[%s0 + $0x88] sm:$0xff]
    %v63 = vld [vmem:[%s0 + $0x90] sm:$0xff]
    %v64 = vld [vmem:[%s0 + $0x98] sm:$0xff]
    %v65 = vld [vmem:[%s0 + $0xa0] sm:$0xff]
    %v66 = vld [vmem:[%s0 + $0xa8] sm:$0xff]
    %v67 = vld [vmem:[%s0 + $0xb0] sm:$0xff]
    %v68 = vld [vmem:[%s0 + $0xb8] sm:$0xff]
    %v69 = vld [vmem:[%s0 + $0xc0] sm:$0xff]
    %v70 = vld [vmem:[%s0 + $0xc8] sm:$0xff]
    %v71 = vld [vmem:[%s0 + $0xd0] sm:$0xff]
    %v72 = vld [vmem:[%s0 + $0xd8] sm:$0xff]
    %v73 = vld [vmem:[%s0 + $0xe0] sm:$0xff]
    %v74 = vld [vmem:[%s0 + $0xe8] sm:$0xff]
    %v75 = vld [vmem:[%s0 + $0xf0] sm:$0xff]
    %v76 = vld [vmem:[%s0 + $0xf8] sm:$0xff]
    %v77 = vld [vmem:[%s1] sm:$0xff]
    %v78 = vld [vmem:[%s1 + $0x8] sm:$0xff]
    %v79 = vld [vmem:[%s1 + $0x10] sm:$0xff]
    %v80 = vld [vmem:[%s1 + $0x18] sm:$0xff]
    %v81 = vld [vmem:[%s1 + $0x20] sm:$0xff]
    %v82 = vld [vmem:[%s1 + $0x28] sm:$0xff]
    %v83 = vld [vmem:[%s1 + $0x30] sm:$0xff]
    %v84 = vld [vmem:[%s1 + $0x38] sm:$0xff]
    %s85 = scalar_lea.vmem %s1, 64
    %v86 = vld [vmem:[%s85] sm:$0xff]
    %v87 = vld [vmem:[%s85 + $0x8] sm:$0xff]
    %v88 = vld [vmem:[%s85 + $0x10] sm:$0xff]
    %v89 = vld [vmem:[%s85 + $0x18] sm:$0xff]
    %v90 = vld [vmem:[%s85 + $0x20] sm:$0xff]
    %v91 = vld [vmem:[%s85 + $0x28] sm:$0xff]
    %v92 = vld [vmem:[%s85 + $0x30] sm:$0xff]
    %v93 = vld [vmem:[%s85 + $0x38] sm:$0xff]
    %vm94 = vcmask 261120
    %v96 = vsel %vm94, %v46, 0
    %v99 = vsel %vm94, %v47, 0
    %v102 = vsel %vm94, %v48, 0
    %v105 = vsel %vm94, %v49, 0
    %v108 = vsel %vm94, %v50, 0
    %v111 = vsel %vm94, %v51, 0
    %v114 = vsel %vm94, %v52, 0
    %v117 = vsel %vm94, %v53, 0
    %v120 = vsel %vm94, %v54, 0
    %v123 = vsel %vm94, %v55, 0
    %v126 = vsel %vm94, %v56, 0
    %v129 = vsel %vm94, %v57, 0
    %v132 = vsel %vm94, %v58, 0
    %v135 = vsel %vm94, %v59, 0
    %v138 = vsel %vm94, %v60, 0
    %v141 = vsel %vm94, %v61, 0
    %v144 = vsel %vm94, %v62, 0
    %v147 = vsel %vm94, %v63, 0
    %v150 = vsel %vm94, %v64, 0
    %v153 = vsel %vm94, %v65, 0
    %v156 = vsel %vm94, %v66, 0
    %v159 = vsel %vm94, %v67, 0
    %v162 = vsel %vm94, %v68, 0
    %v165 = vsel %vm94, %v69, 0
    %v168 = vsel %vm94, %v70, 0
    %v171 = vsel %vm94, %v71, 0
    %v174 = vsel %vm94, %v72, 0
    %v177 = vsel %vm94, %v73, 0
    %179 = vmatprep.subr.mxu0 0.0
    %180 = vmatpush1.msra.mxu0 0.0
    %181 = vmatprep.subr.mxu0 0.0
    %182 = vmatpush1.msra.mxu0 0.0
    %183 = vmatprep.subr.mxu0 0.0
    %184 = vmatpush1.msra.mxu0 0.0
    %185 = vmatprep.subr.mxu0 0.0
    %186 = vmatpush1.msra.mxu0 0.0
    %187 = vmatprep.subr.mxu0 0.0
    %188 = vmatpush1.msra.mxu0 0.0
    %189 = vmatprep.subr.mxu0 0.0
    %190 = vmatpush1.msra.mxu0 0.0
    %191 = vmatprep.subr.mxu0 0.0
    %192 = vmatpush1.msra.mxu0 0.0
    %193 = vmatprep.subr.mxu0 0.0
    %194 = vmatpush1.msra.mxu0 0.0
    %195 = vmatprep.subr.mxu0 0.0
    %196 = vmatpush1.msra.mxu0 0.0
    %197 = vmatprep.subr.mxu0 0.0
    %198 = vmatpush1.msra.mxu0 0.0
    %199 = vmatprep.subr.mxu0 0.0
    %200 = vmatpush1.msra.mxu0 0.0
    %201 = vmatprep.subr.mxu0 0.0
    %202 = vmatpush1.msra.mxu0 0.0
    %203 = vmatprep.subr.mxu0 %v93
    %204 = vmatpush1.msra.mxu0 %v92
    %205 = vmatprep.subr.mxu0 %v91
    %206 = vmatpush1.msra.mxu0 %v90
    %207 = vmatprep.subr.mxu0 %v89
    %208 = vmatpush1.msra.mxu0 %v88
    %209 = vmatprep.subr.mxu0 %v87
    %210 = vmatpush1.msra.mxu0 %v86
    %211 = vmatprep.subr.mxu0 0.0
    %212 = vmatpush2.msra.mxu0 0.0
    %213 = vmatprep.subr.mxu0 0.0
    %214 = vmatpush2.msra.mxu0 0.0
    %215 = vmatprep.subr.mxu0 0.0
    %216 = vmatpush2.msra.mxu0 0.0
    %217 = vmatprep.subr.mxu0 0.0
    %218 = vmatpush2.msra.mxu0 0.0
    %219 = vmatprep.subr.mxu0 0.0
    %220 = vmatpush2.msra.mxu0 0.0
    %221 = vmatprep.subr.mxu0 0.0
    %222 = vmatpush2.msra.mxu0 0.0
    %223 = vmatprep.subr.mxu0 0.0
    %224 = vmatpush2.msra.mxu0 0.0
    %225 = vmatprep.subr.mxu0 0.0
    %226 = vmatpush2.msra.mxu0 0.0
    %227 = vmatprep.subr.mxu0 0.0
    %228 = vmatpush2.msra.mxu0 0.0
    %229 = vmatprep.subr.mxu0 0.0
    %230 = vmatpush2.msra.mxu0 0.0
    %231 = vmatprep.subr.mxu0 0.0
    %232 = vmatpush2.msra.mxu0 0.0
    %233 = vmatprep.subr.mxu0 0.0
    %234 = vmatpush2.msra.mxu0 0.0
    %235 = vmatprep.subr.mxu0 0.0
    %236 = vmatpush2.msra.mxu0 0.0
    %237 = vmatprep.subr.mxu0 0.0
    %238 = vmatpush2.msra.mxu0 0.0
    %239 = vmatprep.subr.mxu0 0.0
    %240 = vmatpush2.msra.mxu0 0.0
    %241 = vmatprep.subr.mxu0 0.0
    %242 = vmatpush2.msra.mxu0 0.0
    %243 = vmatprep.mubr.f32.mxu0 0.0
    %244 = vmatmul.mubr.f32.gmra.mxu0 %v96
    %v245 = vpop.f32.mrf.mxu0
    %v246 = vadd.f32 0.0, %v245
    %v247 = vpop.f32.mrf.mxu0
    %v248 = vadd.f32 0.0, %v247
    %249 = vmatprep.mubr.f32.mxu0 0.0
    %250 = vmatmul.mubr.f32.gmra.mxu0 %v99
    %v251 = vpop.f32.mrf.mxu0
    %v252 = vadd.f32 0.0, %v251
    %v253 = vpop.f32.mrf.mxu0
    %v254 = vadd.f32 0.0, %v253
    %255 = vmatprep.mubr.f32.mxu0 0.0
    %256 = vmatmul.mubr.f32.gmra.mxu0 %v102
    %v257 = vpop.f32.mrf.mxu0
    %v258 = vadd.f32 0.0, %v257
    %v259 = vpop.f32.mrf.mxu0
    %v260 = vadd.f32 0.0, %v259
    %261 = vmatprep.mubr.f32.mxu0 0.0
    %262 = vmatmul.mubr.f32.gmra.mxu0 %v105
    %v263 = vpop.f32.mrf.mxu0
    %v264 = vadd.f32 0.0, %v263
    %v265 = vpop.f32.mrf.mxu0
    %v266 = vadd.f32 0.0, %v265
    %267 = vmatprep.mubr.f32.mxu0 0.0
    %268 = vmatmul.mubr.f32.gmra.mxu0 %v108
    %v269 = vpop.f32.mrf.mxu0
    %v270 = vadd.f32 0.0, %v269
    %v271 = vpop.f32.mrf.mxu0
    %v272 = vadd.f32 0.0, %v271
    %273 = vmatprep.mubr.f32.mxu0 0.0
    %274 = vmatmul.mubr.f32.gmra.mxu0 %v111
    %v275 = vpop.f32.mrf.mxu0
    %v276 = vadd.f32 0.0, %v275
    %v277 = vpop.f32.mrf.mxu0
    %v278 = vadd.f32 0.0, %v277
    %279 = vmatprep.mubr.f32.mxu0 0.0
    %280 = vmatmul.mubr.f32.gmra.mxu0 %v114
    %v281 = vpop.f32.mrf.mxu0
    %v282 = vadd.f32 0.0, %v281
    %v283 = vpop.f32.mrf.mxu0
    %v284 = vadd.f32 0.0, %v283
    %285 = vmatprep.mubr.f32.mxu0 0.0
    %286 = vmatmul.mubr.f32.gmra.mxu0 %v117
    %v287 = vpop.f32.mrf.mxu0
    %v288 = vadd.f32 0.0, %v287
    %v289 = vpop.f32.mrf.mxu0
    %v290 = vadd.f32 0.0, %v289
    %291 = vmatprep.mubr.f32.mxu0 0.0
    %292 = vmatmul.mubr.f32.gmra.mxu0 %v120
    %v293 = vpop.f32.mrf.mxu0
    %v294 = vadd.f32 0.0, %v293
    %v295 = vpop.f32.mrf.mxu0
    %v296 = vadd.f32 0.0, %v295
    %297 = vmatprep.mubr.f32.mxu0 0.0
    %298 = vmatmul.mubr.f32.gmra.mxu0 %v123
    %v299 = vpop.f32.mrf.mxu0
    %v300 = vadd.f32 0.0, %v299
    %v301 = vpop.f32.mrf.mxu0
    %v302 = vadd.f32 0.0, %v301
    %303 = vmatprep.mubr.f32.mxu0 0.0
    %304 = vmatmul.mubr.f32.gmra.mxu0 %v126
    %v305 = vpop.f32.mrf.mxu0
    %v306 = vadd.f32 0.0, %v305
    %v307 = vpop.f32.mrf.mxu0
    %v308 = vadd.f32 0.0, %v307
    %309 = vmatprep.mubr.f32.mxu0 0.0
    %310 = vmatmul.mubr.f32.gmra.mxu0 %v129
    %v311 = vpop.f32.mrf.mxu0
    %v312 = vadd.f32 0.0, %v311
    %v313 = vpop.f32.mrf.mxu0
    %v314 = vadd.f32 0.0, %v313
    %315 = vmatprep.mubr.f32.mxu0 0.0
    %316 = vmatmul.mubr.f32.gmra.mxu0 %v132
    %v317 = vpop.f32.mrf.mxu0
    %v318 = vadd.f32 0.0, %v317
    %v319 = vpop.f32.mrf.mxu0
    %v320 = vadd.f32 0.0, %v319
    %321 = vmatprep.mubr.f32.mxu0 0.0
    %322 = vmatmul.mubr.f32.gmra.mxu0 %v135
    %v323 = vpop.f32.mrf.mxu0
    %v324 = vadd.f32 0.0, %v323
    %v325 = vpop.f32.mrf.mxu0
    %v326 = vadd.f32 0.0, %v325
    %327 = vmatprep.mubr.f32.mxu0 0.0
    %328 = vmatmul.mubr.f32.gmra.mxu0 %v138
    %v329 = vpop.f32.mrf.mxu0
    %v330 = vadd.f32 0.0, %v329
    %v331 = vpop.f32.mrf.mxu0
    %v332 = vadd.f32 0.0, %v331
    %333 = vmatprep.mubr.f32.mxu0 0.0
    %334 = vmatmul.mubr.f32.gmra.mxu0 %v141
    %v335 = vpop.f32.mrf.mxu0
    %v336 = vadd.f32 0.0, %v335
    %v337 = vpop.f32.mrf.mxu0
    %v338 = vadd.f32 0.0, %v337
    %339 = vmatprep.mubr.f32.mxu0 0.0
    %340 = vmatmul.mubr.f32.gmra.mxu0 %v144
    %v341 = vpop.f32.mrf.mxu0
    %v342 = vadd.f32 0.0, %v341
    %v343 = vpop.f32.mrf.mxu0
    %v344 = vadd.f32 0.0, %v343
    %345 = vmatprep.mubr.f32.mxu0 0.0
    %346 = vmatmul.mubr.f32.gmra.mxu0 %v147
    %v347 = vpop.f32.mrf.mxu0
    %v348 = vadd.f32 0.0, %v347
    %v349 = vpop.f32.mrf.mxu0
    %v350 = vadd.f32 0.0, %v349
    %351 = vmatprep.mubr.f32.mxu0 0.0
    %352 = vmatmul.mubr.f32.gmra.mxu0 %v150
    %v353 = vpop.f32.mrf.mxu0
    %v354 = vadd.f32 0.0, %v353
    %v355 = vpop.f32.mrf.mxu0
    %v356 = vadd.f32 0.0, %v355
    %357 = vmatprep.mubr.f32.mxu0 0.0
    %358 = vmatmul.mubr.f32.gmra.mxu0 %v153
    %v359 = vpop.f32.mrf.mxu0
    %v360 = vadd.f32 0.0, %v359
    %v361 = vpop.f32.mrf.mxu0
    %v362 = vadd.f32 0.0, %v361
    %363 = vmatprep.mubr.f32.mxu0 0.0
    %364 = vmatmul.mubr.f32.gmra.mxu0 %v156
    %v365 = vpop.f32.mrf.mxu0
    %v366 = vadd.f32 0.0, %v365
    %v367 = vpop.f32.mrf.mxu0
    %v368 = vadd.f32 0.0, %v367
    %369 = vmatprep.mubr.f32.mxu0 0.0
    %370 = vmatmul.mubr.f32.gmra.mxu0 %v159
    %v371 = vpop.f32.mrf.mxu0
    %v372 = vadd.f32 0.0, %v371
    %v373 = vpop.f32.mrf.mxu0
    %v374 = vadd.f32 0.0, %v373
    %375 = vmatprep.mubr.f32.mxu0 0.0
    %376 = vmatmul.mubr.f32.gmra.mxu0 %v162
    %v377 = vpop.f32.mrf.mxu0
    %v378 = vadd.f32 0.0, %v377
    %v379 = vpop.f32.mrf.mxu0
    %v380 = vadd.f32 0.0, %v379
    %381 = vmatprep.mubr.f32.mxu0 0.0
    %382 = vmatmul.mubr.f32.gmra.mxu0 %v165
    %v383 = vpop.f32.mrf.mxu0
    %v384 = vadd.f32 0.0, %v383
    %v385 = vpop.f32.mrf.mxu0
    %v386 = vadd.f32 0.0, %v385
    %387 = vmatprep.mubr.f32.mxu0 0.0
    %388 = vmatmul.mubr.f32.gmra.mxu0 %v168
    %v389 = vpop.f32.mrf.mxu0
    %v390 = vadd.f32 0.0, %v389
    %v391 = vpop.f32.mrf.mxu0
    %v392 = vadd.f32 0.0, %v391
    %393 = vmatprep.mubr.f32.mxu0 0.0
    %394 = vmatmul.mubr.f32.gmra.mxu0 %v171
    %v395 = vpop.f32.mrf.mxu0
    %v396 = vadd.f32 0.0, %v395
    %v397 = vpop.f32.mrf.mxu0
    %v398 = vadd.f32 0.0, %v397
    %399 = vmatprep.mubr.f32.mxu0 0.0
    %400 = vmatmul.mubr.f32.gmra.mxu0 %v174
    %v401 = vpop.f32.mrf.mxu0
    %v402 = vadd.f32 0.0, %v401
    %v403 = vpop.f32.mrf.mxu0
    %v404 = vadd.f32 0.0, %v403
    %405 = vmatprep.mubr.f32.mxu0 0.0
    %406 = vmatmul.mubr.f32.gmra.mxu0 %v177
    %v407 = vpop.f32.mrf.mxu0
    %v408 = vadd.f32 0.0, %v407
    %v409 = vpop.f32.mrf.mxu0
    %v410 = vadd.f32 0.0, %v409
    %411 = vdwg.mxu0
    %v413 = vsel %vm94, %v45, 0
    %415 = vmatprep.subr.mxu0 0.0
    %416 = vmatpush1.msra.mxu0 0.0
    %417 = vmatprep.subr.mxu0 0.0
    %418 = vmatpush1.msra.mxu0 0.0
    %419 = vmatprep.subr.mxu0 0.0
    %420 = vmatpush1.msra.mxu0 0.0
    %421 = vmatprep.subr.mxu0 0.0
    %422 = vmatpush1.msra.mxu0 0.0
    %423 = vmatprep.subr.mxu0 0.0
    %424 = vmatpush1.msra.mxu0 0.0
    %425 = vmatprep.subr.mxu0 0.0
    %426 = vmatpush1.msra.mxu0 0.0
    %427 = vmatprep.subr.mxu0 0.0
    %428 = vmatpush1.msra.mxu0 0.0
    %429 = vmatprep.subr.mxu0 0.0
    %430 = vmatpush1.msra.mxu0 0.0
    %431 = vmatprep.subr.mxu0 0.0
    %432 = vmatpush1.msra.mxu0 0.0
    %433 = vmatprep.subr.mxu0 0.0
    %434 = vmatpush1.msra.mxu0 0.0
    %435 = vmatprep.subr.mxu0 0.0
    %436 = vmatpush1.msra.mxu0 0.0
    %437 = vmatprep.subr.mxu0 0.0
    %438 = vmatpush1.msra.mxu0 0.0
    %439 = vmatprep.subr.mxu0 %v84
    %440 = vmatpush1.msra.mxu0 %v83
    %441 = vmatprep.subr.mxu0 %v82
    %442 = vmatpush1.msra.mxu0 %v81
    %443 = vmatprep.subr.mxu0 %v80
    %444 = vmatpush1.msra.mxu0 %v79
    %445 = vmatprep.subr.mxu0 %v78
    %446 = vmatpush1.msra.mxu0 %v77
    %447 = vmatprep.subr.mxu0 0.0
    %448 = vmatpush2.msra.mxu0 0.0
    %449 = vmatprep.subr.mxu0 0.0
    %450 = vmatpush2.msra.mxu0 0.0
    %451 = vmatprep.subr.mxu0 0.0
    %452 = vmatpush2.msra.mxu0 0.0
    %453 = vmatprep.subr.mxu0 0.0
    %454 = vmatpush2.msra.mxu0 0.0
    %455 = vmatprep.subr.mxu0 0.0
    %456 = vmatpush2.msra.mxu0 0.0
    %457 = vmatprep.subr.mxu0 0.0
    %458 = vmatpush2.msra.mxu0 0.0
    %459 = vmatprep.subr.mxu0 0.0
    %460 = vmatpush2.msra.mxu0 0.0
    %461 = vmatprep.subr.mxu0 0.0
    %462 = vmatpush2.msra.mxu0 0.0
    %463 = vmatprep.subr.mxu0 0.0
    %464 = vmatpush2.msra.mxu0 0.0
    %465 = vmatprep.subr.mxu0 0.0
    %466 = vmatpush2.msra.mxu0 0.0
    %467 = vmatprep.subr.mxu0 0.0
    %468 = vmatpush2.msra.mxu0 0.0
    %469 = vmatprep.subr.mxu0 0.0
    %470 = vmatpush2.msra.mxu0 0.0
    %471 = vmatprep.subr.mxu0 0.0
    %472 = vmatpush2.msra.mxu0 0.0
    %473 = vmatprep.subr.mxu0 0.0
    %474 = vmatpush2.msra.mxu0 0.0
    %475 = vmatprep.subr.mxu0 0.0
    %476 = vmatpush2.msra.mxu0 0.0
    %477 = vmatprep.subr.mxu0 0.0
    %478 = vmatpush2.msra.mxu0 0.0
    %479 = vmatprep.mubr.f32.mxu0 0.0
    %480 = vmatmul.mubr.f32.gmra.mxu0 %v413
    %v481 = vpop.f32.mrf.mxu0
    %v482 = vadd.f32 %v246, %v481
    %v483 = vpop.f32.mrf.mxu0
    %v484 = vadd.f32 %v248, %v483
    %485 = vmatprep.mubr.f32.mxu0 0.0
    %486 = vmatmul.mubr.f32.gmra.mxu0 %v96
    %v487 = vpop.f32.mrf.mxu0
    %v488 = vadd.f32 %v252, %v487
    %v489 = vpop.f32.mrf.mxu0
    %v490 = vadd.f32 %v254, %v489
    %491 = vmatprep.mubr.f32.mxu0 0.0
    %492 = vmatmul.mubr.f32.gmra.mxu0 %v99
    %v493 = vpop.f32.mrf.mxu0
    %v494 = vadd.f32 %v258, %v493
    %v495 = vpop.f32.mrf.mxu0
    %v496 = vadd.f32 %v260, %v495
    %497 = vmatprep.mubr.f32.mxu0 0.0
    %498 = vmatmul.mubr.f32.gmra.mxu0 %v102
    %v499 = vpop.f32.mrf.mxu0
    %v500 = vadd.f32 %v264, %v499
    %v501 = vpop.f32.mrf.mxu0
    %v502 = vadd.f32 %v266, %v501
    %503 = vmatprep.mubr.f32.mxu0 0.0
    %504 = vmatmul.mubr.f32.gmra.mxu0 %v105
    %v505 = vpop.f32.mrf.mxu0
    %v506 = vadd.f32 %v270, %v505
    %v507 = vpop.f32.mrf.mxu0
    %v508 = vadd.f32 %v272, %v507
    %509 = vmatprep.mubr.f32.mxu0 0.0
    %510 = vmatmul.mubr.f32.gmra.mxu0 %v108
    %v511 = vpop.f32.mrf.mxu0
    %v512 = vadd.f32 %v276, %v511
    %v513 = vpop.f32.mrf.mxu0
    %v514 = vadd.f32 %v278, %v513
    %515 = vmatprep.mubr.f32.mxu0 0.0
    %516 = vmatmul.mubr.f32.gmra.mxu0 %v111
    %v517 = vpop.f32.mrf.mxu0
    %v518 = vadd.f32 %v282, %v517
    %v519 = vpop.f32.mrf.mxu0
    %v520 = vadd.f32 %v284, %v519
    %521 = vmatprep.mubr.f32.mxu0 0.0
    %522 = vmatmul.mubr.f32.gmra.mxu0 %v114
    %v523 = vpop.f32.mrf.mxu0
    %v524 = vadd.f32 %v288, %v523
    %v525 = vpop.f32.mrf.mxu0
    %v526 = vadd.f32 %v290, %v525
    %527 = vmatprep.mubr.f32.mxu0 0.0
    %528 = vmatmul.mubr.f32.gmra.mxu0 %v117
    %v529 = vpop.f32.mrf.mxu0
    %v530 = vadd.f32 %v294, %v529
    %v531 = vpop.f32.mrf.mxu0
    %v532 = vadd.f32 %v296, %v531
    %533 = vmatprep.mubr.f32.mxu0 0.0
    %534 = vmatmul.mubr.f32.gmra.mxu0 %v120
    %v535 = vpop.f32.mrf.mxu0
    %v536 = vadd.f32 %v300, %v535
    %v537 = vpop.f32.mrf.mxu0
    %v538 = vadd.f32 %v302, %v537
    %539 = vmatprep.mubr.f32.mxu0 0.0
    %540 = vmatmul.mubr.f32.gmra.mxu0 %v123
    %v541 = vpop.f32.mrf.mxu0
    %v542 = vadd.f32 %v306, %v541
    %v543 = vpop.f32.mrf.mxu0
    %v544 = vadd.f32 %v308, %v543
    %545 = vmatprep.mubr.f32.mxu0 0.0
    %546 = vmatmul.mubr.f32.gmra.mxu0 %v126
    %v547 = vpop.f32.mrf.mxu0
    %v548 = vadd.f32 %v312, %v547
    %v549 = vpop.f32.mrf.mxu0
    %v550 = vadd.f32 %v314, %v549
    %551 = vmatprep.mubr.f32.mxu0 0.0
    %552 = vmatmul.mubr.f32.gmra.mxu0 %v129
    %v553 = vpop.f32.mrf.mxu0
    %v554 = vadd.f32 %v318, %v553
    %v555 = vpop.f32.mrf.mxu0
    %v556 = vadd.f32 %v320, %v555
    %557 = vmatprep.mubr.f32.mxu0 0.0
    %558 = vmatmul.mubr.f32.gmra.mxu0 %v132
    %v559 = vpop.f32.mrf.mxu0
    %v560 = vadd.f32 %v324, %v559
    %v561 = vpop.f32.mrf.mxu0
    %v562 = vadd.f32 %v326, %v561
    %563 = vmatprep.mubr.f32.mxu0 0.0
    %564 = vmatmul.mubr.f32.gmra.mxu0 %v135
    %v565 = vpop.f32.mrf.mxu0
    %v566 = vadd.f32 %v330, %v565
    %v567 = vpop.f32.mrf.mxu0
    %v568 = vadd.f32 %v332, %v567
    %569 = vmatprep.mubr.f32.mxu0 0.0
    %570 = vmatmul.mubr.f32.gmra.mxu0 %v138
    %v571 = vpop.f32.mrf.mxu0
    %v572 = vadd.f32 %v336, %v571
    %v573 = vpop.f32.mrf.mxu0
    %v574 = vadd.f32 %v338, %v573
    %575 = vmatprep.mubr.f32.mxu0 0.0
    %576 = vmatmul.mubr.f32.gmra.mxu0 %v141
    %v577 = vpop.f32.mrf.mxu0
    %v578 = vadd.f32 %v342, %v577
    %v579 = vpop.f32.mrf.mxu0
    %v580 = vadd.f32 %v344, %v579
    %581 = vmatprep.mubr.f32.mxu0 0.0
    %582 = vmatmul.mubr.f32.gmra.mxu0 %v144
    %v583 = vpop.f32.mrf.mxu0
    %v584 = vadd.f32 %v348, %v583
    %v585 = vpop.f32.mrf.mxu0
    %v586 = vadd.f32 %v350, %v585
    %587 = vmatprep.mubr.f32.mxu0 0.0
    %588 = vmatmul.mubr.f32.gmra.mxu0 %v147
    %v589 = vpop.f32.mrf.mxu0
    %v590 = vadd.f32 %v354, %v589
    %v591 = vpop.f32.mrf.mxu0
    %v592 = vadd.f32 %v356, %v591
    %593 = vmatprep.mubr.f32.mxu0 0.0
    %594 = vmatmul.mubr.f32.gmra.mxu0 %v150
    %v595 = vpop.f32.mrf.mxu0
    %v596 = vadd.f32 %v360, %v595
    %v597 = vpop.f32.mrf.mxu0
    %v598 = vadd.f32 %v362, %v597
    %599 = vmatprep.mubr.f32.mxu0 0.0
    %600 = vmatmul.mubr.f32.gmra.mxu0 %v153
    %v601 = vpop.f32.mrf.mxu0
    %v602 = vadd.f32 %v366, %v601
    %v603 = vpop.f32.mrf.mxu0
    %v604 = vadd.f32 %v368, %v603
    %605 = vmatprep.mubr.f32.mxu0 0.0
    %606 = vmatmul.mubr.f32.gmra.mxu0 %v156
    %v607 = vpop.f32.mrf.mxu0
    %v608 = vadd.f32 %v372, %v607
    %v609 = vpop.f32.mrf.mxu0
    %v610 = vadd.f32 %v374, %v609
    %611 = vmatprep.mubr.f32.mxu0 0.0
    %612 = vmatmul.mubr.f32.gmra.mxu0 %v159
    %v613 = vpop.f32.mrf.mxu0
    %v614 = vadd.f32 %v378, %v613
    %v615 = vpop.f32.mrf.mxu0
    %v616 = vadd.f32 %v380, %v615
    %617 = vmatprep.mubr.f32.mxu0 0.0
    %618 = vmatmul.mubr.f32.gmra.mxu0 %v162
    %v619 = vpop.f32.mrf.mxu0
    %v620 = vadd.f32 %v384, %v619
    %v621 = vpop.f32.mrf.mxu0
    %v622 = vadd.f32 %v386, %v621
    %623 = vmatprep.mubr.f32.mxu0 0.0
    %624 = vmatmul.mubr.f32.gmra.mxu0 %v165
    %v625 = vpop.f32.mrf.mxu0
    %v626 = vadd.f32 %v390, %v625
    %v627 = vpop.f32.mrf.mxu0
    %v628 = vadd.f32 %v392, %v627
    %629 = vmatprep.mubr.f32.mxu0 0.0
    %630 = vmatmul.mubr.f32.gmra.mxu0 %v168
    %v631 = vpop.f32.mrf.mxu0
    %v632 = vadd.f32 %v396, %v631
    %v633 = vpop.f32.mrf.mxu0
    %v634 = vadd.f32 %v398, %v633
    %635 = vmatprep.mubr.f32.mxu0 0.0
    %636 = vmatmul.mubr.f32.gmra.mxu0 %v171
    %v637 = vpop.f32.mrf.mxu0
    %v638 = vadd.f32 %v402, %v637
    %v639 = vpop.f32.mrf.mxu0
    %v640 = vadd.f32 %v404, %v639
    %641 = vmatprep.mubr.f32.mxu0 0.0
    %642 = vmatmul.mubr.f32.gmra.mxu0 %v174
    %v643 = vpop.f32.mrf.mxu0
    %v644 = vadd.f32 %v408, %v643
    %v645 = vpop.f32.mrf.mxu0
    %v646 = vadd.f32 %v410, %v645
    %647 = vdwg.mxu0
    %s648 = scalar_lea.vmem %s1, 128
    %v649 = vld [vmem:[%s648] sm:$0xff]
    %v650 = vld [vmem:[%s648 + $0x8] sm:$0xff]
    %v651 = vld [vmem:[%s648 + $0x10] sm:$0xff]
    %v652 = vld [vmem:[%s648 + $0x18] sm:$0xff]
    %v653 = vld [vmem:[%s648 + $0x20] sm:$0xff]
    %v654 = vld [vmem:[%s648 + $0x28] sm:$0xff]
    %v655 = vld [vmem:[%s648 + $0x30] sm:$0xff]
    %v656 = vld [vmem:[%s648 + $0x38] sm:$0xff]
    %v658 = vsel %vm94, %v74, 0
    %660 = vmatprep.subr.mxu0 0.0
    %661 = vmatpush1.msra.mxu0 0.0
    %662 = vmatprep.subr.mxu0 0.0
    %663 = vmatpush1.msra.mxu0 0.0
    %664 = vmatprep.subr.mxu0 0.0
    %665 = vmatpush1.msra.mxu0 0.0
    %666 = vmatprep.subr.mxu0 0.0
    %667 = vmatpush1.msra.mxu0 0.0
    %668 = vmatprep.subr.mxu0 0.0
    %669 = vmatpush1.msra.mxu0 0.0
    %670 = vmatprep.subr.mxu0 0.0
    %671 = vmatpush1.msra.mxu0 0.0
    %672 = vmatprep.subr.mxu0 0.0
    %673 = vmatpush1.msra.mxu0 0.0
    %674 = vmatprep.subr.mxu0 0.0
    %675 = vmatpush1.msra.mxu0 0.0
    %676 = vmatprep.subr.mxu0 0.0
    %677 = vmatpush1.msra.mxu0 0.0
    %678 = vmatprep.subr.mxu0 0.0
    %679 = vmatpush1.msra.mxu0 0.0
    %680 = vmatprep.subr.mxu0 0.0
    %681 = vmatpush1.msra.mxu0 0.0
    %682 = vmatprep.subr.mxu0 0.0
    %683 = vmatpush1.msra.mxu0 0.0
    %684 = vmatprep.subr.mxu0 %v656
    %685 = vmatpush1.msra.mxu0 %v655
    %686 = vmatprep.subr.mxu0 %v654
    %687 = vmatpush1.msra.mxu0 %v653
    %688 = vmatprep.subr.mxu0 %v652
    %689 = vmatpush1.msra.mxu0 %v651
    %690 = vmatprep.subr.mxu0 %v650
    %691 = vmatpush1.msra.mxu0 %v649
    %692 = vmatprep.subr.mxu0 0.0
    %693 = vmatpush2.msra.mxu0 0.0
    %694 = vmatprep.subr.mxu0 0.0
    %695 = vmatpush2.msra.mxu0 0.0
    %696 = vmatprep.subr.mxu0 0.0
    %697 = vmatpush2.msra.mxu0 0.0
    %698 = vmatprep.subr.mxu0 0.0
    %699 = vmatpush2.msra.mxu0 0.0
    %700 = vmatprep.subr.mxu0 0.0
    %701 = vmatpush2.msra.mxu0 0.0
    %702 = vmatprep.subr.mxu0 0.0
    %703 = vmatpush2.msra.mxu0 0.0
    %704 = vmatprep.subr.mxu0 0.0
    %705 = vmatpush2.msra.mxu0 0.0
    %706 = vmatprep.subr.mxu0 0.0
    %707 = vmatpush2.msra.mxu0 0.0
    %708 = vmatprep.subr.mxu0 0.0
    %709 = vmatpush2.msra.mxu0 0.0
    %710 = vmatprep.subr.mxu0 0.0
    %711 = vmatpush2.msra.mxu0 0.0
    %712 = vmatprep.subr.mxu0 0.0
    %713 = vmatpush2.msra.mxu0 0.0
    %714 = vmatprep.subr.mxu0 0.0
    %715 = vmatpush2.msra.mxu0 0.0
    %716 = vmatprep.subr.mxu0 0.0
    %717 = vmatpush2.msra.mxu0 0.0
    %718 = vmatprep.subr.mxu0 0.0
    %719 = vmatpush2.msra.mxu0 0.0
    %720 = vmatprep.subr.mxu0 0.0
    %721 = vmatpush2.msra.mxu0 0.0
    %722 = vmatprep.subr.mxu0 0.0
    %723 = vmatpush2.msra.mxu0 0.0
    %724 = vmatprep.mubr.f32.mxu0 0.0
    %725 = vmatmul.mubr.f32.gmra.mxu0 %v99
    %v726 = vpop.f32.mrf.mxu0
    %v727 = vadd.f32 0.0, %v726
    %v728 = vpop.f32.mrf.mxu0
    %v729 = vadd.f32 0.0, %v728
    %730 = vmatprep.mubr.f32.mxu0 0.0
    %731 = vmatmul.mubr.f32.gmra.mxu0 %v102
    %v732 = vpop.f32.mrf.mxu0
    %v733 = vadd.f32 0.0, %v732
    %v734 = vpop.f32.mrf.mxu0
    %v735 = vadd.f32 0.0, %v734
    %736 = vmatprep.mubr.f32.mxu0 0.0
    %737 = vmatmul.mubr.f32.gmra.mxu0 %v105
    %v738 = vpop.f32.mrf.mxu0
    %v739 = vadd.f32 0.0, %v738
    %v740 = vpop.f32.mrf.mxu0
    %v741 = vadd.f32 0.0, %v740
    %742 = vmatprep.mubr.f32.mxu0 0.0
    %743 = vmatmul.mubr.f32.gmra.mxu0 %v108
    %v744 = vpop.f32.mrf.mxu0
    %v745 = vadd.f32 0.0, %v744
    %v746 = vpop.f32.mrf.mxu0
    %v747 = vadd.f32 0.0, %v746
    %748 = vmatprep.mubr.f32.mxu0 0.0
    %749 = vmatmul.mubr.f32.gmra.mxu0 %v111
    %v750 = vpop.f32.mrf.mxu0
    %v751 = vadd.f32 0.0, %v750
    %v752 = vpop.f32.mrf.mxu0
    %v753 = vadd.f32 0.0, %v752
    %754 = vmatprep.mubr.f32.mxu0 0.0
    %755 = vmatmul.mubr.f32.gmra.mxu0 %v114
    %v756 = vpop.f32.mrf.mxu0
    %v757 = vadd.f32 0.0, %v756
    %v758 = vpop.f32.mrf.mxu0
    %v759 = vadd.f32 0.0, %v758
    %760 = vmatprep.mubr.f32.mxu0 0.0
    %761 = vmatmul.mubr.f32.gmra.mxu0 %v117
    %v762 = vpop.f32.mrf.mxu0
    %v763 = vadd.f32 0.0, %v762
    %v764 = vpop.f32.mrf.mxu0
    %v765 = vadd.f32 0.0, %v764
    %766 = vmatprep.mubr.f32.mxu0 0.0
    %767 = vmatmul.mubr.f32.gmra.mxu0 %v120
    %v768 = vpop.f32.mrf.mxu0
    %v769 = vadd.f32 0.0, %v768
    %v770 = vpop.f32.mrf.mxu0
    %v771 = vadd.f32 0.0, %v770
    %772 = vmatprep.mubr.f32.mxu0 0.0
    %773 = vmatmul.mubr.f32.gmra.mxu0 %v123
    %v774 = vpop.f32.mrf.mxu0
    %v775 = vadd.f32 0.0, %v774
    %v776 = vpop.f32.mrf.mxu0
    %v777 = vadd.f32 0.0, %v776
    %778 = vmatprep.mubr.f32.mxu0 0.0
    %779 = vmatmul.mubr.f32.gmra.mxu0 %v126
    %v780 = vpop.f32.mrf.mxu0
    %v781 = vadd.f32 0.0, %v780
    %v782 = vpop.f32.mrf.mxu0
    %v783 = vadd.f32 0.0, %v782
    %784 = vmatprep.mubr.f32.mxu0 0.0
    %785 = vmatmul.mubr.f32.gmra.mxu0 %v129
    %v786 = vpop.f32.mrf.mxu0
    %v787 = vadd.f32 0.0, %v786
    %v788 = vpop.f32.mrf.mxu0
    %v789 = vadd.f32 0.0, %v788
    %790 = vmatprep.mubr.f32.mxu0 0.0
    %791 = vmatmul.mubr.f32.gmra.mxu0 %v132
    %v792 = vpop.f32.mrf.mxu0
    %v793 = vadd.f32 0.0, %v792
    %v794 = vpop.f32.mrf.mxu0
    %v795 = vadd.f32 0.0, %v794
    %796 = vmatprep.mubr.f32.mxu0 0.0
    %797 = vmatmul.mubr.f32.gmra.mxu0 %v135
    %v798 = vpop.f32.mrf.mxu0
    %v799 = vadd.f32 0.0, %v798
    %v800 = vpop.f32.mrf.mxu0
    %v801 = vadd.f32 0.0, %v800
    %802 = vmatprep.mubr.f32.mxu0 0.0
    %803 = vmatmul.mubr.f32.gmra.mxu0 %v138
    %v804 = vpop.f32.mrf.mxu0
    %v805 = vadd.f32 0.0, %v804
    %v806 = vpop.f32.mrf.mxu0
    %v807 = vadd.f32 0.0, %v806
    %808 = vmatprep.mubr.f32.mxu0 0.0
    %809 = vmatmul.mubr.f32.gmra.mxu0 %v141
    %v810 = vpop.f32.mrf.mxu0
    %v811 = vadd.f32 0.0, %v810
    %v812 = vpop.f32.mrf.mxu0
    %v813 = vadd.f32 0.0, %v812
    %814 = vmatprep.mubr.f32.mxu0 0.0
    %815 = vmatmul.mubr.f32.gmra.mxu0 %v144
    %v816 = vpop.f32.mrf.mxu0
    %v817 = vadd.f32 0.0, %v816
    %v818 = vpop.f32.mrf.mxu0
    %v819 = vadd.f32 0.0, %v818
    %820 = vmatprep.mubr.f32.mxu0 0.0
    %821 = vmatmul.mubr.f32.gmra.mxu0 %v147
    %v822 = vpop.f32.mrf.mxu0
    %v823 = vadd.f32 0.0, %v822
    %v824 = vpop.f32.mrf.mxu0
    %v825 = vadd.f32 0.0, %v824
    %826 = vmatprep.mubr.f32.mxu0 0.0
    %827 = vmatmul.mubr.f32.gmra.mxu0 %v150
    %v828 = vpop.f32.mrf.mxu0
    %v829 = vadd.f32 0.0, %v828
    %v830 = vpop.f32.mrf.mxu0
    %v831 = vadd.f32 0.0, %v830
    %832 = vmatprep.mubr.f32.mxu0 0.0
    %833 = vmatmul.mubr.f32.gmra.mxu0 %v153
    %v834 = vpop.f32.mrf.mxu0
    %v835 = vadd.f32 0.0, %v834
    %v836 = vpop.f32.mrf.mxu0
    %v837 = vadd.f32 0.0, %v836
    %838 = vmatprep.mubr.f32.mxu0 0.0
    %839 = vmatmul.mubr.f32.gmra.mxu0 %v156
    %v840 = vpop.f32.mrf.mxu0
    %v841 = vadd.f32 0.0, %v840
    %v842 = vpop.f32.mrf.mxu0
    %v843 = vadd.f32 0.0, %v842
    %844 = vmatprep.mubr.f32.mxu0 0.0
    %845 = vmatmul.mubr.f32.gmra.mxu0 %v159
    %v846 = vpop.f32.mrf.mxu0
    %v847 = vadd.f32 0.0, %v846
    %v848 = vpop.f32.mrf.mxu0
    %v849 = vadd.f32 0.0, %v848
    %850 = vmatprep.mubr.f32.mxu0 0.0
    %851 = vmatmul.mubr.f32.gmra.mxu0 %v162
    %v852 = vpop.f32.mrf.mxu0
    %v853 = vadd.f32 0.0, %v852
    %v854 = vpop.f32.mrf.mxu0
    %v855 = vadd.f32 0.0, %v854
    %856 = vmatprep.mubr.f32.mxu0 0.0
    %857 = vmatmul.mubr.f32.gmra.mxu0 %v165
    %v858 = vpop.f32.mrf.mxu0
    %v859 = vadd.f32 0.0, %v858
    %v860 = vpop.f32.mrf.mxu0
    %v861 = vadd.f32 0.0, %v860
    %862 = vmatprep.mubr.f32.mxu0 0.0
    %863 = vmatmul.mubr.f32.gmra.mxu0 %v168
    %v864 = vpop.f32.mrf.mxu0
    %v865 = vadd.f32 0.0, %v864
    %v866 = vpop.f32.mrf.mxu0
    %v867 = vadd.f32 0.0, %v866
    %868 = vmatprep.mubr.f32.mxu0 0.0
    %869 = vmatmul.mubr.f32.gmra.mxu0 %v171
    %v870 = vpop.f32.mrf.mxu0
    %v871 = vadd.f32 0.0, %v870
    %v872 = vpop.f32.mrf.mxu0
    %v873 = vadd.f32 0.0, %v872
    %874 = vmatprep.mubr.f32.mxu0 0.0
    %875 = vmatmul.mubr.f32.gmra.mxu0 %v174
    %v876 = vpop.f32.mrf.mxu0
    %v877 = vadd.f32 0.0, %v876
    %v878 = vpop.f32.mrf.mxu0
    %v879 = vadd.f32 0.0, %v878
    %880 = vmatprep.mubr.f32.mxu0 0.0
    %881 = vmatmul.mubr.f32.gmra.mxu0 %v177
    %v882 = vpop.f32.mrf.mxu0
    %v883 = vadd.f32 0.0, %v882
    %v884 = vpop.f32.mrf.mxu0
    %v885 = vadd.f32 0.0, %v884
    %886 = vmatprep.mubr.f32.mxu0 0.0
    %887 = vmatmul.mubr.f32.gmra.mxu0 %v658
    %v888 = vpop.f32.mrf.mxu0
    %v889 = vadd.f32 0.0, %v888
    %v890 = vpop.f32.mrf.mxu0
    %v891 = vadd.f32 0.0, %v890
    %892 = vdwg.mxu0
    %v893 = vadd.f32 %v482, %v727
    %v894 = vadd.f32 %v484, %v729
    %v895 = vadd.f32 %v488, %v733
    %v896 = vadd.f32 %v490, %v735
    %v897 = vadd.f32 %v494, %v739
    %v898 = vadd.f32 %v496, %v741
    %v899 = vadd.f32 %v500, %v745
    %v900 = vadd.f32 %v502, %v747
    %v901 = vadd.f32 %v506, %v751
    %v902 = vadd.f32 %v508, %v753
    %v903 = vadd.f32 %v512, %v757
    %v904 = vadd.f32 %v514, %v759
    %v905 = vadd.f32 %v518, %v763
    %v906 = vadd.f32 %v520, %v765
    %v907 = vadd.f32 %v524, %v769
    %v908 = vadd.f32 %v526, %v771
    %v909 = vadd.f32 %v530, %v775
    %v910 = vadd.f32 %v532, %v777
    %v911 = vadd.f32 %v536, %v781
    %v912 = vadd.f32 %v538, %v783
    %v913 = vadd.f32 %v542, %v787
    %v914 = vadd.f32 %v544, %v789
    %v915 = vadd.f32 %v548, %v793
    %v916 = vadd.f32 %v550, %v795
    %v917 = vadd.f32 %v554, %v799
    %v918 = vadd.f32 %v556, %v801
    %v919 = vadd.f32 %v560, %v805
    %v920 = vadd.f32 %v562, %v807
    %v921 = vadd.f32 %v566, %v811
    %v922 = vadd.f32 %v568, %v813
    %v923 = vadd.f32 %v572, %v817
    %v924 = vadd.f32 %v574, %v819
    %v925 = vadd.f32 %v578, %v823
    %v926 = vadd.f32 %v580, %v825
    %v927 = vadd.f32 %v584, %v829
    %v928 = vadd.f32 %v586, %v831
    %v929 = vadd.f32 %v590, %v835
    %v930 = vadd.f32 %v592, %v837
    %v931 = vadd.f32 %v596, %v841
    %v932 = vadd.f32 %v598, %v843
    %v933 = vadd.f32 %v602, %v847
    %v934 = vadd.f32 %v604, %v849
    %v935 = vadd.f32 %v608, %v853
    %v936 = vadd.f32 %v610, %v855
    %v937 = vadd.f32 %v614, %v859
    %v938 = vadd.f32 %v616, %v861
    %v939 = vadd.f32 %v620, %v865
    %v940 = vadd.f32 %v622, %v867
    %v941 = vadd.f32 %v626, %v871
    %v942 = vadd.f32 %v628, %v873
    %v943 = vadd.f32 %v632, %v877
    %v944 = vadd.f32 %v634, %v879
    %v945 = vadd.f32 %v638, %v883
    %v946 = vadd.f32 %v640, %v885
    %v947 = vadd.f32 %v644, %v889
    %v948 = vadd.f32 %v646, %v891
    %s949 = scalar_lea.vmem %s1, 192
    %v950 = vld [vmem:[%s949] sm:$0xff]
    %v951 = vld [vmem:[%s949 + $0x8] sm:$0xff]
    %v952 = vld [vmem:[%s949 + $0x10] sm:$0xff]
    %v953 = vld [vmem:[%s949 + $0x18] sm:$0xff]
    %v954 = vld [vmem:[%s949 + $0x20] sm:$0xff]
    %v955 = vld [vmem:[%s949 + $0x28] sm:$0xff]
    %v956 = vld [vmem:[%s949 + $0x30] sm:$0xff]
    %v957 = vld [vmem:[%s949 + $0x38] sm:$0xff]
    %v959 = vsel %vm94, %v75, 0
    %961 = vmatprep.subr.mxu0 0.0
    %962 = vmatpush1.msra.mxu0 0.0
    %963 = vmatprep.subr.mxu0 0.0
    %964 = vmatpush1.msra.mxu0 0.0
    %965 = vmatprep.subr.mxu0 0.0
    %966 = vmatpush1.msra.mxu0 0.0
    %967 = vmatprep.subr.mxu0 0.0
    %968 = vmatpush1.msra.mxu0 0.0
    %969 = vmatprep.subr.mxu0 0.0
    %970 = vmatpush1.msra.mxu0 0.0
    %971 = vmatprep.subr.mxu0 0.0
    %972 = vmatpush1.msra.mxu0 0.0
    %973 = vmatprep.subr.mxu0 0.0
    %974 = vmatpush1.msra.mxu0 0.0
    %975 = vmatprep.subr.mxu0 0.0
    %976 = vmatpush1.msra.mxu0 0.0
    %977 = vmatprep.subr.mxu0 0.0
    %978 = vmatpush1.msra.mxu0 0.0
    %979 = vmatprep.subr.mxu0 0.0
    %980 = vmatpush1.msra.mxu0 0.0
    %981 = vmatprep.subr.mxu0 0.0
    %982 = vmatpush1.msra.mxu0 0.0
    %983 = vmatprep.subr.mxu0 0.0
    %984 = vmatpush1.msra.mxu0 0.0
    %985 = vmatprep.subr.mxu0 %v957
    %986 = vmatpush1.msra.mxu0 %v956
    %987 = vmatprep.subr.mxu0 %v955
    %988 = vmatpush1.msra.mxu0 %v954
    %989 = vmatprep.subr.mxu0 %v953
    %990 = vmatpush1.msra.mxu0 %v952
    %991 = vmatprep.subr.mxu0 %v951
    %992 = vmatpush1.msra.mxu0 %v950
    %993 = vmatprep.subr.mxu0 0.0
    %994 = vmatpush2.msra.mxu0 0.0
    %995 = vmatprep.subr.mxu0 0.0
    %996 = vmatpush2.msra.mxu0 0.0
    %997 = vmatprep.subr.mxu0 0.0
    %998 = vmatpush2.msra.mxu0 0.0
    %999 = vmatprep.subr.mxu0 0.0
    %1000 = vmatpush2.msra.mxu0 0.0
    %1001 = vmatprep.subr.mxu0 0.0
    %1002 = vmatpush2.msra.mxu0 0.0
    %1003 = vmatprep.subr.mxu0 0.0
    %1004 = vmatpush2.msra.mxu0 0.0
    %1005 = vmatprep.subr.mxu0 0.0
    %1006 = vmatpush2.msra.mxu0 0.0
    %1007 = vmatprep.subr.mxu0 0.0
    %1008 = vmatpush2.msra.mxu0 0.0
    %1009 = vmatprep.subr.mxu0 0.0
    %1010 = vmatpush2.msra.mxu0 0.0
    %1011 = vmatprep.subr.mxu0 0.0
    %1012 = vmatpush2.msra.mxu0 0.0
    %1013 = vmatprep.subr.mxu0 0.0
    %1014 = vmatpush2.msra.mxu0 0.0
    %1015 = vmatprep.subr.mxu0 0.0
    %1016 = vmatpush2.msra.mxu0 0.0
    %1017 = vmatprep.subr.mxu0 0.0
    %1018 = vmatpush2.msra.mxu0 0.0
    %1019 = vmatprep.subr.mxu0 0.0
    %1020 = vmatpush2.msra.mxu0 0.0
    %1021 = vmatprep.subr.mxu0 0.0
    %1022 = vmatpush2.msra.mxu0 0.0
    %1023 = vmatprep.subr.mxu0 0.0
    %1024 = vmatpush2.msra.mxu0 0.0
    %1025 = vmatprep.mubr.f32.mxu0 0.0
    %1026 = vmatmul.mubr.f32.gmra.mxu0 %v102
    %v1027 = vpop.f32.mrf.mxu0
    %v1028 = vadd.f32 0.0, %v1027
    %v1029 = vpop.f32.mrf.mxu0
    %v1030 = vadd.f32 0.0, %v1029
    %1031 = vmatprep.mubr.f32.mxu0 0.0
    %1032 = vmatmul.mubr.f32.gmra.mxu0 %v105
    %v1033 = vpop.f32.mrf.mxu0
    %v1034 = vadd.f32 0.0, %v1033
    %v1035 = vpop.f32.mrf.mxu0
    %v1036 = vadd.f32 0.0, %v1035
    %1037 = vmatprep.mubr.f32.mxu0 0.0
    %1038 = vmatmul.mubr.f32.gmra.mxu0 %v108
    %v1039 = vpop.f32.mrf.mxu0
    %v1040 = vadd.f32 0.0, %v1039
    %v1041 = vpop.f32.mrf.mxu0
    %v1042 = vadd.f32 0.0, %v1041
    %1043 = vmatprep.mubr.f32.mxu0 0.0
    %1044 = vmatmul.mubr.f32.gmra.mxu0 %v111
    %v1045 = vpop.f32.mrf.mxu0
    %v1046 = vadd.f32 0.0, %v1045
    %v1047 = vpop.f32.mrf.mxu0
    %v1048 = vadd.f32 0.0, %v1047
    %1049 = vmatprep.mubr.f32.mxu0 0.0
    %1050 = vmatmul.mubr.f32.gmra.mxu0 %v114
    %v1051 = vpop.f32.mrf.mxu0
    %v1052 = vadd.f32 0.0, %v1051
    %v1053 = vpop.f32.mrf.mxu0
    %v1054 = vadd.f32 0.0, %v1053
    %1055 = vmatprep.mubr.f32.mxu0 0.0
    %1056 = vmatmul.mubr.f32.gmra.mxu0 %v117
    %v1057 = vpop.f32.mrf.mxu0
    %v1058 = vadd.f32 0.0, %v1057
    %v1059 = vpop.f32.mrf.mxu0
    %v1060 = vadd.f32 0.0, %v1059
    %1061 = vmatprep.mubr.f32.mxu0 0.0
    %1062 = vmatmul.mubr.f32.gmra.mxu0 %v120
    %v1063 = vpop.f32.mrf.mxu0
    %v1064 = vadd.f32 0.0, %v1063
    %v1065 = vpop.f32.mrf.mxu0
    %v1066 = vadd.f32 0.0, %v1065
    %1067 = vmatprep.mubr.f32.mxu0 0.0
    %1068 = vmatmul.mubr.f32.gmra.mxu0 %v123
    %v1069 = vpop.f32.mrf.mxu0
    %v1070 = vadd.f32 0.0, %v1069
    %v1071 = vpop.f32.mrf.mxu0
    %v1072 = vadd.f32 0.0, %v1071
    %1073 = vmatprep.mubr.f32.mxu0 0.0
    %1074 = vmatmul.mubr.f32.gmra.mxu0 %v126
    %v1075 = vpop.f32.mrf.mxu0
    %v1076 = vadd.f32 0.0, %v1075
    %v1077 = vpop.f32.mrf.mxu0
    %v1078 = vadd.f32 0.0, %v1077
    %1079 = vmatprep.mubr.f32.mxu0 0.0
    %1080 = vmatmul.mubr.f32.gmra.mxu0 %v129
    %v1081 = vpop.f32.mrf.mxu0
    %v1082 = vadd.f32 0.0, %v1081
    %v1083 = vpop.f32.mrf.mxu0
    %v1084 = vadd.f32 0.0, %v1083
    %1085 = vmatprep.mubr.f32.mxu0 0.0
    %1086 = vmatmul.mubr.f32.gmra.mxu0 %v132
    %v1087 = vpop.f32.mrf.mxu0
    %v1088 = vadd.f32 0.0, %v1087
    %v1089 = vpop.f32.mrf.mxu0
    %v1090 = vadd.f32 0.0, %v1089
    %1091 = vmatprep.mubr.f32.mxu0 0.0
    %1092 = vmatmul.mubr.f32.gmra.mxu0 %v135
    %v1093 = vpop.f32.mrf.mxu0
    %v1094 = vadd.f32 0.0, %v1093
    %v1095 = vpop.f32.mrf.mxu0
    %v1096 = vadd.f32 0.0, %v1095
    %1097 = vmatprep.mubr.f32.mxu0 0.0
    %1098 = vmatmul.mubr.f32.gmra.mxu0 %v138
    %v1099 = vpop.f32.mrf.mxu0
    %v1100 = vadd.f32 0.0, %v1099
    %v1101 = vpop.f32.mrf.mxu0
    %v1102 = vadd.f32 0.0, %v1101
    %1103 = vmatprep.mubr.f32.mxu0 0.0
    %1104 = vmatmul.mubr.f32.gmra.mxu0 %v141
    %v1105 = vpop.f32.mrf.mxu0
    %v1106 = vadd.f32 0.0, %v1105
    %v1107 = vpop.f32.mrf.mxu0
    %v1108 = vadd.f32 0.0, %v1107
    %1109 = vmatprep.mubr.f32.mxu0 0.0
    %1110 = vmatmul.mubr.f32.gmra.mxu0 %v144
    %v1111 = vpop.f32.mrf.mxu0
    %v1112 = vadd.f32 0.0, %v1111
    %v1113 = vpop.f32.mrf.mxu0
    %v1114 = vadd.f32 0.0, %v1113
    %1115 = vmatprep.mubr.f32.mxu0 0.0
    %1116 = vmatmul.mubr.f32.gmra.mxu0 %v147
    %v1117 = vpop.f32.mrf.mxu0
    %v1118 = vadd.f32 0.0, %v1117
    %v1119 = vpop.f32.mrf.mxu0
    %v1120 = vadd.f32 0.0, %v1119
    %1121 = vmatprep.mubr.f32.mxu0 0.0
    %1122 = vmatmul.mubr.f32.gmra.mxu0 %v150
    %v1123 = vpop.f32.mrf.mxu0
    %v1124 = vadd.f32 0.0, %v1123
    %v1125 = vpop.f32.mrf.mxu0
    %v1126 = vadd.f32 0.0, %v1125
    %1127 = vmatprep.mubr.f32.mxu0 0.0
    %1128 = vmatmul.mubr.f32.gmra.mxu0 %v153
    %v1129 = vpop.f32.mrf.mxu0
    %v1130 = vadd.f32 0.0, %v1129
    %v1131 = vpop.f32.mrf.mxu0
    %v1132 = vadd.f32 0.0, %v1131
    %1133 = vmatprep.mubr.f32.mxu0 0.0
    %1134 = vmatmul.mubr.f32.gmra.mxu0 %v156
    %v1135 = vpop.f32.mrf.mxu0
    %v1136 = vadd.f32 0.0, %v1135
    %v1137 = vpop.f32.mrf.mxu0
    %v1138 = vadd.f32 0.0, %v1137
    %1139 = vmatprep.mubr.f32.mxu0 0.0
    %1140 = vmatmul.mubr.f32.gmra.mxu0 %v159
    %v1141 = vpop.f32.mrf.mxu0
    %v1142 = vadd.f32 0.0, %v1141
    %v1143 = vpop.f32.mrf.mxu0
    %v1144 = vadd.f32 0.0, %v1143
    %1145 = vmatprep.mubr.f32.mxu0 0.0
    %1146 = vmatmul.mubr.f32.gmra.mxu0 %v162
    %v1147 = vpop.f32.mrf.mxu0
    %v1148 = vadd.f32 0.0, %v1147
    %v1149 = vpop.f32.mrf.mxu0
    %v1150 = vadd.f32 0.0, %v1149
    %1151 = vmatprep.mubr.f32.mxu0 0.0
    %1152 = vmatmul.mubr.f32.gmra.mxu0 %v165
    %v1153 = vpop.f32.mrf.mxu0
    %v1154 = vadd.f32 0.0, %v1153
    %v1155 = vpop.f32.mrf.mxu0
    %v1156 = vadd.f32 0.0, %v1155
    %1157 = vmatprep.mubr.f32.mxu0 0.0
    %1158 = vmatmul.mubr.f32.gmra.mxu0 %v168
    %v1159 = vpop.f32.mrf.mxu0
    %v1160 = vadd.f32 0.0, %v1159
    %v1161 = vpop.f32.mrf.mxu0
    %v1162 = vadd.f32 0.0, %v1161
    %1163 = vmatprep.mubr.f32.mxu0 0.0
    %1164 = vmatmul.mubr.f32.gmra.mxu0 %v171
    %v1165 = vpop.f32.mrf.mxu0
    %v1166 = vadd.f32 0.0, %v1165
    %v1167 = vpop.f32.mrf.mxu0
    %v1168 = vadd.f32 0.0, %v1167
    %1169 = vmatprep.mubr.f32.mxu0 0.0
    %1170 = vmatmul.mubr.f32.gmra.mxu0 %v174
    %v1171 = vpop.f32.mrf.mxu0
    %v1172 = vadd.f32 0.0, %v1171
    %v1173 = vpop.f32.mrf.mxu0
    %v1174 = vadd.f32 0.0, %v1173
    %1175 = vmatprep.mubr.f32.mxu0 0.0
    %1176 = vmatmul.mubr.f32.gmra.mxu0 %v177
    %v1177 = vpop.f32.mrf.mxu0
    %v1178 = vadd.f32 0.0, %v1177
    %v1179 = vpop.f32.mrf.mxu0
    %v1180 = vadd.f32 0.0, %v1179
    %1181 = vmatprep.mubr.f32.mxu0 0.0
    %1182 = vmatmul.mubr.f32.gmra.mxu0 %v658
    %v1183 = vpop.f32.mrf.mxu0
    %v1184 = vadd.f32 0.0, %v1183
    %v1185 = vpop.f32.mrf.mxu0
    %v1186 = vadd.f32 0.0, %v1185
    %1187 = vmatprep.mubr.f32.mxu0 0.0
    %1188 = vmatmul.mubr.f32.gmra.mxu0 %v959
    %v1189 = vpop.f32.mrf.mxu0
    %v1190 = vadd.f32 0.0, %v1189
    %v1191 = vpop.f32.mrf.mxu0
    %v1192 = vadd.f32 0.0, %v1191
    %1193 = vdwg.mxu0
    %v1194 = vadd.f32 %v893, %v1028
    %v1195 = vadd.f32 %v894, %v1030
    %v1196 = vadd.f32 %v895, %v1034
    %v1197 = vadd.f32 %v896, %v1036
    %v1198 = vadd.f32 %v897, %v1040
    %v1199 = vadd.f32 %v898, %v1042
    %v1200 = vadd.f32 %v899, %v1046
    %v1201 = vadd.f32 %v900, %v1048
    %v1202 = vadd.f32 %v901, %v1052
    %v1203 = vadd.f32 %v902, %v1054
    %v1204 = vadd.f32 %v903, %v1058
    %v1205 = vadd.f32 %v904, %v1060
    %v1206 = vadd.f32 %v905, %v1064
    %v1207 = vadd.f32 %v906, %v1066
    %v1208 = vadd.f32 %v907, %v1070
    %v1209 = vadd.f32 %v908, %v1072
    %v1210 = vadd.f32 %v909, %v1076
    %v1211 = vadd.f32 %v910, %v1078
    %v1212 = vadd.f32 %v911, %v1082
    %v1213 = vadd.f32 %v912, %v1084
    %v1214 = vadd.f32 %v913, %v1088
    %v1215 = vadd.f32 %v914, %v1090
    %v1216 = vadd.f32 %v915, %v1094
    %v1217 = vadd.f32 %v916, %v1096
    %v1218 = vadd.f32 %v917, %v1100
    %v1219 = vadd.f32 %v918, %v1102
    %v1220 = vadd.f32 %v919, %v1106
    %v1221 = vadd.f32 %v920, %v1108
    %v1222 = vadd.f32 %v921, %v1112
    %v1223 = vadd.f32 %v922, %v1114
    %v1224 = vadd.f32 %v923, %v1118
    %v1225 = vadd.f32 %v924, %v1120
    %v1226 = vadd.f32 %v925, %v1124
    %v1227 = vadd.f32 %v926, %v1126
    %v1228 = vadd.f32 %v927, %v1130
    %v1229 = vadd.f32 %v928, %v1132
    %v1230 = vadd.f32 %v929, %v1136
    %v1231 = vadd.f32 %v930, %v1138
    %v1232 = vadd.f32 %v931, %v1142
    %v1233 = vadd.f32 %v932, %v1144
    %v1234 = vadd.f32 %v933, %v1148
    %v1235 = vadd.f32 %v934, %v1150
    %v1236 = vadd.f32 %v935, %v1154
    %v1237 = vadd.f32 %v936, %v1156
    %v1238 = vadd.f32 %v937, %v1160
    %v1239 = vadd.f32 %v938, %v1162
    %v1240 = vadd.f32 %v939, %v1166
    %v1241 = vadd.f32 %v940, %v1168
    %v1242 = vadd.f32 %v941, %v1172
    %v1243 = vadd.f32 %v942, %v1174
    %v1244 = vadd.f32 %v943, %v1178
    %v1245 = vadd.f32 %v944, %v1180
    %v1246 = vadd.f32 %v945, %v1184
    %v1247 = vadd.f32 %v946, %v1186
    %v1248 = vadd.f32 %v947, %v1190
    %v1249 = vadd.f32 %v948, %v1192
    %s1250 = scalar_lea.vmem %s1, 256
    %v1251 = vld [vmem:[%s1250] sm:$0xff]
    %v1252 = vld [vmem:[%s1250 + $0x8] sm:$0xff]
    %v1253 = vld [vmem:[%s1250 + $0x10] sm:$0xff]
    %v1254 = vld [vmem:[%s1250 + $0x18] sm:$0xff]
    %v1255 = vld [vmem:[%s1250 + $0x20] sm:$0xff]
    %v1256 = vld [vmem:[%s1250 + $0x28] sm:$0xff]
    %v1257 = vld [vmem:[%s1250 + $0x30] sm:$0xff]
    %v1258 = vld [vmem:[%s1250 + $0x38] sm:$0xff]
    %v1260 = vsel %vm94, %v76, 0
    %1262 = vmatprep.subr.mxu0 0.0
    %1263 = vmatpush1.msra.mxu0 0.0
    %1264 = vmatprep.subr.mxu0 0.0
    %1265 = vmatpush1.msra.mxu0 0.0
    %1266 = vmatprep.subr.mxu0 0.0
    %1267 = vmatpush1.msra.mxu0 0.0
    %1268 = vmatprep.subr.mxu0 0.0
    %1269 = vmatpush1.msra.mxu0 0.0
    %1270 = vmatprep.subr.mxu0 0.0
    %1271 = vmatpush1.msra.mxu0 0.0
    %1272 = vmatprep.subr.mxu0 0.0
    %1273 = vmatpush1.msra.mxu0 0.0
    %1274 = vmatprep.subr.mxu0 0.0
    %1275 = vmatpush1.msra.mxu0 0.0
    %1276 = vmatprep.subr.mxu0 0.0
    %1277 = vmatpush1.msra.mxu0 0.0
    %1278 = vmatprep.subr.mxu0 0.0
    %1279 = vmatpush1.msra.mxu0 0.0
    %1280 = vmatprep.subr.mxu0 0.0
    %1281 = vmatpush1.msra.mxu0 0.0
    %1282 = vmatprep.subr.mxu0 0.0
    %1283 = vmatpush1.msra.mxu0 0.0
    %1284 = vmatprep.subr.mxu0 0.0
    %1285 = vmatpush1.msra.mxu0 0.0
    %1286 = vmatprep.subr.mxu0 %v1258
    %1287 = vmatpush1.msra.mxu0 %v1257
    %1288 = vmatprep.subr.mxu0 %v1256
    %1289 = vmatpush1.msra.mxu0 %v1255
    %1290 = vmatprep.subr.mxu0 %v1254
    %1291 = vmatpush1.msra.mxu0 %v1253
    %1292 = vmatprep.subr.mxu0 %v1252
    %1293 = vmatpush1.msra.mxu0 %v1251
    %1294 = vmatprep.subr.mxu0 0.0
    %1295 = vmatpush2.msra.mxu0 0.0
    %1296 = vmatprep.subr.mxu0 0.0
    %1297 = vmatpush2.msra.mxu0 0.0
    %1298 = vmatprep.subr.mxu0 0.0
    %1299 = vmatpush2.msra.mxu0 0.0
    %1300 = vmatprep.subr.mxu0 0.0
    %1301 = vmatpush2.msra.mxu0 0.0
    %1302 = vmatprep.subr.mxu0 0.0
    %1303 = vmatpush2.msra.mxu0 0.0
    %1304 = vmatprep.subr.mxu0 0.0
    %1305 = vmatpush2.msra.mxu0 0.0
    %1306 = vmatprep.subr.mxu0 0.0
    %1307 = vmatpush2.msra.mxu0 0.0
    %1308 = vmatprep.subr.mxu0 0.0
    %1309 = vmatpush2.msra.mxu0 0.0
    %1310 = vmatprep.subr.mxu0 0.0
    %1311 = vmatpush2.msra.mxu0 0.0
    %1312 = vmatprep.subr.mxu0 0.0
    %1313 = vmatpush2.msra.mxu0 0.0
    %1314 = vmatprep.subr.mxu0 0.0
    %1315 = vmatpush2.msra.mxu0 0.0
    %1316 = vmatprep.subr.mxu0 0.0
    %1317 = vmatpush2.msra.mxu0 0.0
    %1318 = vmatprep.subr.mxu0 0.0
    %1319 = vmatpush2.msra.mxu0 0.0
    %1320 = vmatprep.subr.mxu0 0.0
    %1321 = vmatpush2.msra.mxu0 0.0
    %1322 = vmatprep.subr.mxu0 0.0
    %1323 = vmatpush2.msra.mxu0 0.0
    %1324 = vmatprep.subr.mxu0 0.0
    %1325 = vmatpush2.msra.mxu0 0.0
    %1326 = vmatprep.mubr.f32.mxu0 0.0
    %1327 = vmatmul.mubr.f32.gmra.mxu0 %v105
    %v1328 = vpop.f32.mrf.mxu0
    %v1329 = vadd.f32 0.0, %v1328
    %v1330 = vpop.f32.mrf.mxu0
    %v1331 = vadd.f32 0.0, %v1330
    %1332 = vmatprep.mubr.f32.mxu0 0.0
    %1333 = vmatmul.mubr.f32.gmra.mxu0 %v108
    %v1334 = vpop.f32.mrf.mxu0
    %v1335 = vadd.f32 0.0, %v1334
    %v1336 = vpop.f32.mrf.mxu0
    %v1337 = vadd.f32 0.0, %v1336
    %1338 = vmatprep.mubr.f32.mxu0 0.0
    %1339 = vmatmul.mubr.f32.gmra.mxu0 %v111
    %v1340 = vpop.f32.mrf.mxu0
    %v1341 = vadd.f32 0.0, %v1340
    %v1342 = vpop.f32.mrf.mxu0
    %v1343 = vadd.f32 0.0, %v1342
    %1344 = vmatprep.mubr.f32.mxu0 0.0
    %1345 = vmatmul.mubr.f32.gmra.mxu0 %v114
    %v1346 = vpop.f32.mrf.mxu0
    %v1347 = vadd.f32 0.0, %v1346
    %v1348 = vpop.f32.mrf.mxu0
    %v1349 = vadd.f32 0.0, %v1348
    %1350 = vmatprep.mubr.f32.mxu0 0.0
    %1351 = vmatmul.mubr.f32.gmra.mxu0 %v117
    %v1352 = vpop.f32.mrf.mxu0
    %v1353 = vadd.f32 0.0, %v1352
    %v1354 = vpop.f32.mrf.mxu0
    %v1355 = vadd.f32 0.0, %v1354
    %1356 = vmatprep.mubr.f32.mxu0 0.0
    %1357 = vmatmul.mubr.f32.gmra.mxu0 %v120
    %v1358 = vpop.f32.mrf.mxu0
    %v1359 = vadd.f32 0.0, %v1358
    %v1360 = vpop.f32.mrf.mxu0
    %v1361 = vadd.f32 0.0, %v1360
    %1362 = vmatprep.mubr.f32.mxu0 0.0
    %1363 = vmatmul.mubr.f32.gmra.mxu0 %v123
    %v1364 = vpop.f32.mrf.mxu0
    %v1365 = vadd.f32 0.0, %v1364
    %v1366 = vpop.f32.mrf.mxu0
    %v1367 = vadd.f32 0.0, %v1366
    %1368 = vmatprep.mubr.f32.mxu0 0.0
    %1369 = vmatmul.mubr.f32.gmra.mxu0 %v126
    %v1370 = vpop.f32.mrf.mxu0
    %v1371 = vadd.f32 0.0, %v1370
    %v1372 = vpop.f32.mrf.mxu0
    %v1373 = vadd.f32 0.0, %v1372
    %1374 = vmatprep.mubr.f32.mxu0 0.0
    %1375 = vmatmul.mubr.f32.gmra.mxu0 %v129
    %v1376 = vpop.f32.mrf.mxu0
    %v1377 = vadd.f32 0.0, %v1376
    %v1378 = vpop.f32.mrf.mxu0
    %v1379 = vadd.f32 0.0, %v1378
    %1380 = vmatprep.mubr.f32.mxu0 0.0
    %1381 = vmatmul.mubr.f32.gmra.mxu0 %v132
    %v1382 = vpop.f32.mrf.mxu0
    %v1383 = vadd.f32 0.0, %v1382
    %v1384 = vpop.f32.mrf.mxu0
    %v1385 = vadd.f32 0.0, %v1384
    %1386 = vmatprep.mubr.f32.mxu0 0.0
    %1387 = vmatmul.mubr.f32.gmra.mxu0 %v135
    %v1388 = vpop.f32.mrf.mxu0
    %v1389 = vadd.f32 0.0, %v1388
    %v1390 = vpop.f32.mrf.mxu0
    %v1391 = vadd.f32 0.0, %v1390
    %1392 = vmatprep.mubr.f32.mxu0 0.0
    %1393 = vmatmul.mubr.f32.gmra.mxu0 %v138
    %v1394 = vpop.f32.mrf.mxu0
    %v1395 = vadd.f32 0.0, %v1394
    %v1396 = vpop.f32.mrf.mxu0
    %v1397 = vadd.f32 0.0, %v1396
    %1398 = vmatprep.mubr.f32.mxu0 0.0
    %1399 = vmatmul.mubr.f32.gmra.mxu0 %v141
    %v1400 = vpop.f32.mrf.mxu0
    %v1401 = vadd.f32 0.0, %v1400
    %v1402 = vpop.f32.mrf.mxu0
    %v1403 = vadd.f32 0.0, %v1402
    %1404 = vmatprep.mubr.f32.mxu0 0.0
    %1405 = vmatmul.mubr.f32.gmra.mxu0 %v144
    %v1406 = vpop.f32.mrf.mxu0
    %v1407 = vadd.f32 0.0, %v1406
    %v1408 = vpop.f32.mrf.mxu0
    %v1409 = vadd.f32 0.0, %v1408
    %1410 = vmatprep.mubr.f32.mxu0 0.0
    %1411 = vmatmul.mubr.f32.gmra.mxu0 %v147
    %v1412 = vpop.f32.mrf.mxu0
    %v1413 = vadd.f32 0.0, %v1412
    %v1414 = vpop.f32.mrf.mxu0
    %v1415 = vadd.f32 0.0, %v1414
    %1416 = vmatprep.mubr.f32.mxu0 0.0
    %1417 = vmatmul.mubr.f32.gmra.mxu0 %v150
    %v1418 = vpop.f32.mrf.mxu0
    %v1419 = vadd.f32 0.0, %v1418
    %v1420 = vpop.f32.mrf.mxu0
    %v1421 = vadd.f32 0.0, %v1420
    %1422 = vmatprep.mubr.f32.mxu0 0.0
    %1423 = vmatmul.mubr.f32.gmra.mxu0 %v153
    %v1424 = vpop.f32.mrf.mxu0
    %v1425 = vadd.f32 0.0, %v1424
    %v1426 = vpop.f32.mrf.mxu0
    %v1427 = vadd.f32 0.0, %v1426
    %1428 = vmatprep.mubr.f32.mxu0 0.0
    %1429 = vmatmul.mubr.f32.gmra.mxu0 %v156
    %v1430 = vpop.f32.mrf.mxu0
    %v1431 = vadd.f32 0.0, %v1430
    %v1432 = vpop.f32.mrf.mxu0
    %v1433 = vadd.f32 0.0, %v1432
    %1434 = vmatprep.mubr.f32.mxu0 0.0
    %1435 = vmatmul.mubr.f32.gmra.mxu0 %v159
    %v1436 = vpop.f32.mrf.mxu0
    %v1437 = vadd.f32 0.0, %v1436
    %v1438 = vpop.f32.mrf.mxu0
    %v1439 = vadd.f32 0.0, %v1438
    %1440 = vmatprep.mubr.f32.mxu0 0.0
    %1441 = vmatmul.mubr.f32.gmra.mxu0 %v162
    %v1442 = vpop.f32.mrf.mxu0
    %v1443 = vadd.f32 0.0, %v1442
    %v1444 = vpop.f32.mrf.mxu0
    %v1445 = vadd.f32 0.0, %v1444
    %1446 = vmatprep.mubr.f32.mxu0 0.0
    %1447 = vmatmul.mubr.f32.gmra.mxu0 %v165
    %v1448 = vpop.f32.mrf.mxu0
    %v1449 = vadd.f32 0.0, %v1448
    %v1450 = vpop.f32.mrf.mxu0
    %v1451 = vadd.f32 0.0, %v1450
    %1452 = vmatprep.mubr.f32.mxu0 0.0
    %1453 = vmatmul.mubr.f32.gmra.mxu0 %v168
    %v1454 = vpop.f32.mrf.mxu0
    %v1455 = vadd.f32 0.0, %v1454
    %v1456 = vpop.f32.mrf.mxu0
    %v1457 = vadd.f32 0.0, %v1456
    %1458 = vmatprep.mubr.f32.mxu0 0.0
    %1459 = vmatmul.mubr.f32.gmra.mxu0 %v171
    %v1460 = vpop.f32.mrf.mxu0
    %v1461 = vadd.f32 0.0, %v1460
    %v1462 = vpop.f32.mrf.mxu0
    %v1463 = vadd.f32 0.0, %v1462
    %1464 = vmatprep.mubr.f32.mxu0 0.0
    %1465 = vmatmul.mubr.f32.gmra.mxu0 %v174
    %v1466 = vpop.f32.mrf.mxu0
    %v1467 = vadd.f32 0.0, %v1466
    %v1468 = vpop.f32.mrf.mxu0
    %v1469 = vadd.f32 0.0, %v1468
    %1470 = vmatprep.mubr.f32.mxu0 0.0
    %1471 = vmatmul.mubr.f32.gmra.mxu0 %v177
    %v1472 = vpop.f32.mrf.mxu0
    %v1473 = vadd.f32 0.0, %v1472
    %v1474 = vpop.f32.mrf.mxu0
    %v1475 = vadd.f32 0.0, %v1474
    %1476 = vmatprep.mubr.f32.mxu0 0.0
    %1477 = vmatmul.mubr.f32.gmra.mxu0 %v658
    %v1478 = vpop.f32.mrf.mxu0
    %v1479 = vadd.f32 0.0, %v1478
    %v1480 = vpop.f32.mrf.mxu0
    %v1481 = vadd.f32 0.0, %v1480
    %1482 = vmatprep.mubr.f32.mxu0 0.0
    %1483 = vmatmul.mubr.f32.gmra.mxu0 %v959
    %v1484 = vpop.f32.mrf.mxu0
    %v1485 = vadd.f32 0.0, %v1484
    %v1486 = vpop.f32.mrf.mxu0
    %v1487 = vadd.f32 0.0, %v1486
    %1488 = vmatprep.mubr.f32.mxu0 0.0
    %1489 = vmatmul.mubr.f32.gmra.mxu0 %v1260
    %v1490 = vpop.f32.mrf.mxu0
    %v1491 = vadd.f32 0.0, %v1490
    %v1492 = vpop.f32.mrf.mxu0
    %v1493 = vadd.f32 0.0, %v1492
    %1494 = vdwg.mxu0
    %v1495 = vadd.f32 %v1194, %v1329
    %v1496 = vadd.f32 %v1195, %v1331
    %v1497 = vadd.f32 %v1196, %v1335
    %v1498 = vadd.f32 %v1197, %v1337
    %v1499 = vadd.f32 %v1198, %v1341
    %v1500 = vadd.f32 %v1199, %v1343
    %v1501 = vadd.f32 %v1200, %v1347
    %v1502 = vadd.f32 %v1201, %v1349
    %v1503 = vadd.f32 %v1202, %v1353
    %v1504 = vadd.f32 %v1203, %v1355
    %v1505 = vadd.f32 %v1204, %v1359
    %v1506 = vadd.f32 %v1205, %v1361
    %v1507 = vadd.f32 %v1206, %v1365
    %v1508 = vadd.f32 %v1207, %v1367
    %v1509 = vadd.f32 %v1208, %v1371
    %v1510 = vadd.f32 %v1209, %v1373
    %v1511 = vadd.f32 %v1210, %v1377
    %v1512 = vadd.f32 %v1211, %v1379
    %v1513 = vadd.f32 %v1212, %v1383
    %v1514 = vadd.f32 %v1213, %v1385
    %v1515 = vadd.f32 %v1214, %v1389
    %v1516 = vadd.f32 %v1215, %v1391
    %v1517 = vadd.f32 %v1216, %v1395
    %v1518 = vadd.f32 %v1217, %v1397
    %v1519 = vadd.f32 %v1218, %v1401
    %v1520 = vadd.f32 %v1219, %v1403
    %v1521 = vadd.f32 %v1220, %v1407
    %v1522 = vadd.f32 %v1221, %v1409
    %v1523 = vadd.f32 %v1222, %v1413
    %v1524 = vadd.f32 %v1223, %v1415
    %v1525 = vadd.f32 %v1224, %v1419
    %v1526 = vadd.f32 %v1225, %v1421
    %v1527 = vadd.f32 %v1226, %v1425
    %v1528 = vadd.f32 %v1227, %v1427
    %v1529 = vadd.f32 %v1228, %v1431
    %v1530 = vadd.f32 %v1229, %v1433
    %v1531 = vadd.f32 %v1230, %v1437
    %v1532 = vadd.f32 %v1231, %v1439
    %v1533 = vadd.f32 %v1232, %v1443
    %v1534 = vadd.f32 %v1233, %v1445
    %v1535 = vadd.f32 %v1234, %v1449
    %v1536 = vadd.f32 %v1235, %v1451
    %v1537 = vadd.f32 %v1236, %v1455
    %v1538 = vadd.f32 %v1237, %v1457
    %v1539 = vadd.f32 %v1238, %v1461
    %v1540 = vadd.f32 %v1239, %v1463
    %v1541 = vadd.f32 %v1240, %v1467
    %v1542 = vadd.f32 %v1241, %v1469
    %v1543 = vadd.f32 %v1242, %v1473
    %v1544 = vadd.f32 %v1243, %v1475
    %v1545 = vadd.f32 %v1244, %v1479
    %v1546 = vadd.f32 %v1245, %v1481
    %v1547 = vadd.f32 %v1246, %v1485
    %v1548 = vadd.f32 %v1247, %v1487
    %v1549 = vadd.f32 %v1248, %v1491
    %v1550 = vadd.f32 %v1249, %v1493
    %v1551 = vld [vmem:[%s2] sm:$0x3]
    %v1553 = vlaneseq
    %v1554 = vshrl.u32 %v1553, 7
    %v1555 = vsub.s32 0, %v1554
    %v1556 = vrot.slane %v1551, %v1555
    %v1557 = vlaneseq
    %v1558 = vshrl.u32 %v1557, 7
    %v1559 = vsub.s32 1, %v1558
    %v1560 = vrot.slane %v1551, %v1559
    %v1563 = vadd.f32 %v1495, %v1556
    %v1564 = vadd.f32 %v1496, %v1560
    %v1565 = vadd.f32 %v1497, %v1556
    %v1566 = vadd.f32 %v1498, %v1560
    %v1567 = vadd.f32 %v1499, %v1556
    %v1568 = vadd.f32 %v1500, %v1560
    %v1569 = vadd.f32 %v1501, %v1556
    %v1570 = vadd.f32 %v1502, %v1560
    %v1571 = vadd.f32 %v1503, %v1556
    %v1572 = vadd.f32 %v1504, %v1560
    %v1573 = vadd.f32 %v1505, %v1556
    %v1574 = vadd.f32 %v1506, %v1560
    %v1575 = vadd.f32 %v1507, %v1556
    %v1576 = vadd.f32 %v1508, %v1560
    %v1577 = vadd.f32 %v1509, %v1556
    %v1578 = vadd.f32 %v1510, %v1560
    %v1579 = vadd.f32 %v1511, %v1556
    %v1580 = vadd.f32 %v1512, %v1560
    %v1581 = vadd.f32 %v1513, %v1556
    %v1582 = vadd.f32 %v1514, %v1560
    %v1583 = vadd.f32 %v1515, %v1556
    %v1584 = vadd.f32 %v1516, %v1560
    %v1585 = vadd.f32 %v1517, %v1556
    %v1586 = vadd.f32 %v1518, %v1560
    %v1587 = vadd.f32 %v1519, %v1556
    %v1588 = vadd.f32 %v1520, %v1560
    %v1589 = vadd.f32 %v1521, %v1556
    %v1590 = vadd.f32 %v1522, %v1560
    %v1591 = vadd.f32 %v1523, %v1556
    %v1592 = vadd.f32 %v1524, %v1560
    %v1593 = vadd.f32 %v1525, %v1556
    %v1594 = vadd.f32 %v1526, %v1560
    %v1595 = vadd.f32 %v1527, %v1556
    %v1596 = vadd.f32 %v1528, %v1560
    %v1597 = vadd.f32 %v1529, %v1556
    %v1598 = vadd.f32 %v1530, %v1560
    %v1599 = vadd.f32 %v1531, %v1556
    %v1600 = vadd.f32 %v1532, %v1560
    %v1601 = vadd.f32 %v1533, %v1556
    %v1602 = vadd.f32 %v1534, %v1560
    %v1603 = vadd.f32 %v1535, %v1556
    %v1604 = vadd.f32 %v1536, %v1560
    %v1605 = vadd.f32 %v1537, %v1556
    %v1606 = vadd.f32 %v1538, %v1560
    %v1607 = vadd.f32 %v1539, %v1556
    %v1608 = vadd.f32 %v1540, %v1560
    %v1609 = vadd.f32 %v1541, %v1556
    %v1610 = vadd.f32 %v1542, %v1560
    %v1611 = vadd.f32 %v1543, %v1556
    %v1612 = vadd.f32 %v1544, %v1560
    %v1613 = vadd.f32 %v1545, %v1556
    %v1614 = vadd.f32 %v1546, %v1560
    %v1615 = vadd.f32 %v1547, %v1556
    %v1616 = vadd.f32 %v1548, %v1560
    %v1617 = vadd.f32 %v1549, %v1556
    %v1618 = vadd.f32 %v1550, %v1560
    %v1619 = vmax.f32 %v1563, 0.0
    %v1620 = vmax.f32 %v1564, 0.0
    %v1621 = vmax.f32 %v1565, 0.0
    %v1622 = vmax.f32 %v1566, 0.0
    %v1623 = vmax.f32 %v1567, 0.0
    %v1624 = vmax.f32 %v1568, 0.0
    %v1625 = vmax.f32 %v1569, 0.0
    %v1626 = vmax.f32 %v1570, 0.0
    %v1627 = vmax.f32 %v1571, 0.0
    %v1628 = vmax.f32 %v1572, 0.0
    %v1629 = vmax.f32 %v1573, 0.0
    %v1630 = vmax.f32 %v1574, 0.0
    %v1631 = vmax.f32 %v1575, 0.0
    %v1632 = vmax.f32 %v1576, 0.0
    %v1633 = vmax.f32 %v1577, 0.0
    %v1634 = vmax.f32 %v1578, 0.0
    %v1635 = vmax.f32 %v1579, 0.0
    %v1636 = vmax.f32 %v1580, 0.0
    %v1637 = vmax.f32 %v1581, 0.0
    %v1638 = vmax.f32 %v1582, 0.0
    %v1639 = vmax.f32 %v1583, 0.0
    %v1640 = vmax.f32 %v1584, 0.0
    %v1641 = vmax.f32 %v1585, 0.0
    %v1642 = vmax.f32 %v1586, 0.0
    %v1643 = vmax.f32 %v1587, 0.0
    %v1644 = vmax.f32 %v1588, 0.0
    %v1645 = vmax.f32 %v1589, 0.0
    %v1646 = vmax.f32 %v1590, 0.0
    %v1647 = vmax.f32 %v1591, 0.0
    %v1648 = vmax.f32 %v1592, 0.0
    %v1649 = vmax.f32 %v1593, 0.0
    %v1650 = vmax.f32 %v1594, 0.0
    %v1651 = vmax.f32 %v1595, 0.0
    %v1652 = vmax.f32 %v1596, 0.0
    %v1653 = vmax.f32 %v1597, 0.0
    %v1654 = vmax.f32 %v1598, 0.0
    %v1655 = vmax.f32 %v1599, 0.0
    %v1656 = vmax.f32 %v1600, 0.0
    %v1657 = vmax.f32 %v1601, 0.0
    %v1658 = vmax.f32 %v1602, 0.0
    %v1659 = vmax.f32 %v1603, 0.0
    %v1660 = vmax.f32 %v1604, 0.0
    %v1661 = vmax.f32 %v1605, 0.0
    %v1662 = vmax.f32 %v1606, 0.0
    %v1663 = vmax.f32 %v1607, 0.0
    %v1664 = vmax.f32 %v1608, 0.0
    %v1665 = vmax.f32 %v1609, 0.0
    %v1666 = vmax.f32 %v1610, 0.0
    %v1667 = vmax.f32 %v1611, 0.0
    %v1668 = vmax.f32 %v1612, 0.0
    %v1669 = vmax.f32 %v1613, 0.0
    %v1670 = vmax.f32 %v1614, 0.0
    %v1671 = vmax.f32 %v1615, 0.0
    %v1672 = vmax.f32 %v1616, 0.0
    %v1673 = vmax.f32 %v1617, 0.0
    %v1674 = vmax.f32 %v1618, 0.0
    %v1675 = vmax.f32 %v1619, %v1621
    %v1676 = vmax.f32 %v1620, %v1622
    %v1677 = vmax.f32 %v1623, %v1625
    %v1678 = vmax.f32 %v1624, %v1626
    %v1679 = vmax.f32 %v1627, %v1629
    %v1680 = vmax.f32 %v1628, %v1630
    %v1681 = vmax.f32 %v1631, %v1633
    %v1682 = vmax.f32 %v1632, %v1634
    %v1683 = vmax.f32 %v1635, %v1637
    %v1684 = vmax.f32 %v1636, %v1638
    %v1685 = vmax.f32 %v1639, %v1641
    %v1686 = vmax.f32 %v1640, %v1642
    %v1687 = vmax.f32 %v1643, %v1645
    %v1688 = vmax.f32 %v1644, %v1646
    %v1689 = vmax.f32 %v1647, %v1649
    %v1690 = vmax.f32 %v1648, %v1650
    %v1691 = vmax.f32 %v1651, %v1653
    %v1692 = vmax.f32 %v1652, %v1654
    %v1693 = vmax.f32 %v1655, %v1657
    %v1694 = vmax.f32 %v1656, %v1658
    %v1695 = vmax.f32 %v1659, %v1661
    %v1696 = vmax.f32 %v1660, %v1662
    %v1697 = vmax.f32 %v1663, %v1665
    %v1698 = vmax.f32 %v1664, %v1666
    %v1699 = vmax.f32 %v1667, %v1669
    %v1700 = vmax.f32 %v1668, %v1670
    %v1701 = vmax.f32 %v1671, %v1673
    %v1702 = vmax.f32 %v1672, %v1674
    %v1703 = vld [vmem:[%s3] sm:$0xff]
    %v1704 = vld [vmem:[%s3 + $0x8] sm:$0xff]
    %v1705 = vld [vmem:[%s3 + $0x10] sm:$0xff]
    %v1706 = vld [vmem:[%s3 + $0x18] sm:$0xff]
    %v1707 = vld [vmem:[%s3 + $0x20] sm:$0xff]
    %v1708 = vld [vmem:[%s3 + $0x28] sm:$0xff]
    %v1709 = vld [vmem:[%s3 + $0x30] sm:$0xff]
    %v1710 = vld [vmem:[%s3 + $0x38] sm:$0xff]
    %v1711 = vld [vmem:[%s3 + $0x40] sm:$0xff]
    %v1712 = vld [vmem:[%s3 + $0x48] sm:$0xff]
    %v1713 = vld [vmem:[%s3 + $0x50] sm:$0xff]
    %v1714 = vld [vmem:[%s3 + $0x58] sm:$0xff]
    %v1715 = vld [vmem:[%s3 + $0x60] sm:$0xff]
    %v1716 = vld [vmem:[%s3 + $0x68] sm:$0xff]
    %v1717 = vld [vmem:[%s3 + $0x70] sm:$0xff]
    %v1718 = vld [vmem:[%s3 + $0x78] sm:$0xff]
    %v1719 = vld [vmem:[%s3 + $0x80] sm:$0xff]
    %v1720 = vld [vmem:[%s3 + $0x88] sm:$0xff]
    %v1721 = vld [vmem:[%s3 + $0x90] sm:$0xff]
    %v1722 = vld [vmem:[%s3 + $0x98] sm:$0xff]
    %v1723 = vld [vmem:[%s3 + $0xa0] sm:$0xff]
    %vm1724 = vcmask 326656
    %v1726 = vsel %vm1724, %v1676, 0
    %v1729 = vsel %vm1724, %v1678, 0
    %v1732 = vsel %vm1724, %v1680, 0
    %v1735 = vsel %vm1724, %v1682, 0
    %v1738 = vsel %vm1724, %v1684, 0
    %v1741 = vsel %vm1724, %v1686, 0
    %v1744 = vsel %vm1724, %v1688, 0
    %v1747 = vsel %vm1724, %v1690, 0
    %v1750 = vsel %vm1724, %v1692, 0
    %v1753 = vsel %vm1724, %v1694, 0
    %v1756 = vsel %vm1724, %v1696, 0
    %v1759 = vsel %vm1724, %v1698, 0
    %v1762 = vsel %vm1724, %v1700, 0
    %v1765 = vsel %vm1724, %v1702, 0
    %1767 = vmatprep.subr.mxu0 0.0
    %1768 = vmatpush1.msra.mxu0 %v1718
    %1769 = vmatprep.subr.mxu0 0.0
    %1770 = vmatpush1.msra.mxu0 %v1717
    %1771 = vmatprep.subr.mxu0 0.0
    %1772 = vmatpush1.msra.mxu0 %v1716
    %1773 = vmatprep.subr.mxu0 0.0
    %1774 = vmatpush1.msra.mxu0 %v1715
    %1775 = vmatprep.subr.mxu0 0.0
    %1776 = vmatpush1.msra.mxu0 %v1714
    %1777 = vmatprep.subr.mxu0 0.0
    %1778 = vmatpush1.msra.mxu0 %v1713
    %1779 = vmatprep.subr.mxu0 0.0
    %1780 = vmatpush1.msra.mxu0 %v1712
    %1781 = vmatprep.subr.mxu0 0.0
    %1782 = vmatpush1.msra.mxu0 %v1711
    %1783 = vmatprep.subr.mxu0 0.0
    %1784 = vmatpush1.msra.mxu0 %v1710
    %1785 = vmatprep.subr.mxu0 0.0
    %1786 = vmatpush1.msra.mxu0 %v1709
    %1787 = vmatprep.subr.mxu0 0.0
    %1788 = vmatpush1.msra.mxu0 %v1708
    %1789 = vmatprep.subr.mxu0 0.0
    %1790 = vmatpush1.msra.mxu0 %v1707
    %1791 = vmatprep.subr.mxu0 0.0
    %1792 = vmatpush1.msra.mxu0 %v1706
    %1793 = vmatprep.subr.mxu0 0.0
    %1794 = vmatpush1.msra.mxu0 %v1705
    %1795 = vmatprep.subr.mxu0 0.0
    %1796 = vmatpush1.msra.mxu0 %v1704
    %1797 = vmatprep.subr.mxu0 0.0
    %1798 = vmatpush1.msra.mxu0 %v1703
    %1799 = vmatprep.subr.mxu0 0.0
    %1800 = vmatpush2.msra.mxu0 0.0
    %1801 = vmatprep.subr.mxu0 0.0
    %1802 = vmatpush2.msra.mxu0 0.0
    %1803 = vmatprep.subr.mxu0 0.0
    %1804 = vmatpush2.msra.mxu0 0.0
    %1805 = vmatprep.subr.mxu0 0.0
    %1806 = vmatpush2.msra.mxu0 0.0
    %1807 = vmatprep.subr.mxu0 0.0
    %1808 = vmatpush2.msra.mxu0 0.0
    %1809 = vmatprep.subr.mxu0 0.0
    %1810 = vmatpush2.msra.mxu0 0.0
    %1811 = vmatprep.subr.mxu0 0.0
    %1812 = vmatpush2.msra.mxu0 0.0
    %1813 = vmatprep.subr.mxu0 0.0
    %1814 = vmatpush2.msra.mxu0 0.0
    %1815 = vmatprep.subr.mxu0 0.0
    %1816 = vmatpush2.msra.mxu0 0.0
    %1817 = vmatprep.subr.mxu0 0.0
    %1818 = vmatpush2.msra.mxu0 0.0
    %1819 = vmatprep.subr.mxu0 0.0
    %1820 = vmatpush2.msra.mxu0 0.0
    %1821 = vmatprep.subr.mxu0 0.0
    %1822 = vmatpush2.msra.mxu0 %v1723
    %1823 = vmatprep.subr.mxu0 0.0
    %1824 = vmatpush2.msra.mxu0 %v1722
    %1825 = vmatprep.subr.mxu0 0.0
    %1826 = vmatpush2.msra.mxu0 %v1721
    %1827 = vmatprep.subr.mxu0 0.0
    %1828 = vmatpush2.msra.mxu0 %v1720
    %1829 = vmatprep.subr.mxu0 0.0
    %1830 = vmatpush2.msra.mxu0 %v1719
    %1831 = vmatprep.mubr.f32.mxu0 %v1726
    %1832 = vmatmul.mubr.f32.gmra.mxu0 %v1675
    %v1833 = vpop.f32.mrf.mxu0
    %v1834 = vadd.f32 0.0, %v1833
    %v1835 = vpop.f32.mrf.mxu0
    %1836 = vmatprep.mubr.f32.mxu0 %v1729
    %1837 = vmatmul.mubr.f32.gmra.mxu0 %v1677
    %v1838 = vpop.f32.mrf.mxu0
    %v1839 = vadd.f32 0.0, %v1838
    %v1840 = vpop.f32.mrf.mxu0
    %1841 = vmatprep.mubr.f32.mxu0 %v1732
    %1842 = vmatmul.mubr.f32.gmra.mxu0 %v1679
    %v1843 = vpop.f32.mrf.mxu0
    %v1844 = vadd.f32 0.0, %v1843
    %v1845 = vpop.f32.mrf.mxu0
    %1846 = vmatprep.mubr.f32.mxu0 %v1735
    %1847 = vmatmul.mubr.f32.gmra.mxu0 %v1681
    %v1848 = vpop.f32.mrf.mxu0
    %v1849 = vadd.f32 0.0, %v1848
    %v1850 = vpop.f32.mrf.mxu0
    %1851 = vmatprep.mubr.f32.mxu0 %v1738
    %1852 = vmatmul.mubr.f32.gmra.mxu0 %v1683
    %v1853 = vpop.f32.mrf.mxu0
    %v1854 = vadd.f32 0.0, %v1853
    %v1855 = vpop.f32.mrf.mxu0
    %1856 = vmatprep.mubr.f32.mxu0 %v1741
    %1857 = vmatmul.mubr.f32.gmra.mxu0 %v1685
    %v1858 = vpop.f32.mrf.mxu0
    %v1859 = vadd.f32 0.0, %v1858
    %v1860 = vpop.f32.mrf.mxu0
    %1861 = vmatprep.mubr.f32.mxu0 %v1744
    %1862 = vmatmul.mubr.f32.gmra.mxu0 %v1687
    %v1863 = vpop.f32.mrf.mxu0
    %v1864 = vadd.f32 0.0, %v1863
    %v1865 = vpop.f32.mrf.mxu0
    %1866 = vmatprep.mubr.f32.mxu0 %v1747
    %1867 = vmatmul.mubr.f32.gmra.mxu0 %v1689
    %v1868 = vpop.f32.mrf.mxu0
    %v1869 = vadd.f32 0.0, %v1868
    %v1870 = vpop.f32.mrf.mxu0
    %1871 = vmatprep.mubr.f32.mxu0 %v1750
    %1872 = vmatmul.mubr.f32.gmra.mxu0 %v1691
    %v1873 = vpop.f32.mrf.mxu0
    %v1874 = vadd.f32 0.0, %v1873
    %v1875 = vpop.f32.mrf.mxu0
    %1876 = vmatprep.mubr.f32.mxu0 %v1753
    %1877 = vmatmul.mubr.f32.gmra.mxu0 %v1693
    %v1878 = vpop.f32.mrf.mxu0
    %v1879 = vadd.f32 0.0, %v1878
    %v1880 = vpop.f32.mrf.mxu0
    %1881 = vmatprep.mubr.f32.mxu0 %v1756
    %1882 = vmatmul.mubr.f32.gmra.mxu0 %v1695
    %v1883 = vpop.f32.mrf.mxu0
    %v1884 = vadd.f32 0.0, %v1883
    %v1885 = vpop.f32.mrf.mxu0
    %1886 = vmatprep.mubr.f32.mxu0 %v1759
    %1887 = vmatmul.mubr.f32.gmra.mxu0 %v1697
    %v1888 = vpop.f32.mrf.mxu0
    %v1889 = vadd.f32 0.0, %v1888
    %v1890 = vpop.f32.mrf.mxu0
    %1891 = vmatprep.mubr.f32.mxu0 %v1762
    %1892 = vmatmul.mubr.f32.gmra.mxu0 %v1699
    %v1893 = vpop.f32.mrf.mxu0
    %v1894 = vadd.f32 0.0, %v1893
    %v1895 = vpop.f32.mrf.mxu0
    %1896 = vmatprep.mubr.f32.mxu0 %v1765
    %1897 = vmatmul.mubr.f32.gmra.mxu0 %v1701
    %v1898 = vpop.f32.mrf.mxu0
    %v1899 = vadd.f32 0.0, %v1898
    %v1900 = vpop.f32.mrf.mxu0
    %1901 = vdwg.mxu0
    %s1902 = scalar_lea.vmem %s3, 168
    %v1903 = vld [vmem:[%s1902] sm:$0xff]
    %v1904 = vld [vmem:[%s1902 + $0x8] sm:$0xff]
    %v1905 = vld [vmem:[%s1902 + $0x10] sm:$0xff]
    %v1906 = vld [vmem:[%s1902 + $0x18] sm:$0xff]
    %v1907 = vld [vmem:[%s1902 + $0x20] sm:$0xff]
    %v1908 = vld [vmem:[%s1902 + $0x28] sm:$0xff]
    %v1909 = vld [vmem:[%s1902 + $0x30] sm:$0xff]
    %v1910 = vld [vmem:[%s1902 + $0x38] sm:$0xff]
    %v1911 = vld [vmem:[%s1902 + $0x40] sm:$0xff]
    %v1912 = vld [vmem:[%s1902 + $0x48] sm:$0xff]
    %v1913 = vld [vmem:[%s1902 + $0x50] sm:$0xff]
    %v1914 = vld [vmem:[%s1902 + $0x58] sm:$0xff]
    %v1915 = vld [vmem:[%s1902 + $0x60] sm:$0xff]
    %v1916 = vld [vmem:[%s1902 + $0x68] sm:$0xff]
    %v1917 = vld [vmem:[%s1902 + $0x70] sm:$0xff]
    %v1918 = vld [vmem:[%s1902 + $0x78] sm:$0xff]
    %v1919 = vld [vmem:[%s1902 + $0x80] sm:$0xff]
    %v1920 = vld [vmem:[%s1902 + $0x88] sm:$0xff]
    %v1921 = vld [vmem:[%s1902 + $0x90] sm:$0xff]
    %v1922 = vld [vmem:[%s1902 + $0x98] sm:$0xff]
    %v1923 = vld [vmem:[%s1902 + $0xa0] sm:$0xff]
    %1924 = vmatprep.subr.mxu0 0.0
    %1925 = vmatpush1.msra.mxu0 %v1918
    %1926 = vmatprep.subr.mxu0 0.0
    %1927 = vmatpush1.msra.mxu0 %v1917
    %1928 = vmatprep.subr.mxu0 0.0
    %1929 = vmatpush1.msra.mxu0 %v1916
    %1930 = vmatprep.subr.mxu0 0.0
    %1931 = vmatpush1.msra.mxu0 %v1915
    %1932 = vmatprep.subr.mxu0 0.0
    %1933 = vmatpush1.msra.mxu0 %v1914
    %1934 = vmatprep.subr.mxu0 0.0
    %1935 = vmatpush1.msra.mxu0 %v1913
    %1936 = vmatprep.subr.mxu0 0.0
    %1937 = vmatpush1.msra.mxu0 %v1912
    %1938 = vmatprep.subr.mxu0 0.0
    %1939 = vmatpush1.msra.mxu0 %v1911
    %1940 = vmatprep.subr.mxu0 0.0
    %1941 = vmatpush1.msra.mxu0 %v1910
    %1942 = vmatprep.subr.mxu0 0.0
    %1943 = vmatpush1.msra.mxu0 %v1909
    %1944 = vmatprep.subr.mxu0 0.0
    %1945 = vmatpush1.msra.mxu0 %v1908
    %1946 = vmatprep.subr.mxu0 0.0
    %1947 = vmatpush1.msra.mxu0 %v1907
    %1948 = vmatprep.subr.mxu0 0.0
    %1949 = vmatpush1.msra.mxu0 %v1906
    %1950 = vmatprep.subr.mxu0 0.0
    %1951 = vmatpush1.msra.mxu0 %v1905
    %1952 = vmatprep.subr.mxu0 0.0
    %1953 = vmatpush1.msra.mxu0 %v1904
    %1954 = vmatprep.subr.mxu0 0.0
    %1955 = vmatpush1.msra.mxu0 %v1903
    %1956 = vmatprep.subr.mxu0 0.0
    %1957 = vmatpush2.msra.mxu0 0.0
    %1958 = vmatprep.subr.mxu0 0.0
    %1959 = vmatpush2.msra.mxu0 0.0
    %1960 = vmatprep.subr.mxu0 0.0
    %1961 = vmatpush2.msra.mxu0 0.0
    %1962 = vmatprep.subr.mxu0 0.0
    %1963 = vmatpush2.msra.mxu0 0.0
    %1964 = vmatprep.subr.mxu0 0.0
    %1965 = vmatpush2.msra.mxu0 0.0
    %1966 = vmatprep.subr.mxu0 0.0
    %1967 = vmatpush2.msra.mxu0 0.0
    %1968 = vmatprep.subr.mxu0 0.0
    %1969 = vmatpush2.msra.mxu0 0.0
    %1970 = vmatprep.subr.mxu0 0.0
    %1971 = vmatpush2.msra.mxu0 0.0
    %1972 = vmatprep.subr.mxu0 0.0
    %1973 = vmatpush2.msra.mxu0 0.0
    %1974 = vmatprep.subr.mxu0 0.0
    %1975 = vmatpush2.msra.mxu0 0.0
    %1976 = vmatprep.subr.mxu0 0.0
    %1977 = vmatpush2.msra.mxu0 0.0
    %1978 = vmatprep.subr.mxu0 0.0
    %1979 = vmatpush2.msra.mxu0 %v1923
    %1980 = vmatprep.subr.mxu0 0.0
    %1981 = vmatpush2.msra.mxu0 %v1922
    %1982 = vmatprep.subr.mxu0 0.0
    %1983 = vmatpush2.msra.mxu0 %v1921
    %1984 = vmatprep.subr.mxu0 0.0
    %1985 = vmatpush2.msra.mxu0 %v1920
    %1986 = vmatprep.subr.mxu0 0.0
    %1987 = vmatpush2.msra.mxu0 %v1919
    %1988 = vmatprep.mubr.f32.mxu0 %v1726
    %1989 = vmatmul.mubr.f32.gmra.mxu0 %v1675
    %v1990 = vpop.f32.mrf.mxu0
    %v1991 = vadd.f32 0.0, %v1990
    %v1992 = vpop.f32.mrf.mxu0
    %1993 = vmatprep.mubr.f32.mxu0 %v1729
    %1994 = vmatmul.mubr.f32.gmra.mxu0 %v1677
    %v1995 = vpop.f32.mrf.mxu0
    %v1996 = vadd.f32 0.0, %v1995
    %v1997 = vpop.f32.mrf.mxu0
    %1998 = vmatprep.mubr.f32.mxu0 %v1732
    %1999 = vmatmul.mubr.f32.gmra.mxu0 %v1679
    %v2000 = vpop.f32.mrf.mxu0
    %v2001 = vadd.f32 0.0, %v2000
    %v2002 = vpop.f32.mrf.mxu0
    %2003 = vmatprep.mubr.f32.mxu0 %v1735
    %2004 = vmatmul.mubr.f32.gmra.mxu0 %v1681
    %v2005 = vpop.f32.mrf.mxu0
    %v2006 = vadd.f32 0.0, %v2005
    %v2007 = vpop.f32.mrf.mxu0
    %2008 = vmatprep.mubr.f32.mxu0 %v1738
    %2009 = vmatmul.mubr.f32.gmra.mxu0 %v1683
    %v2010 = vpop.f32.mrf.mxu0
    %v2011 = vadd.f32 0.0, %v2010
    %v2012 = vpop.f32.mrf.mxu0
    %2013 = vmatprep.mubr.f32.mxu0 %v1741
    %2014 = vmatmul.mubr.f32.gmra.mxu0 %v1685
    %v2015 = vpop.f32.mrf.mxu0
    %v2016 = vadd.f32 0.0, %v2015
    %v2017 = vpop.f32.mrf.mxu0
    %2018 = vmatprep.mubr.f32.mxu0 %v1744
    %2019 = vmatmul.mubr.f32.gmra.mxu0 %v1687
    %v2020 = vpop.f32.mrf.mxu0
    %v2021 = vadd.f32 0.0, %v2020
    %v2022 = vpop.f32.mrf.mxu0
    %2023 = vmatprep.mubr.f32.mxu0 %v1747
    %2024 = vmatmul.mubr.f32.gmra.mxu0 %v1689
    %v2025 = vpop.f32.mrf.mxu0
    %v2026 = vadd.f32 0.0, %v2025
    %v2027 = vpop.f32.mrf.mxu0
    %2028 = vmatprep.mubr.f32.mxu0 %v1750
    %2029 = vmatmul.mubr.f32.gmra.mxu0 %v1691
    %v2030 = vpop.f32.mrf.mxu0
    %v2031 = vadd.f32 0.0, %v2030
    %v2032 = vpop.f32.mrf.mxu0
    %2033 = vmatprep.mubr.f32.mxu0 %v1753
    %2034 = vmatmul.mubr.f32.gmra.mxu0 %v1693
    %v2035 = vpop.f32.mrf.mxu0
    %v2036 = vadd.f32 0.0, %v2035
    %v2037 = vpop.f32.mrf.mxu0
    %2038 = vmatprep.mubr.f32.mxu0 %v1756
    %2039 = vmatmul.mubr.f32.gmra.mxu0 %v1695
    %v2040 = vpop.f32.mrf.mxu0
    %v2041 = vadd.f32 0.0, %v2040
    %v2042 = vpop.f32.mrf.mxu0
    %2043 = vmatprep.mubr.f32.mxu0 %v1759
    %2044 = vmatmul.mubr.f32.gmra.mxu0 %v1697
    %v2045 = vpop.f32.mrf.mxu0
    %v2046 = vadd.f32 0.0, %v2045
    %v2047 = vpop.f32.mrf.mxu0
    %2048 = vmatprep.mubr.f32.mxu0 %v1762
    %2049 = vmatmul.mubr.f32.gmra.mxu0 %v1699
    %v2050 = vpop.f32.mrf.mxu0
    %v2051 = vadd.f32 0.0, %v2050
    %v2052 = vpop.f32.mrf.mxu0
    %2053 = vmatprep.mubr.f32.mxu0 %v1765
    %2054 = vmatmul.mubr.f32.gmra.mxu0 %v1701
    %v2055 = vpop.f32.mrf.mxu0
    %v2056 = vadd.f32 0.0, %v2055
    %v2057 = vpop.f32.mrf.mxu0
    %2058 = vdwg.mxu0
    %v2059 = vmax.f32 %v1834, %v1991
    %v2060 = vmax.f32 %v1839, %v1996
    %v2061 = vmax.f32 %v1844, %v2001
    %v2062 = vmax.f32 %v1849, %v2006
    %v2063 = vmax.f32 %v1854, %v2011
    %v2064 = vmax.f32 %v1859, %v2016
    %v2065 = vmax.f32 %v1864, %v2021
    %v2066 = vmax.f32 %v1869, %v2026
    %v2067 = vmax.f32 %v1874, %v2031
    %v2068 = vmax.f32 %v1879, %v2036
    %v2069 = vmax.f32 %v1884, %v2041
    %v2070 = vmax.f32 %v1889, %v2046
    %v2071 = vmax.f32 %v1894, %v2051
    %v2072 = vmax.f32 %v1899, %v2056
    %v2073 = vld [vmem:[%s4] sm:$0xff]
    %v2074 = vld [vmem:[%s4 + $0x8] sm:$0xff]
    %v2075 = vld [vmem:[%s4 + $0x10] sm:$0xff]
    %v2076 = vld [vmem:[%s4 + $0x18] sm:$0xff]
    %v2077 = vld [vmem:[%s4 + $0x20] sm:$0xff]
    %v2078 = vld [vmem:[%s4 + $0x28] sm:$0xff]
    %v2079 = vld [vmem:[%s4 + $0x30] sm:$0xff]
    %v2080 = vld [vmem:[%s4 + $0x38] sm:$0xff]
    %v2081 = vld [vmem:[%s4 + $0x40] sm:$0xff]
    %v2082 = vld [vmem:[%s4 + $0x48] sm:$0xff]
    %v2083 = vld [vmem:[%s4 + $0x50] sm:$0xff]
    %v2084 = vld [vmem:[%s4 + $0x58] sm:$0xff]
    %v2085 = vld [vmem:[%s4 + $0x60] sm:$0xff]
    %v2086 = vld [vmem:[%s4 + $0x68] sm:$0xff]
    %v2087 = vld [vmem:[%s4 + $0x70] sm:$0xff]
    %v2088 = vld [vmem:[%s4 + $0x78] sm:$0xff]
    %v2089 = vld [vmem:[%s4 + $0x80] sm:$0xff]
    %v2090 = vld [vmem:[%s4 + $0x88] sm:$0xff]
    %v2091 = vld [vmem:[%s4 + $0x90] sm:$0xff]
    %v2092 = vld [vmem:[%s4 + $0x98] sm:$0xff]
    %v2093 = vld [vmem:[%s4 + $0xa0] sm:$0xf]
    %v2094 = vld [vmem:[%s4 + $0xa8] sm:$0xf]
    %s2095 = scalar_lea.vmem %s4, 176
    %v2096 = vld [vmem:[%s2095] sm:$0xff]
    %v2097 = vld [vmem:[%s2095 + $0x8] sm:$0xff]
    %v2098 = vld [vmem:[%s2095 + $0x10] sm:$0xff]
    %v2099 = vld [vmem:[%s2095 + $0x18] sm:$0xff]
    %v2100 = vld [vmem:[%s2095 + $0x20] sm:$0xff]
    %v2101 = vld [vmem:[%s2095 + $0x28] sm:$0xff]
    %v2102 = vld [vmem:[%s2095 + $0x30] sm:$0xff]
    %v2103 = vld [vmem:[%s2095 + $0x38] sm:$0xff]
    %v2104 = vld [vmem:[%s2095 + $0x40] sm:$0xff]
    %v2105 = vld [vmem:[%s2095 + $0x48] sm:$0xff]
    %v2106 = vld [vmem:[%s2095 + $0x50] sm:$0xff]
    %v2107 = vld [vmem:[%s2095 + $0x58] sm:$0xff]
    %v2108 = vld [vmem:[%s2095 + $0x60] sm:$0xff]
    %v2109 = vld [vmem:[%s2095 + $0x68] sm:$0xff]
    %v2110 = vld [vmem:[%s2095 + $0x70] sm:$0xff]
    %v2111 = vld [vmem:[%s2095 + $0x78] sm:$0xff]
    %v2112 = vld [vmem:[%s2095 + $0x80] sm:$0xff]
    %v2113 = vld [vmem:[%s2095 + $0x88] sm:$0xff]
    %v2114 = vld [vmem:[%s2095 + $0x90] sm:$0xff]
    %v2115 = vld [vmem:[%s2095 + $0x98] sm:$0xff]
    %v2116 = vld [vmem:[%s2095 + $0xa0] sm:$0xf]
    %v2117 = vld [vmem:[%s2095 + $0xa8] sm:$0xf]
    %vm2118 = vcmask 687104
    %v2120 = vsel %vm2118, %v2060, 0
    %v2123 = vsel %vm2118, %v2061, 0
    %v2126 = vsel %vm2118, %v2062, 0
    %v2129 = vsel %vm2118, %v2063, 0
    %v2132 = vsel %vm2118, %v2064, 0
    %v2135 = vsel %vm2118, %v2065, 0
    %v2138 = vsel %vm2118, %v2066, 0
    %v2141 = vsel %vm2118, %v2067, 0
    %v2144 = vsel %vm2118, %v2068, 0
    %v2147 = vsel %vm2118, %v2069, 0
    %vm2149 = vcmask 1043456
    %v2151 = vsel %vm2149, %v2116, 0
    %v2154 = vsel %vm2149, %v2117, 0
    %2156 = vmatprep.subr.mxu0 0.0
    %2157 = vmatpush1.msra.mxu0 0.0
    %2158 = vmatprep.subr.mxu0 0.0
    %2159 = vmatpush1.msra.mxu0 0.0
    %2160 = vmatprep.subr.mxu0 0.0
    %2161 = vmatpush1.msra.mxu0 0.0
    %2162 = vmatprep.subr.mxu0 0.0
    %2163 = vmatpush1.msra.mxu0 0.0
    %2164 = vmatprep.subr.mxu0 0.0
    %2165 = vmatpush1.msra.mxu0 0.0
    %2166 = vmatprep.subr.mxu0 %v2154
    %2167 = vmatpush1.msra.mxu0 %v2151
    %2168 = vmatprep.subr.mxu0 %v2115
    %2169 = vmatpush1.msra.mxu0 %v2114
    %2170 = vmatprep.subr.mxu0 %v2113
    %2171 = vmatpush1.msra.mxu0 %v2112
    %2172 = vmatprep.subr.mxu0 %v2111
    %2173 = vmatpush1.msra.mxu0 %v2110
    %2174 = vmatprep.subr.mxu0 %v2109
    %2175 = vmatpush1.msra.mxu0 %v2108
    %2176 = vmatprep.subr.mxu0 %v2107
    %2177 = vmatpush1.msra.mxu0 %v2106
    %2178 = vmatprep.subr.mxu0 %v2105
    %2179 = vmatpush1.msra.mxu0 %v2104
    %2180 = vmatprep.subr.mxu0 %v2103
    %2181 = vmatpush1.msra.mxu0 %v2102
    %2182 = vmatprep.subr.mxu0 %v2101
    %2183 = vmatpush1.msra.mxu0 %v2100
    %2184 = vmatprep.subr.mxu0 %v2099
    %2185 = vmatpush1.msra.mxu0 %v2098
    %2186 = vmatprep.subr.mxu0 %v2097
    %2187 = vmatpush1.msra.mxu0 %v2096
    %2188 = vmatprep.subr.mxu0 0.0
    %2189 = vmatpush2.msra.mxu0 0.0
    %2190 = vmatprep.subr.mxu0 0.0
    %2191 = vmatpush2.msra.mxu0 0.0
    %2192 = vmatprep.subr.mxu0 0.0
    %2193 = vmatpush2.msra.mxu0 0.0
    %2194 = vmatprep.subr.mxu0 0.0
    %2195 = vmatpush2.msra.mxu0 0.0
    %2196 = vmatprep.subr.mxu0 0.0
    %2197 = vmatpush2.msra.mxu0 0.0
    %2198 = vmatprep.subr.mxu0 0.0
    %2199 = vmatpush2.msra.mxu0 0.0
    %2200 = vmatprep.subr.mxu0 0.0
    %2201 = vmatpush2.msra.mxu0 0.0
    %2202 = vmatprep.subr.mxu0 0.0
    %2203 = vmatpush2.msra.mxu0 0.0
    %2204 = vmatprep.subr.mxu0 0.0
    %2205 = vmatpush2.msra.mxu0 0.0
    %2206 = vmatprep.subr.mxu0 0.0
    %2207 = vmatpush2.msra.mxu0 0.0
    %2208 = vmatprep.subr.mxu0 0.0
    %2209 = vmatpush2.msra.mxu0 0.0
    %2210 = vmatprep.subr.mxu0 0.0
    %2211 = vmatpush2.msra.mxu0 0.0
    %2212 = vmatprep.subr.mxu0 0.0
    %2213 = vmatpush2.msra.mxu0 0.0
    %2214 = vmatprep.subr.mxu0 0.0
    %2215 = vmatpush2.msra.mxu0 0.0
    %2216 = vmatprep.subr.mxu0 0.0
    %2217 = vmatpush2.msra.mxu0 0.0
    %2218 = vmatprep.subr.mxu0 0.0
    %2219 = vmatpush2.msra.mxu0 0.0
    %2220 = vmatprep.mubr.f32.mxu0 0.0
    %2221 = vmatmul.mubr.f32.gmra.mxu0 %v2120
    %v2222 = vpop.f32.mrf.mxu0
    %v2223 = vadd.f32 0.0, %v2222
    %v2224 = vpop.f32.mrf.mxu0
    %v2225 = vadd.f32 0.0, %v2224
    %2226 = vmatprep.mubr.f32.mxu0 0.0
    %2227 = vmatmul.mubr.f32.gmra.mxu0 %v2123
    %v2228 = vpop.f32.mrf.mxu0
    %v2229 = vadd.f32 0.0, %v2228
    %v2230 = vpop.f32.mrf.mxu0
    %v2231 = vadd.f32 0.0, %v2230
    %2232 = vmatprep.mubr.f32.mxu0 0.0
    %2233 = vmatmul.mubr.f32.gmra.mxu0 %v2126
    %v2234 = vpop.f32.mrf.mxu0
    %v2235 = vadd.f32 0.0, %v2234
    %v2236 = vpop.f32.mrf.mxu0
    %v2237 = vadd.f32 0.0, %v2236
    %2238 = vmatprep.mubr.f32.mxu0 0.0
    %2239 = vmatmul.mubr.f32.gmra.mxu0 %v2129
    %v2240 = vpop.f32.mrf.mxu0
    %v2241 = vadd.f32 0.0, %v2240
    %v2242 = vpop.f32.mrf.mxu0
    %v2243 = vadd.f32 0.0, %v2242
    %2244 = vmatprep.mubr.f32.mxu0 0.0
    %2245 = vmatmul.mubr.f32.gmra.mxu0 %v2132
    %v2246 = vpop.f32.mrf.mxu0
    %v2247 = vadd.f32 0.0, %v2246
    %v2248 = vpop.f32.mrf.mxu0
    %v2249 = vadd.f32 0.0, %v2248
    %2250 = vmatprep.mubr.f32.mxu0 0.0
    %2251 = vmatmul.mubr.f32.gmra.mxu0 %v2135
    %v2252 = vpop.f32.mrf.mxu0
    %v2253 = vadd.f32 0.0, %v2252
    %v2254 = vpop.f32.mrf.mxu0
    %v2255 = vadd.f32 0.0, %v2254
    %2256 = vmatprep.mubr.f32.mxu0 0.0
    %2257 = vmatmul.mubr.f32.gmra.mxu0 %v2138
    %v2258 = vpop.f32.mrf.mxu0
    %v2259 = vadd.f32 0.0, %v2258
    %v2260 = vpop.f32.mrf.mxu0
    %v2261 = vadd.f32 0.0, %v2260
    %2262 = vmatprep.mubr.f32.mxu0 0.0
    %2263 = vmatmul.mubr.f32.gmra.mxu0 %v2141
    %v2264 = vpop.f32.mrf.mxu0
    %v2265 = vadd.f32 0.0, %v2264
    %v2266 = vpop.f32.mrf.mxu0
    %v2267 = vadd.f32 0.0, %v2266
    %2268 = vmatprep.mubr.f32.mxu0 0.0
    %2269 = vmatmul.mubr.f32.gmra.mxu0 %v2144
    %v2270 = vpop.f32.mrf.mxu0
    %v2271 = vadd.f32 0.0, %v2270
    %v2272 = vpop.f32.mrf.mxu0
    %v2273 = vadd.f32 0.0, %v2272
    %2274 = vmatprep.mubr.f32.mxu0 0.0
    %2275 = vmatmul.mubr.f32.gmra.mxu0 %v2147
    %v2276 = vpop.f32.mrf.mxu0
    %v2277 = vadd.f32 0.0, %v2276
    %v2278 = vpop.f32.mrf.mxu0
    %v2279 = vadd.f32 0.0, %v2278
    %2280 = vdwg.mxu0
    %v2282 = vsel %vm2118, %v2059, 0
    %v2285 = vsel %vm2149, %v2093, 0
    %v2288 = vsel %vm2149, %v2094, 0
    %2290 = vmatprep.subr.mxu0 0.0
    %2291 = vmatpush1.msra.mxu0 0.0
    %2292 = vmatprep.subr.mxu0 0.0
    %2293 = vmatpush1.msra.mxu0 0.0
    %2294 = vmatprep.subr.mxu0 0.0
    %2295 = vmatpush1.msra.mxu0 0.0
    %2296 = vmatprep.subr.mxu0 0.0
    %2297 = vmatpush1.msra.mxu0 0.0
    %2298 = vmatprep.subr.mxu0 0.0
    %2299 = vmatpush1.msra.mxu0 0.0
    %2300 = vmatprep.subr.mxu0 %v2288
    %2301 = vmatpush1.msra.mxu0 %v2285
    %2302 = vmatprep.subr.mxu0 %v2092
    %2303 = vmatpush1.msra.mxu0 %v2091
    %2304 = vmatprep.subr.mxu0 %v2090
    %2305 = vmatpush1.msra.mxu0 %v2089
    %2306 = vmatprep.subr.mxu0 %v2088
    %2307 = vmatpush1.msra.mxu0 %v2087
    %2308 = vmatprep.subr.mxu0 %v2086
    %2309 = vmatpush1.msra.mxu0 %v2085
    %2310 = vmatprep.subr.mxu0 %v2084
    %2311 = vmatpush1.msra.mxu0 %v2083
    %2312 = vmatprep.subr.mxu0 %v2082
    %2313 = vmatpush1.msra.mxu0 %v2081
    %2314 = vmatprep.subr.mxu0 %v2080
    %2315 = vmatpush1.msra.mxu0 %v2079
    %2316 = vmatprep.subr.mxu0 %v2078
    %2317 = vmatpush1.msra.mxu0 %v2077
    %2318 = vmatprep.subr.mxu0 %v2076
    %2319 = vmatpush1.msra.mxu0 %v2075
    %2320 = vmatprep.subr.mxu0 %v2074
    %2321 = vmatpush1.msra.mxu0 %v2073
    %2322 = vmatprep.subr.mxu0 0.0
    %2323 = vmatpush2.msra.mxu0 0.0
    %2324 = vmatprep.subr.mxu0 0.0
    %2325 = vmatpush2.msra.mxu0 0.0
    %2326 = vmatprep.subr.mxu0 0.0
    %2327 = vmatpush2.msra.mxu0 0.0
    %2328 = vmatprep.subr.mxu0 0.0
    %2329 = vmatpush2.msra.mxu0 0.0
    %2330 = vmatprep.subr.mxu0 0.0
    %2331 = vmatpush2.msra.mxu0 0.0
    %2332 = vmatprep.subr.mxu0 0.0
    %2333 = vmatpush2.msra.mxu0 0.0
    %2334 = vmatprep.subr.mxu0 0.0
    %2335 = vmatpush2.msra.mxu0 0.0
    %2336 = vmatprep.subr.mxu0 0.0
    %2337 = vmatpush2.msra.mxu0 0.0
    %2338 = vmatprep.subr.mxu0 0.0
    %2339 = vmatpush2.msra.mxu0 0.0
    %2340 = vmatprep.subr.mxu0 0.0
    %2341 = vmatpush2.msra.mxu0 0.0
    %2342 = vmatprep.subr.mxu0 0.0
    %2343 = vmatpush2.msra.mxu0 0.0
    %2344 = vmatprep.subr.mxu0 0.0
    %2345 = vmatpush2.msra.mxu0 0.0
    %2346 = vmatprep.subr.mxu0 0.0
    %2347 = vmatpush2.msra.mxu0 0.0
    %2348 = vmatprep.subr.mxu0 0.0
    %2349 = vmatpush2.msra.mxu0 0.0
    %2350 = vmatprep.subr.mxu0 0.0
    %2351 = vmatpush2.msra.mxu0 0.0
    %2352 = vmatprep.subr.mxu0 0.0
    %2353 = vmatpush2.msra.mxu0 0.0
    %2354 = vmatprep.mubr.f32.mxu0 0.0
    %2355 = vmatmul.mubr.f32.gmra.mxu0 %v2282
    %v2356 = vpop.f32.mrf.mxu0
    %v2357 = vadd.f32 %v2223, %v2356
    %v2358 = vpop.f32.mrf.mxu0
    %v2359 = vadd.f32 %v2225, %v2358
    %2360 = vmatprep.mubr.f32.mxu0 0.0
    %2361 = vmatmul.mubr.f32.gmra.mxu0 %v2120
    %v2362 = vpop.f32.mrf.mxu0
    %v2363 = vadd.f32 %v2229, %v2362
    %v2364 = vpop.f32.mrf.mxu0
    %v2365 = vadd.f32 %v2231, %v2364
    %2366 = vmatprep.mubr.f32.mxu0 0.0
    %2367 = vmatmul.mubr.f32.gmra.mxu0 %v2123
    %v2368 = vpop.f32.mrf.mxu0
    %v2369 = vadd.f32 %v2235, %v2368
    %v2370 = vpop.f32.mrf.mxu0
    %v2371 = vadd.f32 %v2237, %v2370
    %2372 = vmatprep.mubr.f32.mxu0 0.0
    %2373 = vmatmul.mubr.f32.gmra.mxu0 %v2126
    %v2374 = vpop.f32.mrf.mxu0
    %v2375 = vadd.f32 %v2241, %v2374
    %v2376 = vpop.f32.mrf.mxu0
    %v2377 = vadd.f32 %v2243, %v2376
    %2378 = vmatprep.mubr.f32.mxu0 0.0
    %2379 = vmatmul.mubr.f32.gmra.mxu0 %v2129
    %v2380 = vpop.f32.mrf.mxu0
    %v2381 = vadd.f32 %v2247, %v2380
    %v2382 = vpop.f32.mrf.mxu0
    %v2383 = vadd.f32 %v2249, %v2382
    %2384 = vmatprep.mubr.f32.mxu0 0.0
    %2385 = vmatmul.mubr.f32.gmra.mxu0 %v2132
    %v2386 = vpop.f32.mrf.mxu0
    %v2387 = vadd.f32 %v2253, %v2386
    %v2388 = vpop.f32.mrf.mxu0
    %v2389 = vadd.f32 %v2255, %v2388
    %2390 = vmatprep.mubr.f32.mxu0 0.0
    %2391 = vmatmul.mubr.f32.gmra.mxu0 %v2135
    %v2392 = vpop.f32.mrf.mxu0
    %v2393 = vadd.f32 %v2259, %v2392
    %v2394 = vpop.f32.mrf.mxu0
    %v2395 = vadd.f32 %v2261, %v2394
    %2396 = vmatprep.mubr.f32.mxu0 0.0
    %2397 = vmatmul.mubr.f32.gmra.mxu0 %v2138
    %v2398 = vpop.f32.mrf.mxu0
    %v2399 = vadd.f32 %v2265, %v2398
    %v2400 = vpop.f32.mrf.mxu0
    %v2401 = vadd.f32 %v2267, %v2400
    %2402 = vmatprep.mubr.f32.mxu0 0.0
    %2403 = vmatmul.mubr.f32.gmra.mxu0 %v2141
    %v2404 = vpop.f32.mrf.mxu0
    %v2405 = vadd.f32 %v2271, %v2404
    %v2406 = vpop.f32.mrf.mxu0
    %v2407 = vadd.f32 %v2273, %v2406
    %2408 = vmatprep.mubr.f32.mxu0 0.0
    %2409 = vmatmul.mubr.f32.gmra.mxu0 %v2144
    %v2410 = vpop.f32.mrf.mxu0
    %v2411 = vadd.f32 %v2277, %v2410
    %v2412 = vpop.f32.mrf.mxu0
    %v2413 = vadd.f32 %v2279, %v2412
    %2414 = vdwg.mxu0
    %s2415 = scalar_lea.vmem %s4, 352
    %v2416 = vld [vmem:[%s2415] sm:$0xff]
    %v2417 = vld [vmem:[%s2415 + $0x8] sm:$0xff]
    %v2418 = vld [vmem:[%s2415 + $0x10] sm:$0xff]
    %v2419 = vld [vmem:[%s2415 + $0x18] sm:$0xff]
    %v2420 = vld [vmem:[%s2415 + $0x20] sm:$0xff]
    %v2421 = vld [vmem:[%s2415 + $0x28] sm:$0xff]
    %v2422 = vld [vmem:[%s2415 + $0x30] sm:$0xff]
    %v2423 = vld [vmem:[%s2415 + $0x38] sm:$0xff]
    %v2424 = vld [vmem:[%s2415 + $0x40] sm:$0xff]
    %v2425 = vld [vmem:[%s2415 + $0x48] sm:$0xff]
    %v2426 = vld [vmem:[%s2415 + $0x50] sm:$0xff]
    %v2427 = vld [vmem:[%s2415 + $0x58] sm:$0xff]
    %v2428 = vld [vmem:[%s2415 + $0x60] sm:$0xff]
    %v2429 = vld [vmem:[%s2415 + $0x68] sm:$0xff]
    %v2430 = vld [vmem:[%s2415 + $0x70] sm:$0xff]
    %v2431 = vld [vmem:[%s2415 + $0x78] sm:$0xff]
    %v2432 = vld [vmem:[%s2415 + $0x80] sm:$0xff]
    %v2433 = vld [vmem:[%s2415 + $0x88] sm:$0xff]
    %v2434 = vld [vmem:[%s2415 + $0x90] sm:$0xff]
    %v2435 = vld [vmem:[%s2415 + $0x98] sm:$0xff]
    %v2436 = vld [vmem:[%s2415 + $0xa0] sm:$0xf]
    %v2437 = vld [vmem:[%s2415 + $0xa8] sm:$0xf]
    %v2439 = vsel %vm2118, %v2070, 0
    %v2442 = vsel %vm2149, %v2436, 0
    %v2445 = vsel %vm2149, %v2437, 0
    %2447 = vmatprep.subr.mxu0 0.0
    %2448 = vmatpush1.msra.mxu0 0.0
    %2449 = vmatprep.subr.mxu0 0.0
    %2450 = vmatpush1.msra.mxu0 0.0
    %2451 = vmatprep.subr.mxu0 0.0
    %2452 = vmatpush1.msra.mxu0 0.0
    %2453 = vmatprep.subr.mxu0 0.0
    %2454 = vmatpush1.msra.mxu0 0.0
    %2455 = vmatprep.subr.mxu0 0.0
    %2456 = vmatpush1.msra.mxu0 0.0
    %2457 = vmatprep.subr.mxu0 %v2445
    %2458 = vmatpush1.msra.mxu0 %v2442
    %2459 = vmatprep.subr.mxu0 %v2435
    %2460 = vmatpush1.msra.mxu0 %v2434
    %2461 = vmatprep.subr.mxu0 %v2433
    %2462 = vmatpush1.msra.mxu0 %v2432
    %2463 = vmatprep.subr.mxu0 %v2431
    %2464 = vmatpush1.msra.mxu0 %v2430
    %2465 = vmatprep.subr.mxu0 %v2429
    %2466 = vmatpush1.msra.mxu0 %v2428
    %2467 = vmatprep.subr.mxu0 %v2427
    %2468 = vmatpush1.msra.mxu0 %v2426
    %2469 = vmatprep.subr.mxu0 %v2425
    %2470 = vmatpush1.msra.mxu0 %v2424
    %2471 = vmatprep.subr.mxu0 %v2423
    %2472 = vmatpush1.msra.mxu0 %v2422
    %2473 = vmatprep.subr.mxu0 %v2421
    %2474 = vmatpush1.msra.mxu0 %v2420
    %2475 = vmatprep.subr.mxu0 %v2419
    %2476 = vmatpush1.msra.mxu0 %v2418
    %2477 = vmatprep.subr.mxu0 %v2417
    %2478 = vmatpush1.msra.mxu0 %v2416
    %2479 = vmatprep.subr.mxu0 0.0
    %2480 = vmatpush2.msra.mxu0 0.0
    %2481 = vmatprep.subr.mxu0 0.0
    %2482 = vmatpush2.msra.mxu0 0.0
    %2483 = vmatprep.subr.mxu0 0.0
    %2484 = vmatpush2.msra.mxu0 0.0
    %2485 = vmatprep.subr.mxu0 0.0
    %2486 = vmatpush2.msra.mxu0 0.0
    %2487 = vmatprep.subr.mxu0 0.0
    %2488 = vmatpush2.msra.mxu0 0.0
    %2489 = vmatprep.subr.mxu0 0.0
    %2490 = vmatpush2.msra.mxu0 0.0
    %2491 = vmatprep.subr.mxu0 0.0
    %2492 = vmatpush2.msra.mxu0 0.0
    %2493 = vmatprep.subr.mxu0 0.0
    %2494 = vmatpush2.msra.mxu0 0.0
    %2495 = vmatprep.subr.mxu0 0.0
    %2496 = vmatpush2.msra.mxu0 0.0
    %2497 = vmatprep.subr.mxu0 0.0
    %2498 = vmatpush2.msra.mxu0 0.0
    %2499 = vmatprep.subr.mxu0 0.0
    %2500 = vmatpush2.msra.mxu0 0.0
    %2501 = vmatprep.subr.mxu0 0.0
    %2502 = vmatpush2.msra.mxu0 0.0
    %2503 = vmatprep.subr.mxu0 0.0
    %2504 = vmatpush2.msra.mxu0 0.0
    %2505 = vmatprep.subr.mxu0 0.0
    %2506 = vmatpush2.msra.mxu0 0.0
    %2507 = vmatprep.subr.mxu0 0.0
    %2508 = vmatpush2.msra.mxu0 0.0
    %2509 = vmatprep.subr.mxu0 0.0
    %2510 = vmatpush2.msra.mxu0 0.0
    %2511 = vmatprep.mubr.f32.mxu0 0.0
    %2512 = vmatmul.mubr.f32.gmra.mxu0 %v2123
    %v2513 = vpop.f32.mrf.mxu0
    %v2514 = vadd.f32 0.0, %v2513
    %v2515 = vpop.f32.mrf.mxu0
    %v2516 = vadd.f32 0.0, %v2515
    %2517 = vmatprep.mubr.f32.mxu0 0.0
    %2518 = vmatmul.mubr.f32.gmra.mxu0 %v2126
    %v2519 = vpop.f32.mrf.mxu0
    %v2520 = vadd.f32 0.0, %v2519
    %v2521 = vpop.f32.mrf.mxu0
    %v2522 = vadd.f32 0.0, %v2521
    %2523 = vmatprep.mubr.f32.mxu0 0.0
    %2524 = vmatmul.mubr.f32.gmra.mxu0 %v2129
    %v2525 = vpop.f32.mrf.mxu0
    %v2526 = vadd.f32 0.0, %v2525
    %v2527 = vpop.f32.mrf.mxu0
    %v2528 = vadd.f32 0.0, %v2527
    %2529 = vmatprep.mubr.f32.mxu0 0.0
    %2530 = vmatmul.mubr.f32.gmra.mxu0 %v2132
    %v2531 = vpop.f32.mrf.mxu0
    %v2532 = vadd.f32 0.0, %v2531
    %v2533 = vpop.f32.mrf.mxu0
    %v2534 = vadd.f32 0.0, %v2533
    %2535 = vmatprep.mubr.f32.mxu0 0.0
    %2536 = vmatmul.mubr.f32.gmra.mxu0 %v2135
    %v2537 = vpop.f32.mrf.mxu0
    %v2538 = vadd.f32 0.0, %v2537
    %v2539 = vpop.f32.mrf.mxu0
    %v2540 = vadd.f32 0.0, %v2539
    %2541 = vmatprep.mubr.f32.mxu0 0.0
    %2542 = vmatmul.mubr.f32.gmra.mxu0 %v2138
    %v2543 = vpop.f32.mrf.mxu0
    %v2544 = vadd.f32 0.0, %v2543
    %v2545 = vpop.f32.mrf.mxu0
    %v2546 = vadd.f32 0.0, %v2545
    %2547 = vmatprep.mubr.f32.mxu0 0.0
    %2548 = vmatmul.mubr.f32.gmra.mxu0 %v2141
    %v2549 = vpop.f32.mrf.mxu0
    %v2550 = vadd.f32 0.0, %v2549
    %v2551 = vpop.f32.mrf.mxu0
    %v2552 = vadd.f32 0.0, %v2551
    %2553 = vmatprep.mubr.f32.mxu0 0.0
    %2554 = vmatmul.mubr.f32.gmra.mxu0 %v2144
    %v2555 = vpop.f32.mrf.mxu0
    %v2556 = vadd.f32 0.0, %v2555
    %v2557 = vpop.f32.mrf.mxu0
    %v2558 = vadd.f32 0.0, %v2557
    %2559 = vmatprep.mubr.f32.mxu0 0.0
    %2560 = vmatmul.mubr.f32.gmra.mxu0 %v2147
    %v2561 = vpop.f32.mrf.mxu0
    %v2562 = vadd.f32 0.0, %v2561
    %v2563 = vpop.f32.mrf.mxu0
    %v2564 = vadd.f32 0.0, %v2563
    %2565 = vmatprep.mubr.f32.mxu0 0.0
    %2566 = vmatmul.mubr.f32.gmra.mxu0 %v2439
    %v2567 = vpop.f32.mrf.mxu0
    %v2568 = vadd.f32 0.0, %v2567
    %v2569 = vpop.f32.mrf.mxu0
    %v2570 = vadd.f32 0.0, %v2569
    %2571 = vdwg.mxu0
    %v2572 = vadd.f32 %v2357, %v2514
    %v2573 = vadd.f32 %v2359, %v2516
    %v2574 = vadd.f32 %v2363, %v2520
    %v2575 = vadd.f32 %v2365, %v2522
    %v2576 = vadd.f32 %v2369, %v2526
    %v2577 = vadd.f32 %v2371, %v2528
    %v2578 = vadd.f32 %v2375, %v2532
    %v2579 = vadd.f32 %v2377, %v2534
    %v2580 = vadd.f32 %v2381, %v2538
    %v2581 = vadd.f32 %v2383, %v2540
    %v2582 = vadd.f32 %v2387, %v2544
    %v2583 = vadd.f32 %v2389, %v2546
    %v2584 = vadd.f32 %v2393, %v2550
    %v2585 = vadd.f32 %v2395, %v2552
    %v2586 = vadd.f32 %v2399, %v2556
    %v2587 = vadd.f32 %v2401, %v2558
    %v2588 = vadd.f32 %v2405, %v2562
    %v2589 = vadd.f32 %v2407, %v2564
    %v2590 = vadd.f32 %v2411, %v2568
    %v2591 = vadd.f32 %v2413, %v2570
    %s2592 = scalar_lea.vmem %s4, 528
    %v2593 = vld [vmem:[%s2592] sm:$0xff]
    %v2594 = vld [vmem:[%s2592 + $0x8] sm:$0xff]
    %v2595 = vld [vmem:[%s2592 + $0x10] sm:$0xff]
    %v2596 = vld [vmem:[%s2592 + $0x18] sm:$0xff]
    %v2597 = vld [vmem:[%s2592 + $0x20] sm:$0xff]
    %v2598 = vld [vmem:[%s2592 + $0x28] sm:$0xff]
    %v2599 = vld [vmem:[%s2592 + $0x30] sm:$0xff]
    %v2600 = vld [vmem:[%s2592 + $0x38] sm:$0xff]
    %v2601 = vld [vmem:[%s2592 + $0x40] sm:$0xff]
    %v2602 = vld [vmem:[%s2592 + $0x48] sm:$0xff]
    %v2603 = vld [vmem:[%s2592 + $0x50] sm:$0xff]
    %v2604 = vld [vmem:[%s2592 + $0x58] sm:$0xff]
    %v2605 = vld [vmem:[%s2592 + $0x60] sm:$0xff]
    %v2606 = vld [vmem:[%s2592 + $0x68] sm:$0xff]
    %v2607 = vld [vmem:[%s2592 + $0x70] sm:$0xff]
    %v2608 = vld [vmem:[%s2592 + $0x78] sm:$0xff]
    %v2609 = vld [vmem:[%s2592 + $0x80] sm:$0xff]
    %v2610 = vld [vmem:[%s2592 + $0x88] sm:$0xff]
    %v2611 = vld [vmem:[%s2592 + $0x90] sm:$0xff]
    %v2612 = vld [vmem:[%s2592 + $0x98] sm:$0xff]
    %v2613 = vld [vmem:[%s2592 + $0xa0] sm:$0xf]
    %v2614 = vld [vmem:[%s2592 + $0xa8] sm:$0xf]
    %v2616 = vsel %vm2118, %v2071, 0
    %v2619 = vsel %vm2149, %v2613, 0
    %v2622 = vsel %vm2149, %v2614, 0
    %2624 = vmatprep.subr.mxu0 0.0
    %2625 = vmatpush1.msra.mxu0 0.0
    %2626 = vmatprep.subr.mxu0 0.0
    %2627 = vmatpush1.msra.mxu0 0.0
    %2628 = vmatprep.subr.mxu0 0.0
    %2629 = vmatpush1.msra.mxu0 0.0
    %2630 = vmatprep.subr.mxu0 0.0
    %2631 = vmatpush1.msra.mxu0 0.0
    %2632 = vmatprep.subr.mxu0 0.0
    %2633 = vmatpush1.msra.mxu0 0.0
    %2634 = vmatprep.subr.mxu0 %v2622
    %2635 = vmatpush1.msra.mxu0 %v2619
    %2636 = vmatprep.subr.mxu0 %v2612
    %2637 = vmatpush1.msra.mxu0 %v2611
    %2638 = vmatprep.subr.mxu0 %v2610
    %2639 = vmatpush1.msra.mxu0 %v2609
    %2640 = vmatprep.subr.mxu0 %v2608
    %2641 = vmatpush1.msra.mxu0 %v2607
    %2642 = vmatprep.subr.mxu0 %v2606
    %2643 = vmatpush1.msra.mxu0 %v2605
    %2644 = vmatprep.subr.mxu0 %v2604
    %2645 = vmatpush1.msra.mxu0 %v2603
    %2646 = vmatprep.subr.mxu0 %v2602
    %2647 = vmatpush1.msra.mxu0 %v2601
    %2648 = vmatprep.subr.mxu0 %v2600
    %2649 = vmatpush1.msra.mxu0 %v2599
    %2650 = vmatprep.subr.mxu0 %v2598
    %2651 = vmatpush1.msra.mxu0 %v2597
    %2652 = vmatprep.subr.mxu0 %v2596
    %2653 = vmatpush1.msra.mxu0 %v2595
    %2654 = vmatprep.subr.mxu0 %v2594
    %2655 = vmatpush1.msra.mxu0 %v2593
    %2656 = vmatprep.subr.mxu0 0.0
    %2657 = vmatpush2.msra.mxu0 0.0
    %2658 = vmatprep.subr.mxu0 0.0
    %2659 = vmatpush2.msra.mxu0 0.0
    %2660 = vmatprep.subr.mxu0 0.0
    %2661 = vmatpush2.msra.mxu0 0.0
    %2662 = vmatprep.subr.mxu0 0.0
    %2663 = vmatpush2.msra.mxu0 0.0
    %2664 = vmatprep.subr.mxu0 0.0
    %2665 = vmatpush2.msra.mxu0 0.0
    %2666 = vmatprep.subr.mxu0 0.0
    %2667 = vmatpush2.msra.mxu0 0.0
    %2668 = vmatprep.subr.mxu0 0.0
    %2669 = vmatpush2.msra.mxu0 0.0
    %2670 = vmatprep.subr.mxu0 0.0
    %2671 = vmatpush2.msra.mxu0 0.0
    %2672 = vmatprep.subr.mxu0 0.0
    %2673 = vmatpush2.msra.mxu0 0.0
    %2674 = vmatprep.subr.mxu0 0.0
    %2675 = vmatpush2.msra.mxu0 0.0
    %2676 = vmatprep.subr.mxu0 0.0
    %2677 = vmatpush2.msra.mxu0 0.0
    %2678 = vmatprep.subr.mxu0 0.0
    %2679 = vmatpush2.msra.mxu0 0.0
    %2680 = vmatprep.subr.mxu0 0.0
    %2681 = vmatpush2.msra.mxu0 0.0
    %2682 = vmatprep.subr.mxu0 0.0
    %2683 = vmatpush2.msra.mxu0 0.0
    %2684 = vmatprep.subr.mxu0 0.0
    %2685 = vmatpush2.msra.mxu0 0.0
    %2686 = vmatprep.subr.mxu0 0.0
    %2687 = vmatpush2.msra.mxu0 0.0
    %2688 = vmatprep.mubr.f32.mxu0 0.0
    %2689 = vmatmul.mubr.f32.gmra.mxu0 %v2126
    %v2690 = vpop.f32.mrf.mxu0
    %v2691 = vadd.f32 0.0, %v2690
    %v2692 = vpop.f32.mrf.mxu0
    %v2693 = vadd.f32 0.0, %v2692
    %2694 = vmatprep.mubr.f32.mxu0 0.0
    %2695 = vmatmul.mubr.f32.gmra.mxu0 %v2129
    %v2696 = vpop.f32.mrf.mxu0
    %v2697 = vadd.f32 0.0, %v2696
    %v2698 = vpop.f32.mrf.mxu0
    %v2699 = vadd.f32 0.0, %v2698
    %2700 = vmatprep.mubr.f32.mxu0 0.0
    %2701 = vmatmul.mubr.f32.gmra.mxu0 %v2132
    %v2702 = vpop.f32.mrf.mxu0
    %v2703 = vadd.f32 0.0, %v2702
    %v2704 = vpop.f32.mrf.mxu0
    %v2705 = vadd.f32 0.0, %v2704
    %2706 = vmatprep.mubr.f32.mxu0 0.0
    %2707 = vmatmul.mubr.f32.gmra.mxu0 %v2135
    %v2708 = vpop.f32.mrf.mxu0
    %v2709 = vadd.f32 0.0, %v2708
    %v2710 = vpop.f32.mrf.mxu0
    %v2711 = vadd.f32 0.0, %v2710
    %2712 = vmatprep.mubr.f32.mxu0 0.0
    %2713 = vmatmul.mubr.f32.gmra.mxu0 %v2138
    %v2714 = vpop.f32.mrf.mxu0
    %v2715 = vadd.f32 0.0, %v2714
    %v2716 = vpop.f32.mrf.mxu0
    %v2717 = vadd.f32 0.0, %v2716
    %2718 = vmatprep.mubr.f32.mxu0 0.0
    %2719 = vmatmul.mubr.f32.gmra.mxu0 %v2141
    %v2720 = vpop.f32.mrf.mxu0
    %v2721 = vadd.f32 0.0, %v2720
    %v2722 = vpop.f32.mrf.mxu0
    %v2723 = vadd.f32 0.0, %v2722
    %2724 = vmatprep.mubr.f32.mxu0 0.0
    %2725 = vmatmul.mubr.f32.gmra.mxu0 %v2144
    %v2726 = vpop.f32.mrf.mxu0
    %v2727 = vadd.f32 0.0, %v2726
    %v2728 = vpop.f32.mrf.mxu0
    %v2729 = vadd.f32 0.0, %v2728
    %2730 = vmatprep.mubr.f32.mxu0 0.0
    %2731 = vmatmul.mubr.f32.gmra.mxu0 %v2147
    %v2732 = vpop.f32.mrf.mxu0
    %v2733 = vadd.f32 0.0, %v2732
    %v2734 = vpop.f32.mrf.mxu0
    %v2735 = vadd.f32 0.0, %v2734
    %2736 = vmatprep.mubr.f32.mxu0 0.0
    %2737 = vmatmul.mubr.f32.gmra.mxu0 %v2439
    %v2738 = vpop.f32.mrf.mxu0
    %v2739 = vadd.f32 0.0, %v2738
    %v2740 = vpop.f32.mrf.mxu0
    %v2741 = vadd.f32 0.0, %v2740
    %2742 = vmatprep.mubr.f32.mxu0 0.0
    %2743 = vmatmul.mubr.f32.gmra.mxu0 %v2616
    %v2744 = vpop.f32.mrf.mxu0
    %v2745 = vadd.f32 0.0, %v2744
    %v2746 = vpop.f32.mrf.mxu0
    %v2747 = vadd.f32 0.0, %v2746
    %2748 = vdwg.mxu0
    %v2749 = vadd.f32 %v2572, %v2691
    %v2750 = vadd.f32 %v2573, %v2693
    %v2751 = vadd.f32 %v2574, %v2697
    %v2752 = vadd.f32 %v2575, %v2699
    %v2753 = vadd.f32 %v2576, %v2703
    %v2754 = vadd.f32 %v2577, %v2705
    %v2755 = vadd.f32 %v2578, %v2709
    %v2756 = vadd.f32 %v2579, %v2711
    %v2757 = vadd.f32 %v2580, %v2715
    %v2758 = vadd.f32 %v2581, %v2717
    %v2759 = vadd.f32 %v2582, %v2721
    %v2760 = vadd.f32 %v2583, %v2723
    %v2761 = vadd.f32 %v2584, %v2727
    %v2762 = vadd.f32 %v2585, %v2729
    %v2763 = vadd.f32 %v2586, %v2733
    %v2764 = vadd.f32 %v2587, %v2735
    %v2765 = vadd.f32 %v2588, %v2739
    %v2766 = vadd.f32 %v2589, %v2741
    %v2767 = vadd.f32 %v2590, %v2745
    %v2768 = vadd.f32 %v2591, %v2747
    %s2769 = scalar_lea.vmem %s4, 704
    %v2770 = vld [vmem:[%s2769] sm:$0xff]
    %v2771 = vld [vmem:[%s2769 + $0x8] sm:$0xff]
    %v2772 = vld [vmem:[%s2769 + $0x10] sm:$0xff]
    %v2773 = vld [vmem:[%s2769 + $0x18] sm:$0xff]
    %v2774 = vld [vmem:[%s2769 + $0x20] sm:$0xff]
    %v2775 = vld [vmem:[%s2769 + $0x28] sm:$0xff]
    %v2776 = vld [vmem:[%s2769 + $0x30] sm:$0xff]
    %v2777 = vld [vmem:[%s2769 + $0x38] sm:$0xff]
    %v2778 = vld [vmem:[%s2769 + $0x40] sm:$0xff]
    %v2779 = vld [vmem:[%s2769 + $0x48] sm:$0xff]
    %v2780 = vld [vmem:[%s2769 + $0x50] sm:$0xff]
    %v2781 = vld [vmem:[%s2769 + $0x58] sm:$0xff]
    %v2782 = vld [vmem:[%s2769 + $0x60] sm:$0xff]
    %v2783 = vld [vmem:[%s2769 + $0x68] sm:$0xff]
    %v2784 = vld [vmem:[%s2769 + $0x70] sm:$0xff]
    %v2785 = vld [vmem:[%s2769 + $0x78] sm:$0xff]
    %v2786 = vld [vmem:[%s2769 + $0x80] sm:$0xff]
    %v2787 = vld [vmem:[%s2769 + $0x88] sm:$0xff]
    %v2788 = vld [vmem:[%s2769 + $0x90] sm:$0xff]
    %v2789 = vld [vmem:[%s2769 + $0x98] sm:$0xff]
    %v2790 = vld [vmem:[%s2769 + $0xa0] sm:$0xf]
    %v2791 = vld [vmem:[%s2769 + $0xa8] sm:$0xf]
    %v2793 = vsel %vm2118, %v2072, 0
    %v2796 = vsel %vm2149, %v2790, 0
    %v2799 = vsel %vm2149, %v2791, 0
    %2801 = vmatprep.subr.mxu0 0.0
    %2802 = vmatpush1.msra.mxu0 0.0
    %2803 = vmatprep.subr.mxu0 0.0
    %2804 = vmatpush1.msra.mxu0 0.0
    %2805 = vmatprep.subr.mxu0 0.0
    %2806 = vmatpush1.msra.mxu0 0.0
    %2807 = vmatprep.subr.mxu0 0.0
    %2808 = vmatpush1.msra.mxu0 0.0
    %2809 = vmatprep.subr.mxu0 0.0
    %2810 = vmatpush1.msra.mxu0 0.0
    %2811 = vmatprep.subr.mxu0 %v2799
    %2812 = vmatpush1.msra.mxu0 %v2796
    %2813 = vmatprep.subr.mxu0 %v2789
    %2814 = vmatpush1.msra.mxu0 %v2788
    %2815 = vmatprep.subr.mxu0 %v2787
    %2816 = vmatpush1.msra.mxu0 %v2786
    %2817 = vmatprep.subr.mxu0 %v2785
    %2818 = vmatpush1.msra.mxu0 %v2784
    %2819 = vmatprep.subr.mxu0 %v2783
    %2820 = vmatpush1.msra.mxu0 %v2782
    %2821 = vmatprep.subr.mxu0 %v2781
    %2822 = vmatpush1.msra.mxu0 %v2780
    %2823 = vmatprep.subr.mxu0 %v2779
    %2824 = vmatpush1.msra.mxu0 %v2778
    %2825 = vmatprep.subr.mxu0 %v2777
    %2826 = vmatpush1.msra.mxu0 %v2776
    %2827 = vmatprep.subr.mxu0 %v2775
    %2828 = vmatpush1.msra.mxu0 %v2774
    %2829 = vmatprep.subr.mxu0 %v2773
    %2830 = vmatpush1.msra.mxu0 %v2772
    %2831 = vmatprep.subr.mxu0 %v2771
    %2832 = vmatpush1.msra.mxu0 %v2770
    %2833 = vmatprep.subr.mxu0 0.0
    %2834 = vmatpush2.msra.mxu0 0.0
    %2835 = vmatprep.subr.mxu0 0.0
    %2836 = vmatpush2.msra.mxu0 0.0
    %2837 = vmatprep.subr.mxu0 0.0
    %2838 = vmatpush2.msra.mxu0 0.0
    %2839 = vmatprep.subr.mxu0 0.0
    %2840 = vmatpush2.msra.mxu0 0.0
    %2841 = vmatprep.subr.mxu0 0.0
    %2842 = vmatpush2.msra.mxu0 0.0
    %2843 = vmatprep.subr.mxu0 0.0
    %2844 = vmatpush2.msra.mxu0 0.0
    %2845 = vmatprep.subr.mxu0 0.0
    %2846 = vmatpush2.msra.mxu0 0.0
    %2847 = vmatprep.subr.mxu0 0.0
    %2848 = vmatpush2.msra.mxu0 0.0
    %2849 = vmatprep.subr.mxu0 0.0
    %2850 = vmatpush2.msra.mxu0 0.0
    %2851 = vmatprep.subr.mxu0 0.0
    %2852 = vmatpush2.msra.mxu0 0.0
    %2853 = vmatprep.subr.mxu0 0.0
    %2854 = vmatpush2.msra.mxu0 0.0
    %2855 = vmatprep.subr.mxu0 0.0
    %2856 = vmatpush2.msra.mxu0 0.0
    %2857 = vmatprep.subr.mxu0 0.0
    %2858 = vmatpush2.msra.mxu0 0.0
    %2859 = vmatprep.subr.mxu0 0.0
    %2860 = vmatpush2.msra.mxu0 0.0
    %2861 = vmatprep.subr.mxu0 0.0
    %2862 = vmatpush2.msra.mxu0 0.0
    %2863 = vmatprep.subr.mxu0 0.0
    %2864 = vmatpush2.msra.mxu0 0.0
    %2865 = vmatprep.mubr.f32.mxu0 0.0
    %2866 = vmatmul.mubr.f32.gmra.mxu0 %v2129
    %v2867 = vpop.f32.mrf.mxu0
    %v2868 = vadd.f32 0.0, %v2867
    %v2869 = vpop.f32.mrf.mxu0
    %v2870 = vadd.f32 0.0, %v2869
    %2871 = vmatprep.mubr.f32.mxu0 0.0
    %2872 = vmatmul.mubr.f32.gmra.mxu0 %v2132
    %v2873 = vpop.f32.mrf.mxu0
    %v2874 = vadd.f32 0.0, %v2873
    %v2875 = vpop.f32.mrf.mxu0
    %v2876 = vadd.f32 0.0, %v2875
    %2877 = vmatprep.mubr.f32.mxu0 0.0
    %2878 = vmatmul.mubr.f32.gmra.mxu0 %v2135
    %v2879 = vpop.f32.mrf.mxu0
    %v2880 = vadd.f32 0.0, %v2879
    %v2881 = vpop.f32.mrf.mxu0
    %v2882 = vadd.f32 0.0, %v2881
    %2883 = vmatprep.mubr.f32.mxu0 0.0
    %2884 = vmatmul.mubr.f32.gmra.mxu0 %v2138
    %v2885 = vpop.f32.mrf.mxu0
    %v2886 = vadd.f32 0.0, %v2885
    %v2887 = vpop.f32.mrf.mxu0
    %v2888 = vadd.f32 0.0, %v2887
    %2889 = vmatprep.mubr.f32.mxu0 0.0
    %2890 = vmatmul.mubr.f32.gmra.mxu0 %v2141
    %v2891 = vpop.f32.mrf.mxu0
    %v2892 = vadd.f32 0.0, %v2891
    %v2893 = vpop.f32.mrf.mxu0
    %v2894 = vadd.f32 0.0, %v2893
    %2895 = vmatprep.mubr.f32.mxu0 0.0
    %2896 = vmatmul.mubr.f32.gmra.mxu0 %v2144
    %v2897 = vpop.f32.mrf.mxu0
    %v2898 = vadd.f32 0.0, %v2897
    %v2899 = vpop.f32.mrf.mxu0
    %v2900 = vadd.f32 0.0, %v2899
    %2901 = vmatprep.mubr.f32.mxu0 0.0
    %2902 = vmatmul.mubr.f32.gmra.mxu0 %v2147
    %v2903 = vpop.f32.mrf.mxu0
    %v2904 = vadd.f32 0.0, %v2903
    %v2905 = vpop.f32.mrf.mxu0
    %v2906 = vadd.f32 0.0, %v2905
    %2907 = vmatprep.mubr.f32.mxu0 0.0
    %2908 = vmatmul.mubr.f32.gmra.mxu0 %v2439
    %v2909 = vpop.f32.mrf.mxu0
    %v2910 = vadd.f32 0.0, %v2909
    %v2911 = vpop.f32.mrf.mxu0
    %v2912 = vadd.f32 0.0, %v2911
    %2913 = vmatprep.mubr.f32.mxu0 0.0
    %2914 = vmatmul.mubr.f32.gmra.mxu0 %v2616
    %v2915 = vpop.f32.mrf.mxu0
    %v2916 = vadd.f32 0.0, %v2915
    %v2917 = vpop.f32.mrf.mxu0
    %v2918 = vadd.f32 0.0, %v2917
    %2919 = vmatprep.mubr.f32.mxu0 0.0
    %2920 = vmatmul.mubr.f32.gmra.mxu0 %v2793
    %v2921 = vpop.f32.mrf.mxu0
    %v2922 = vadd.f32 0.0, %v2921
    %v2923 = vpop.f32.mrf.mxu0
    %v2924 = vadd.f32 0.0, %v2923
    %2925 = vdwg.mxu0
    %v2926 = vadd.f32 %v2749, %v2868
    %v2927 = vadd.f32 %v2750, %v2870
    %v2928 = vadd.f32 %v2751, %v2874
    %v2929 = vadd.f32 %v2752, %v2876
    %v2930 = vadd.f32 %v2753, %v2880
    %v2931 = vadd.f32 %v2754, %v2882
    %v2932 = vadd.f32 %v2755, %v2886
    %v2933 = vadd.f32 %v2756, %v2888
    %v2934 = vadd.f32 %v2757, %v2892
    %v2935 = vadd.f32 %v2758, %v2894
    %v2936 = vadd.f32 %v2759, %v2898
    %v2937 = vadd.f32 %v2760, %v2900
    %v2938 = vadd.f32 %v2761, %v2904
    %v2939 = vadd.f32 %v2762, %v2906
    %v2940 = vadd.f32 %v2763, %v2910
    %v2941 = vadd.f32 %v2764, %v2912
    %v2942 = vadd.f32 %v2765, %v2916
    %v2943 = vadd.f32 %v2766, %v2918
    %v2944 = vadd.f32 %v2767, %v2922
    %v2945 = vadd.f32 %v2768, %v2924
    %v2946 = vld [vmem:[%s5] sm:$0x3]
    %v2948 = vlaneseq
    %v2949 = vshrl.u32 %v2948, 7
    %v2950 = vsub.s32 0, %v2949
    %v2951 = vrot.slane %v2946, %v2950
    %v2952 = vlaneseq
    %v2953 = vshrl.u32 %v2952, 7
    %v2954 = vsub.s32 1, %v2953
    %v2955 = vrot.slane %v2946, %v2954
    %v2958 = vadd.f32 %v2926, %v2951
    %v2959 = vadd.f32 %v2927, %v2955
    %v2960 = vadd.f32 %v2928, %v2951
    %v2961 = vadd.f32 %v2929, %v2955
    %v2962 = vadd.f32 %v2930, %v2951
    %v2963 = vadd.f32 %v2931, %v2955
    %v2964 = vadd.f32 %v2932, %v2951
    %v2965 = vadd.f32 %v2933, %v2955
    %v2966 = vadd.f32 %v2934, %v2951
    %v2967 = vadd.f32 %v2935, %v2955
    %v2968 = vadd.f32 %v2936, %v2951
    %v2969 = vadd.f32 %v2937, %v2955
    %v2970 = vadd.f32 %v2938, %v2951
    %v2971 = vadd.f32 %v2939, %v2955
    %v2972 = vadd.f32 %v2940, %v2951
    %v2973 = vadd.f32 %v2941, %v2955
    %v2974 = vadd.f32 %v2942, %v2951
    %v2975 = vadd.f32 %v2943, %v2955
    %v2976 = vadd.f32 %v2944, %v2951
    %v2977 = vadd.f32 %v2945, %v2955
    %v2978 = vmax.f32 %v2958, 0.0
    %v2979 = vmax.f32 %v2959, 0.0
    %v2980 = vmax.f32 %v2960, 0.0
    %v2981 = vmax.f32 %v2961, 0.0
    %v2982 = vmax.f32 %v2962, 0.0
    %v2983 = vmax.f32 %v2963, 0.0
    %v2984 = vmax.f32 %v2964, 0.0
    %v2985 = vmax.f32 %v2965, 0.0
    %v2986 = vmax.f32 %v2966, 0.0
    %v2987 = vmax.f32 %v2967, 0.0
    %v2988 = vmax.f32 %v2968, 0.0
    %v2989 = vmax.f32 %v2969, 0.0
    %v2990 = vmax.f32 %v2970, 0.0
    %v2991 = vmax.f32 %v2971, 0.0
    %v2992 = vmax.f32 %v2972, 0.0
    %v2993 = vmax.f32 %v2973, 0.0
    %v2994 = vmax.f32 %v2974, 0.0
    %v2995 = vmax.f32 %v2975, 0.0
    %v2996 = vmax.f32 %v2976, 0.0
    %v2997 = vmax.f32 %v2977, 0.0
    %v2998 = vmax.f32 %v2978, %v2980
    %v2999 = vmax.f32 %v2979, %v2981
    %v3000 = vmax.f32 %v2982, %v2984
    %v3001 = vmax.f32 %v2983, %v2985
    %v3002 = vmax.f32 %v2986, %v2988
    %v3003 = vmax.f32 %v2987, %v2989
    %v3004 = vmax.f32 %v2990, %v2992
    %v3005 = vmax.f32 %v2991, %v2993
    %v3006 = vmax.f32 %v2994, %v2996
    %v3007 = vmax.f32 %v2995, %v2997
    %v3008 = vld [vmem:[%s6] sm:$0xff]
    %v3009 = vld [vmem:[%s6 + $0x8] sm:$0xff]
    %v3010 = vld [vmem:[%s6 + $0x10] sm:$0xff]
    %v3011 = vld [vmem:[%s6 + $0x18] sm:$0xff]
    %v3012 = vld [vmem:[%s6 + $0x20] sm:$0xff]
    %v3013 = vld [vmem:[%s6 + $0x28] sm:$0xff]
    %v3014 = vld [vmem:[%s6 + $0x30] sm:$0xff]
    %v3015 = vld [vmem:[%s6 + $0x38] sm:$0xff]
    %v3016 = vld [vmem:[%s6 + $0x40] sm:$0xff]
    %v3017 = vld [vmem:[%s6 + $0x48] sm:$0xff]
    %v3018 = vld [vmem:[%s6 + $0x50] sm:$0xff]
    %v3019 = vld [vmem:[%s6 + $0x58] sm:$0xff]
    %v3020 = vld [vmem:[%s6 + $0x60] sm:$0xff]
    %v3021 = vld [vmem:[%s6 + $0x68] sm:$0xff]
    %v3022 = vld [vmem:[%s6 + $0x70] sm:$0xff]
    %v3023 = vld [vmem:[%s6 + $0x78] sm:$0xff]
    %v3024 = vld [vmem:[%s6 + $0x80] sm:$0xff]
    %v3025 = vld [vmem:[%s6 + $0x88] sm:$0xff]
    %v3026 = vld [vmem:[%s6 + $0x90] sm:$0xff]
    %v3027 = vld [vmem:[%s6 + $0x98] sm:$0xff]
    %v3029 = vsel %vm94, %v2999, 0
    %v3032 = vsel %vm94, %v3001, 0
    %v3035 = vsel %vm94, %v3003, 0
    %v3038 = vsel %vm94, %v3005, 0
    %v3041 = vsel %vm94, %v3007, 0
    %3043 = vmatprep.subr.mxu0 0.0
    %3044 = vmatpush1.msra.mxu0 %v3023
    %3045 = vmatprep.subr.mxu0 0.0
    %3046 = vmatpush1.msra.mxu0 %v3022
    %3047 = vmatprep.subr.mxu0 0.0
    %3048 = vmatpush1.msra.mxu0 %v3021
    %3049 = vmatprep.subr.mxu0 0.0
    %3050 = vmatpush1.msra.mxu0 %v3020
    %3051 = vmatprep.subr.mxu0 0.0
    %3052 = vmatpush1.msra.mxu0 %v3019
    %3053 = vmatprep.subr.mxu0 0.0
    %3054 = vmatpush1.msra.mxu0 %v3018
    %3055 = vmatprep.subr.mxu0 0.0
    %3056 = vmatpush1.msra.mxu0 %v3017
    %3057 = vmatprep.subr.mxu0 0.0
    %3058 = vmatpush1.msra.mxu0 %v3016
    %3059 = vmatprep.subr.mxu0 0.0
    %3060 = vmatpush1.msra.mxu0 %v3015
    %3061 = vmatprep.subr.mxu0 0.0
    %3062 = vmatpush1.msra.mxu0 %v3014
    %3063 = vmatprep.subr.mxu0 0.0
    %3064 = vmatpush1.msra.mxu0 %v3013
    %3065 = vmatprep.subr.mxu0 0.0
    %3066 = vmatpush1.msra.mxu0 %v3012
    %3067 = vmatprep.subr.mxu0 0.0
    %3068 = vmatpush1.msra.mxu0 %v3011
    %3069 = vmatprep.subr.mxu0 0.0
    %3070 = vmatpush1.msra.mxu0 %v3010
    %3071 = vmatprep.subr.mxu0 0.0
    %3072 = vmatpush1.msra.mxu0 %v3009
    %3073 = vmatprep.subr.mxu0 0.0
    %3074 = vmatpush1.msra.mxu0 %v3008
    %3075 = vmatprep.subr.mxu0 0.0
    %3076 = vmatpush2.msra.mxu0 0.0
    %3077 = vmatprep.subr.mxu0 0.0
    %3078 = vmatpush2.msra.mxu0 0.0
    %3079 = vmatprep.subr.mxu0 0.0
    %3080 = vmatpush2.msra.mxu0 0.0
    %3081 = vmatprep.subr.mxu0 0.0
    %3082 = vmatpush2.msra.mxu0 0.0
    %3083 = vmatprep.subr.mxu0 0.0
    %3084 = vmatpush2.msra.mxu0 0.0
    %3085 = vmatprep.subr.mxu0 0.0
    %3086 = vmatpush2.msra.mxu0 0.0
    %3087 = vmatprep.subr.mxu0 0.0
    %3088 = vmatpush2.msra.mxu0 0.0
    %3089 = vmatprep.subr.mxu0 0.0
    %3090 = vmatpush2.msra.mxu0 0.0
    %3091 = vmatprep.subr.mxu0 0.0
    %3092 = vmatpush2.msra.mxu0 0.0
    %3093 = vmatprep.subr.mxu0 0.0
    %3094 = vmatpush2.msra.mxu0 0.0
    %3095 = vmatprep.subr.mxu0 0.0
    %3096 = vmatpush2.msra.mxu0 0.0
    %3097 = vmatprep.subr.mxu0 0.0
    %3098 = vmatpush2.msra.mxu0 0.0
    %3099 = vmatprep.subr.mxu0 0.0
    %3100 = vmatpush2.msra.mxu0 %v3027
    %3101 = vmatprep.subr.mxu0 0.0
    %3102 = vmatpush2.msra.mxu0 %v3026
    %3103 = vmatprep.subr.mxu0 0.0
    %3104 = vmatpush2.msra.mxu0 %v3025
    %3105 = vmatprep.subr.mxu0 0.0
    %3106 = vmatpush2.msra.mxu0 %v3024
    %3107 = vmatprep.mubr.f32.mxu0 %v3029
    %3108 = vmatmul.mubr.f32.gmra.mxu0 %v2998
    %v3109 = vpop.f32.mrf.mxu0
    %v3110 = vadd.f32 0.0, %v3109
    %v3111 = vpop.f32.mrf.mxu0
    %3112 = vmatprep.mubr.f32.mxu0 %v3032
    %3113 = vmatmul.mubr.f32.gmra.mxu0 %v3000
    %v3114 = vpop.f32.mrf.mxu0
    %v3115 = vadd.f32 0.0, %v3114
    %v3116 = vpop.f32.mrf.mxu0
    %3117 = vmatprep.mubr.f32.mxu0 %v3035
    %3118 = vmatmul.mubr.f32.gmra.mxu0 %v3002
    %v3119 = vpop.f32.mrf.mxu0
    %v3120 = vadd.f32 0.0, %v3119
    %v3121 = vpop.f32.mrf.mxu0
    %3122 = vmatprep.mubr.f32.mxu0 %v3038
    %3123 = vmatmul.mubr.f32.gmra.mxu0 %v3004
    %v3124 = vpop.f32.mrf.mxu0
    %v3125 = vadd.f32 0.0, %v3124
    %v3126 = vpop.f32.mrf.mxu0
    %3127 = vmatprep.mubr.f32.mxu0 %v3041
    %3128 = vmatmul.mubr.f32.gmra.mxu0 %v3006
    %v3129 = vpop.f32.mrf.mxu0
    %v3130 = vadd.f32 0.0, %v3129
    %v3131 = vpop.f32.mrf.mxu0
    %3132 = vdwg.mxu0
    %s3133 = scalar_lea.vmem %s6, 160
    %v3134 = vld [vmem:[%s3133] sm:$0xff]
    %v3135 = vld [vmem:[%s3133 + $0x8] sm:$0xff]
    %v3136 = vld [vmem:[%s3133 + $0x10] sm:$0xff]
    %v3137 = vld [vmem:[%s3133 + $0x18] sm:$0xff]
    %v3138 = vld [vmem:[%s3133 + $0x20] sm:$0xff]
    %v3139 = vld [vmem:[%s3133 + $0x28] sm:$0xff]
    %v3140 = vld [vmem:[%s3133 + $0x30] sm:$0xff]
    %v3141 = vld [vmem:[%s3133 + $0x38] sm:$0xff]
    %v3142 = vld [vmem:[%s3133 + $0x40] sm:$0xff]
    %v3143 = vld [vmem:[%s3133 + $0x48] sm:$0xff]
    %v3144 = vld [vmem:[%s3133 + $0x50] sm:$0xff]
    %v3145 = vld [vmem:[%s3133 + $0x58] sm:$0xff]
    %v3146 = vld [vmem:[%s3133 + $0x60] sm:$0xff]
    %v3147 = vld [vmem:[%s3133 + $0x68] sm:$0xff]
    %v3148 = vld [vmem:[%s3133 + $0x70] sm:$0xff]
    %v3149 = vld [vmem:[%s3133 + $0x78] sm:$0xff]
    %v3150 = vld [vmem:[%s3133 + $0x80] sm:$0xff]
    %v3151 = vld [vmem:[%s3133 + $0x88] sm:$0xff]
    %v3152 = vld [vmem:[%s3133 + $0x90] sm:$0xff]
    %v3153 = vld [vmem:[%s3133 + $0x98] sm:$0xff]
    %3154 = vmatprep.subr.mxu0 0.0
    %3155 = vmatpush1.msra.mxu0 %v3149
    %3156 = vmatprep.subr.mxu0 0.0
    %3157 = vmatpush1.msra.mxu0 %v3148
    %3158 = vmatprep.subr.mxu0 0.0
    %3159 = vmatpush1.msra.mxu0 %v3147
    %3160 = vmatprep.subr.mxu0 0.0
    %3161 = vmatpush1.msra.mxu0 %v3146
    %3162 = vmatprep.subr.mxu0 0.0
    %3163 = vmatpush1.msra.mxu0 %v3145
    %3164 = vmatprep.subr.mxu0 0.0
    %3165 = vmatpush1.msra.mxu0 %v3144
    %3166 = vmatprep.subr.mxu0 0.0
    %3167 = vmatpush1.msra.mxu0 %v3143
    %3168 = vmatprep.subr.mxu0 0.0
    %3169 = vmatpush1.msra.mxu0 %v3142
    %3170 = vmatprep.subr.mxu0 0.0
    %3171 = vmatpush1.msra.mxu0 %v3141
    %3172 = vmatprep.subr.mxu0 0.0
    %3173 = vmatpush1.msra.mxu0 %v3140
    %3174 = vmatprep.subr.mxu0 0.0
    %3175 = vmatpush1.msra.mxu0 %v3139
    %3176 = vmatprep.subr.mxu0 0.0
    %3177 = vmatpush1.msra.mxu0 %v3138
    %3178 = vmatprep.subr.mxu0 0.0
    %3179 = vmatpush1.msra.mxu0 %v3137
    %3180 = vmatprep.subr.mxu0 0.0
    %3181 = vmatpush1.msra.mxu0 %v3136
    %3182 = vmatprep.subr.mxu0 0.0
    %3183 = vmatpush1.msra.mxu0 %v3135
    %3184 = vmatprep.subr.mxu0 0.0
    %3185 = vmatpush1.msra.mxu0 %v3134
    %3186 = vmatprep.subr.mxu0 0.0
    %3187 = vmatpush2.msra.mxu0 0.0
    %3188 = vmatprep.subr.mxu0 0.0
    %3189 = vmatpush2.msra.mxu0 0.0
    %3190 = vmatprep.subr.mxu0 0.0
    %3191 = vmatpush2.msra.mxu0 0.0
    %3192 = vmatprep.subr.mxu0 0.0
    %3193 = vmatpush2.msra.mxu0 0.0
    %3194 = vmatprep.subr.mxu0 0.0
    %3195 = vmatpush2.msra.mxu0 0.0
    %3196 = vmatprep.subr.mxu0 0.0
    %3197 = vmatpush2.msra.mxu0 0.0
    %3198 = vmatprep.subr.mxu0 0.0
    %3199 = vmatpush2.msra.mxu0 0.0
    %3200 = vmatprep.subr.mxu0 0.0
    %3201 = vmatpush2.msra.mxu0 0.0
    %3202 = vmatprep.subr.mxu0 0.0
    %3203 = vmatpush2.msra.mxu0 0.0
    %3204 = vmatprep.subr.mxu0 0.0
    %3205 = vmatpush2.msra.mxu0 0.0
    %3206 = vmatprep.subr.mxu0 0.0
    %3207 = vmatpush2.msra.mxu0 0.0
    %3208 = vmatprep.subr.mxu0 0.0
    %3209 = vmatpush2.msra.mxu0 0.0
    %3210 = vmatprep.subr.mxu0 0.0
    %3211 = vmatpush2.msra.mxu0 %v3153
    %3212 = vmatprep.subr.mxu0 0.0
    %3213 = vmatpush2.msra.mxu0 %v3152
    %3214 = vmatprep.subr.mxu0 0.0
    %3215 = vmatpush2.msra.mxu0 %v3151
    %3216 = vmatprep.subr.mxu0 0.0
    %3217 = vmatpush2.msra.mxu0 %v3150
    %3218 = vmatprep.mubr.f32.mxu0 %v3029
    %3219 = vmatmul.mubr.f32.gmra.mxu0 %v2998
    %v3220 = vpop.f32.mrf.mxu0
    %v3221 = vadd.f32 0.0, %v3220
    %v3222 = vpop.f32.mrf.mxu0
    %3223 = vmatprep.mubr.f32.mxu0 %v3032
    %3224 = vmatmul.mubr.f32.gmra.mxu0 %v3000
    %v3225 = vpop.f32.mrf.mxu0
    %v3226 = vadd.f32 0.0, %v3225
    %v3227 = vpop.f32.mrf.mxu0
    %3228 = vmatprep.mubr.f32.mxu0 %v3035
    %3229 = vmatmul.mubr.f32.gmra.mxu0 %v3002
    %v3230 = vpop.f32.mrf.mxu0
    %v3231 = vadd.f32 0.0, %v3230
    %v3232 = vpop.f32.mrf.mxu0
    %3233 = vmatprep.mubr.f32.mxu0 %v3038
    %3234 = vmatmul.mubr.f32.gmra.mxu0 %v3004
    %v3235 = vpop.f32.mrf.mxu0
    %v3236 = vadd.f32 0.0, %v3235
    %v3237 = vpop.f32.mrf.mxu0
    %3238 = vmatprep.mubr.f32.mxu0 %v3041
    %3239 = vmatmul.mubr.f32.gmra.mxu0 %v3006
    %v3240 = vpop.f32.mrf.mxu0
    %v3241 = vadd.f32 0.0, %v3240
    %v3242 = vpop.f32.mrf.mxu0
    %3243 = vdwg.mxu0
    %v3244 = vmax.f32 %v3110, %v3221
    %v3245 = vmax.f32 %v3115, %v3226
    %v3246 = vmax.f32 %v3120, %v3231
    %v3247 = vmax.f32 %v3125, %v3236
    %v3248 = vmax.f32 %v3130, %v3241
    %v3249 = vld [vmem:[%s7] sm:$0xff]
    %v3250 = vld [vmem:[%s7 + $0x8] sm:$0xff]
    %v3251 = vld [vmem:[%s7 + $0x10] sm:$0xff]
    %v3252 = vld [vmem:[%s7 + $0x18] sm:$0xff]
    %v3253 = vld [vmem:[%s7 + $0x20] sm:$0xff]
    %v3254 = vld [vmem:[%s7 + $0x28] sm:$0xff]
    %v3255 = vld [vmem:[%s7 + $0x30] sm:$0xff]
    %v3256 = vld [vmem:[%s7 + $0x38] sm:$0xff]
    %v3257 = vld [vmem:[%s7 + $0x40] sm:$0xff]
    %v3258 = vld [vmem:[%s7 + $0x48] sm:$0xff]
    %v3259 = vld [vmem:[%s8] sm:$0x1]
    %v3261 = vlaneseq
    %v3262 = vshrl.u32 %v3261, 7
    %v3263 = vsub.s32 0, %v3262
    %v3264 = vrot.slane %v3259, %v3263
    %vm3266 = vcmask 654336
    %v3268 = vsel %vm3266, %v3244, 0
    %3270 = vmatprep.subr.mxu0 0.0
    %3271 = vmatpush1.msra.mxu0 0.0
    %3272 = vmatprep.subr.mxu0 0.0
    %3273 = vmatpush1.msra.mxu0 0.0
    %3274 = vmatprep.subr.mxu0 0.0
    %3275 = vmatpush1.msra.mxu0 0.0
    %3276 = vmatprep.subr.mxu0 0.0
    %3277 = vmatpush1.msra.mxu0 0.0
    %3278 = vmatprep.subr.mxu0 0.0
    %3279 = vmatpush1.msra.mxu0 0.0
    %3280 = vmatprep.subr.mxu0 0.0
    %3281 = vmatpush1.msra.mxu0 0.0
    %3282 = vmatprep.subr.mxu0 0.0
    %3283 = vmatpush1.msra.mxu0 %v3258
    %3284 = vmatprep.subr.mxu0 0.0
    %3285 = vmatpush1.msra.mxu0 %v3257
    %3286 = vmatprep.subr.mxu0 0.0
    %3287 = vmatpush1.msra.mxu0 %v3256
    %3288 = vmatprep.subr.mxu0 0.0
    %3289 = vmatpush1.msra.mxu0 %v3255
    %3290 = vmatprep.subr.mxu0 0.0
    %3291 = vmatpush1.msra.mxu0 %v3254
    %3292 = vmatprep.subr.mxu0 0.0
    %3293 = vmatpush1.msra.mxu0 %v3253
    %3294 = vmatprep.subr.mxu0 0.0
    %3295 = vmatpush1.msra.mxu0 %v3252
    %3296 = vmatprep.subr.mxu0 0.0
    %3297 = vmatpush1.msra.mxu0 %v3251
    %3298 = vmatprep.subr.mxu0 0.0
    %3299 = vmatpush1.msra.mxu0 %v3250
    %3300 = vmatprep.subr.mxu0 0.0
    %3301 = vmatpush1.msra.mxu0 %v3249
    %3302 = vmatprep.subr.mxu0 0.0
    %3303 = vmatpush2.msra.mxu0 0.0
    %3304 = vmatprep.subr.mxu0 0.0
    %3305 = vmatpush2.msra.mxu0 0.0
    %3306 = vmatprep.subr.mxu0 0.0
    %3307 = vmatpush2.msra.mxu0 0.0
    %3308 = vmatprep.subr.mxu0 0.0
    %3309 = vmatpush2.msra.mxu0 0.0
    %3310 = vmatprep.subr.mxu0 0.0
    %3311 = vmatpush2.msra.mxu0 0.0
    %3312 = vmatprep.subr.mxu0 0.0
    %3313 = vmatpush2.msra.mxu0 0.0
    %3314 = vmatprep.subr.mxu0 0.0
    %3315 = vmatpush2.msra.mxu0 0.0
    %3316 = vmatprep.subr.mxu0 0.0
    %3317 = vmatpush2.msra.mxu0 0.0
    %3318 = vmatprep.subr.mxu0 0.0
    %3319 = vmatpush2.msra.mxu0 0.0
    %3320 = vmatprep.subr.mxu0 0.0
    %3321 = vmatpush2.msra.mxu0 0.0
    %3322 = vmatprep.subr.mxu0 0.0
    %3323 = vmatpush2.msra.mxu0 0.0
    %3324 = vmatprep.subr.mxu0 0.0
    %3325 = vmatpush2.msra.mxu0 0.0
    %3326 = vmatprep.subr.mxu0 0.0
    %3327 = vmatpush2.msra.mxu0 0.0
    %3328 = vmatprep.subr.mxu0 0.0
    %3329 = vmatpush2.msra.mxu0 0.0
    %3330 = vmatprep.subr.mxu0 0.0
    %3331 = vmatpush2.msra.mxu0 0.0
    %3332 = vmatprep.subr.mxu0 0.0
    %3333 = vmatpush2.msra.mxu0 0.0
    %3334 = vmatprep.mubr.f32.mxu0 0.0
    %3335 = vmatmul.mubr.f32.gmra.mxu0 %v3268
    %v3336 = vpop.f32.mrf.mxu0
    %v3337 = vadd.f32 %v3264, %v3336
    %v3338 = vpop.f32.mrf.mxu0
    %3339 = vdwg.mxu0
    %v3340 = vld [vmem:[%s7 + $0x50] sm:$0xff]
    %v3341 = vld [vmem:[%s7 + $0x58] sm:$0xff]
    %v3342 = vld [vmem:[%s7 + $0x60] sm:$0xff]
    %v3343 = vld [vmem:[%s7 + $0x68] sm:$0xff]
    %v3344 = vld [vmem:[%s7 + $0x70] sm:$0xff]
    %v3345 = vld [vmem:[%s7 + $0x78] sm:$0xff]
    %v3346 = vld [vmem:[%s7 + $0x80] sm:$0xff]
    %v3347 = vld [vmem:[%s7 + $0x88] sm:$0xff]
    %v3348 = vld [vmem:[%s7 + $0x90] sm:$0xff]
    %v3349 = vld [vmem:[%s7 + $0x98] sm:$0xff]
    %v3351 = vsel %vm3266, %v3245, 0
    %3353 = vmatprep.subr.mxu0 0.0
    %3354 = vmatpush1.msra.mxu0 0.0
    %3355 = vmatprep.subr.mxu0 0.0
    %3356 = vmatpush1.msra.mxu0 0.0
    %3357 = vmatprep.subr.mxu0 0.0
    %3358 = vmatpush1.msra.mxu0 0.0
    %3359 = vmatprep.subr.mxu0 0.0
    %3360 = vmatpush1.msra.mxu0 0.0
    %3361 = vmatprep.subr.mxu0 0.0
    %3362 = vmatpush1.msra.mxu0 0.0
    %3363 = vmatprep.subr.mxu0 0.0
    %3364 = vmatpush1.msra.mxu0 0.0
    %3365 = vmatprep.subr.mxu0 0.0
    %3366 = vmatpush1.msra.mxu0 %v3349
    %3367 = vmatprep.subr.mxu0 0.0
    %3368 = vmatpush1.msra.mxu0 %v3348
    %3369 = vmatprep.subr.mxu0 0.0
    %3370 = vmatpush1.msra.mxu0 %v3347
    %3371 = vmatprep.subr.mxu0 0.0
    %3372 = vmatpush1.msra.mxu0 %v3346
    %3373 = vmatprep.subr.mxu0 0.0
    %3374 = vmatpush1.msra.mxu0 %v3345
    %3375 = vmatprep.subr.mxu0 0.0
    %3376 = vmatpush1.msra.mxu0 %v3344
    %3377 = vmatprep.subr.mxu0 0.0
    %3378 = vmatpush1.msra.mxu0 %v3343
    %3379 = vmatprep.subr.mxu0 0.0
    %3380 = vmatpush1.msra.mxu0 %v3342
    %3381 = vmatprep.subr.mxu0 0.0
    %3382 = vmatpush1.msra.mxu0 %v3341
    %3383 = vmatprep.subr.mxu0 0.0
    %3384 = vmatpush1.msra.mxu0 %v3340
    %3385 = vmatprep.subr.mxu0 0.0
    %3386 = vmatpush2.msra.mxu0 0.0
    %3387 = vmatprep.subr.mxu0 0.0
    %3388 = vmatpush2.msra.mxu0 0.0
    %3389 = vmatprep.subr.mxu0 0.0
    %3390 = vmatpush2.msra.mxu0 0.0
    %3391 = vmatprep.subr.mxu0 0.0
    %3392 = vmatpush2.msra.mxu0 0.0
    %3393 = vmatprep.subr.mxu0 0.0
    %3394 = vmatpush2.msra.mxu0 0.0
    %3395 = vmatprep.subr.mxu0 0.0
    %3396 = vmatpush2.msra.mxu0 0.0
    %3397 = vmatprep.subr.mxu0 0.0
    %3398 = vmatpush2.msra.mxu0 0.0
    %3399 = vmatprep.subr.mxu0 0.0
    %3400 = vmatpush2.msra.mxu0 0.0
    %3401 = vmatprep.subr.mxu0 0.0
    %3402 = vmatpush2.msra.mxu0 0.0
    %3403 = vmatprep.subr.mxu0 0.0
    %3404 = vmatpush2.msra.mxu0 0.0
    %3405 = vmatprep.subr.mxu0 0.0
    %3406 = vmatpush2.msra.mxu0 0.0
    %3407 = vmatprep.subr.mxu0 0.0
    %3408 = vmatpush2.msra.mxu0 0.0
    %3409 = vmatprep.subr.mxu0 0.0
    %3410 = vmatpush2.msra.mxu0 0.0
    %3411 = vmatprep.subr.mxu0 0.0
    %3412 = vmatpush2.msra.mxu0 0.0
    %3413 = vmatprep.subr.mxu0 0.0
    %3414 = vmatpush2.msra.mxu0 0.0
    %3415 = vmatprep.subr.mxu0 0.0
    %3416 = vmatpush2.msra.mxu0 0.0
    %3417 = vmatprep.mubr.f32.mxu0 0.0
    %3418 = vmatmul.mubr.f32.gmra.mxu0 %v3351
    %v3419 = vpop.f32.mrf.mxu0
    %v3420 = vadd.f32 0.0, %v3419
    %v3421 = vpop.f32.mrf.mxu0
    %3422 = vdwg.mxu0
    %v3423 = vadd.f32 %v3337, %v3420
    %v3424 = vld [vmem:[%s7 + $0xa0] sm:$0xff]
    %v3425 = vld [vmem:[%s7 + $0xa8] sm:$0xff]
    %v3426 = vld [vmem:[%s7 + $0xb0] sm:$0xff]
    %v3427 = vld [vmem:[%s7 + $0xb8] sm:$0xff]
    %v3428 = vld [vmem:[%s7 + $0xc0] sm:$0xff]
    %v3429 = vld [vmem:[%s7 + $0xc8] sm:$0xff]
    %v3430 = vld [vmem:[%s7 + $0xd0] sm:$0xff]
    %v3431 = vld [vmem:[%s7 + $0xd8] sm:$0xff]
    %v3432 = vld [vmem:[%s7 + $0xe0] sm:$0xff]
    %v3433 = vld [vmem:[%s7 + $0xe8] sm:$0xff]
    %v3435 = vsel %vm3266, %v3246, 0
    %3437 = vmatprep.subr.mxu0 0.0
    %3438 = vmatpush1.msra.mxu0 0.0
    %3439 = vmatprep.subr.mxu0 0.0
    %3440 = vmatpush1.msra.mxu0 0.0
    %3441 = vmatprep.subr.mxu0 0.0
    %3442 = vmatpush1.msra.mxu0 0.0
    %3443 = vmatprep.subr.mxu0 0.0
    %3444 = vmatpush1.msra.mxu0 0.0
    %3445 = vmatprep.subr.mxu0 0.0
    %3446 = vmatpush1.msra.mxu0 0.0
    %3447 = vmatprep.subr.mxu0 0.0
    %3448 = vmatpush1.msra.mxu0 0.0
    %3449 = vmatprep.subr.mxu0 0.0
    %3450 = vmatpush1.msra.mxu0 %v3433
    %3451 = vmatprep.subr.mxu0 0.0
    %3452 = vmatpush1.msra.mxu0 %v3432
    %3453 = vmatprep.subr.mxu0 0.0
    %3454 = vmatpush1.msra.mxu0 %v3431
    %3455 = vmatprep.subr.mxu0 0.0
    %3456 = vmatpush1.msra.mxu0 %v3430
    %3457 = vmatprep.subr.mxu0 0.0
    %3458 = vmatpush1.msra.mxu0 %v3429
    %3459 = vmatprep.subr.mxu0 0.0
    %3460 = vmatpush1.msra.mxu0 %v3428
    %3461 = vmatprep.subr.mxu0 0.0
    %3462 = vmatpush1.msra.mxu0 %v3427
    %3463 = vmatprep.subr.mxu0 0.0
    %3464 = vmatpush1.msra.mxu0 %v3426
    %3465 = vmatprep.subr.mxu0 0.0
    %3466 = vmatpush1.msra.mxu0 %v3425
    %3467 = vmatprep.subr.mxu0 0.0
    %3468 = vmatpush1.msra.mxu0 %v3424
    %3469 = vmatprep.subr.mxu0 0.0
    %3470 = vmatpush2.msra.mxu0 0.0
    %3471 = vmatprep.subr.mxu0 0.0
    %3472 = vmatpush2.msra.mxu0 0.0
    %3473 = vmatprep.subr.mxu0 0.0
    %3474 = vmatpush2.msra.mxu0 0.0
    %3475 = vmatprep.subr.mxu0 0.0
    %3476 = vmatpush2.msra.mxu0 0.0
    %3477 = vmatprep.subr.mxu0 0.0
    %3478 = vmatpush2.msra.mxu0 0.0
    %3479 = vmatprep.subr.mxu0 0.0
    %3480 = vmatpush2.msra.mxu0 0.0
    %3481 = vmatprep.subr.mxu0 0.0
    %3482 = vmatpush2.msra.mxu0 0.0
    %3483 = vmatprep.subr.mxu0 0.0
    %3484 = vmatpush2.msra.mxu0 0.0
    %3485 = vmatprep.subr.mxu0 0.0
    %3486 = vmatpush2.msra.mxu0 0.0
    %3487 = vmatprep.subr.mxu0 0.0
    %3488 = vmatpush2.msra.mxu0 0.0
    %3489 = vmatprep.subr.mxu0 0.0
    %3490 = vmatpush2.msra.mxu0 0.0
    %3491 = vmatprep.subr.mxu0 0.0
    %3492 = vmatpush2.msra.mxu0 0.0
    %3493 = vmatprep.subr.mxu0 0.0
    %3494 = vmatpush2.msra.mxu0 0.0
    %3495 = vmatprep.subr.mxu0 0.0
    %3496 = vmatpush2.msra.mxu0 0.0
    %3497 = vmatprep.subr.mxu0 0.0
    %3498 = vmatpush2.msra.mxu0 0.0
    %3499 = vmatprep.subr.mxu0 0.0
    %3500 = vmatpush2.msra.mxu0 0.0
    %3501 = vmatprep.mubr.f32.mxu0 0.0
    %3502 = vmatmul.mubr.f32.gmra.mxu0 %v3435
    %v3503 = vpop.f32.mrf.mxu0
    %v3504 = vadd.f32 0.0, %v3503
    %v3505 = vpop.f32.mrf.mxu0
    %3506 = vdwg.mxu0
    %v3507 = vadd.f32 %v3423, %v3504
    %v3508 = vld [vmem:[%s7 + $0xf0] sm:$0xff]
    %v3509 = vld [vmem:[%s7 + $0xf8] sm:$0xff]
    %v3510 = vld [vmem:[%s7 + $0x100] sm:$0xff]
    %v3511 = vld [vmem:[%s7 + $0x108] sm:$0xff]
    %v3512 = vld [vmem:[%s7 + $0x110] sm:$0xff]
    %v3513 = vld [vmem:[%s7 + $0x118] sm:$0xff]
    %v3514 = vld [vmem:[%s7 + $0x120] sm:$0xff]
    %v3515 = vld [vmem:[%s7 + $0x128] sm:$0xff]
    %v3516 = vld [vmem:[%s7 + $0x130] sm:$0xff]
    %v3517 = vld [vmem:[%s7 + $0x138] sm:$0xff]
    %v3519 = vsel %vm3266, %v3247, 0
    %3521 = vmatprep.subr.mxu0 0.0
    %3522 = vmatpush1.msra.mxu0 0.0
    %3523 = vmatprep.subr.mxu0 0.0
    %3524 = vmatpush1.msra.mxu0 0.0
    %3525 = vmatprep.subr.mxu0 0.0
    %3526 = vmatpush1.msra.mxu0 0.0
    %3527 = vmatprep.subr.mxu0 0.0
    %3528 = vmatpush1.msra.mxu0 0.0
    %3529 = vmatprep.subr.mxu0 0.0
    %3530 = vmatpush1.msra.mxu0 0.0
    %3531 = vmatprep.subr.mxu0 0.0
    %3532 = vmatpush1.msra.mxu0 0.0
    %3533 = vmatprep.subr.mxu0 0.0
    %3534 = vmatpush1.msra.mxu0 %v3517
    %3535 = vmatprep.subr.mxu0 0.0
    %3536 = vmatpush1.msra.mxu0 %v3516
    %3537 = vmatprep.subr.mxu0 0.0
    %3538 = vmatpush1.msra.mxu0 %v3515
    %3539 = vmatprep.subr.mxu0 0.0
    %3540 = vmatpush1.msra.mxu0 %v3514
    %3541 = vmatprep.subr.mxu0 0.0
    %3542 = vmatpush1.msra.mxu0 %v3513
    %3543 = vmatprep.subr.mxu0 0.0
    %3544 = vmatpush1.msra.mxu0 %v3512
    %3545 = vmatprep.subr.mxu0 0.0
    %3546 = vmatpush1.msra.mxu0 %v3511
    %3547 = vmatprep.subr.mxu0 0.0
    %3548 = vmatpush1.msra.mxu0 %v3510
    %3549 = vmatprep.subr.mxu0 0.0
    %3550 = vmatpush1.msra.mxu0 %v3509
    %3551 = vmatprep.subr.mxu0 0.0
    %3552 = vmatpush1.msra.mxu0 %v3508
    %3553 = vmatprep.subr.mxu0 0.0
    %3554 = vmatpush2.msra.mxu0 0.0
    %3555 = vmatprep.subr.mxu0 0.0
    %3556 = vmatpush2.msra.mxu0 0.0
    %3557 = vmatprep.subr.mxu0 0.0
    %3558 = vmatpush2.msra.mxu0 0.0
    %3559 = vmatprep.subr.mxu0 0.0
    %3560 = vmatpush2.msra.mxu0 0.0
    %3561 = vmatprep.subr.mxu0 0.0
    %3562 = vmatpush2.msra.mxu0 0.0
    %3563 = vmatprep.subr.mxu0 0.0
    %3564 = vmatpush2.msra.mxu0 0.0
    %3565 = vmatprep.subr.mxu0 0.0
    %3566 = vmatpush2.msra.mxu0 0.0
    %3567 = vmatprep.subr.mxu0 0.0
    %3568 = vmatpush2.msra.mxu0 0.0
    %3569 = vmatprep.subr.mxu0 0.0
    %3570 = vmatpush2.msra.mxu0 0.0
    %3571 = vmatprep.subr.mxu0 0.0
    %3572 = vmatpush2.msra.mxu0 0.0
    %3573 = vmatprep.subr.mxu0 0.0
    %3574 = vmatpush2.msra.mxu0 0.0
    %3575 = vmatprep.subr.mxu0 0.0
    %3576 = vmatpush2.msra.mxu0 0.0
    %3577 = vmatprep.subr.mxu0 0.0
    %3578 = vmatpush2.msra.mxu0 0.0
    %3579 = vmatprep.subr.mxu0 0.0
    %3580 = vmatpush2.msra.mxu0 0.0
    %3581 = vmatprep.subr.mxu0 0.0
    %3582 = vmatpush2.msra.mxu0 0.0
    %3583 = vmatprep.subr.mxu0 0.0
    %3584 = vmatpush2.msra.mxu0 0.0
    %3585 = vmatprep.mubr.f32.mxu0 0.0
    %3586 = vmatmul.mubr.f32.gmra.mxu0 %v3519
    %v3587 = vpop.f32.mrf.mxu0
    %v3588 = vadd.f32 0.0, %v3587
    %v3589 = vpop.f32.mrf.mxu0
    %3590 = vdwg.mxu0
    %v3591 = vadd.f32 %v3507, %v3588
    %v3592 = vld [vmem:[%s7 + $0x140] sm:$0xff]
    %v3593 = vld [vmem:[%s7 + $0x148] sm:$0xff]
    %v3594 = vld [vmem:[%s7 + $0x150] sm:$0xff]
    %v3595 = vld [vmem:[%s7 + $0x158] sm:$0xff]
    %v3596 = vld [vmem:[%s7 + $0x160] sm:$0xff]
    %v3597 = vld [vmem:[%s7 + $0x168] sm:$0xff]
    %v3598 = vld [vmem:[%s7 + $0x170] sm:$0xff]
    %v3599 = vld [vmem:[%s7 + $0x178] sm:$0xff]
    %v3600 = vld [vmem:[%s7 + $0x180] sm:$0xff]
    %v3601 = vld [vmem:[%s7 + $0x188] sm:$0xff]
    %v3603 = vsel %vm3266, %v3248, 0
    %3605 = vmatprep.subr.mxu0 0.0
    %3606 = vmatpush1.msra.mxu0 0.0
    %3607 = vmatprep.subr.mxu0 0.0
    %3608 = vmatpush1.msra.mxu0 0.0
    %3609 = vmatprep.subr.mxu0 0.0
    %3610 = vmatpush1.msra.mxu0 0.0
    %3611 = vmatprep.subr.mxu0 0.0
    %3612 = vmatpush1.msra.mxu0 0.0
    %3613 = vmatprep.subr.mxu0 0.0
    %3614 = vmatpush1.msra.mxu0 0.0
    %3615 = vmatprep.subr.mxu0 0.0
    %3616 = vmatpush1.msra.mxu0 0.0
    %3617 = vmatprep.subr.mxu0 0.0
    %3618 = vmatpush1.msra.mxu0 %v3601
    %3619 = vmatprep.subr.mxu0 0.0
    %3620 = vmatpush1.msra.mxu0 %v3600
    %3621 = vmatprep.subr.mxu0 0.0
    %3622 = vmatpush1.msra.mxu0 %v3599
    %3623 = vmatprep.subr.mxu0 0.0
    %3624 = vmatpush1.msra.mxu0 %v3598
    %3625 = vmatprep.subr.mxu0 0.0
    %3626 = vmatpush1.msra.mxu0 %v3597
    %3627 = vmatprep.subr.mxu0 0.0
    %3628 = vmatpush1.msra.mxu0 %v3596
    %3629 = vmatprep.subr.mxu0 0.0
    %3630 = vmatpush1.msra.mxu0 %v3595
    %3631 = vmatprep.subr.mxu0 0.0
    %3632 = vmatpush1.msra.mxu0 %v3594
    %3633 = vmatprep.subr.mxu0 0.0
    %3634 = vmatpush1.msra.mxu0 %v3593
    %3635 = vmatprep.subr.mxu0 0.0
    %3636 = vmatpush1.msra.mxu0 %v3592
    %3637 = vmatprep.subr.mxu0 0.0
    %3638 = vmatpush2.msra.mxu0 0.0
    %3639 = vmatprep.subr.mxu0 0.0
    %3640 = vmatpush2.msra.mxu0 0.0
    %3641 = vmatprep.subr.mxu0 0.0
    %3642 = vmatpush2.msra.mxu0 0.0
    %3643 = vmatprep.subr.mxu0 0.0
    %3644 = vmatpush2.msra.mxu0 0.0
    %3645 = vmatprep.subr.mxu0 0.0
    %3646 = vmatpush2.msra.mxu0 0.0
    %3647 = vmatprep.subr.mxu0 0.0
    %3648 = vmatpush2.msra.mxu0 0.0
    %3649 = vmatprep.subr.mxu0 0.0
    %3650 = vmatpush2.msra.mxu0 0.0
    %3651 = vmatprep.subr.mxu0 0.0
    %3652 = vmatpush2.msra.mxu0 0.0
    %3653 = vmatprep.subr.mxu0 0.0
    %3654 = vmatpush2.msra.mxu0 0.0
    %3655 = vmatprep.subr.mxu0 0.0
    %3656 = vmatpush2.msra.mxu0 0.0
    %3657 = vmatprep.subr.mxu0 0.0
    %3658 = vmatpush2.msra.mxu0 0.0
    %3659 = vmatprep.subr.mxu0 0.0
    %3660 = vmatpush2.msra.mxu0 0.0
    %3661 = vmatprep.subr.mxu0 0.0
    %3662 = vmatpush2.msra.mxu0 0.0
    %3663 = vmatprep.subr.mxu0 0.0
    %3664 = vmatpush2.msra.mxu0 0.0
    %3665 = vmatprep.subr.mxu0 0.0
    %3666 = vmatpush2.msra.mxu0 0.0
    %3667 = vmatprep.subr.mxu0 0.0
    %3668 = vmatpush2.msra.mxu0 0.0
    %3669 = vmatprep.mubr.f32.mxu0 0.0
    %3670 = vmatmul.mubr.f32.gmra.mxu0 %v3603
    %v3671 = vpop.f32.mrf.mxu0
    %v3672 = vadd.f32 0.0, %v3671
    %v3673 = vpop.f32.mrf.mxu0
    %3674 = vdwg.mxu0
    %v3675 = vadd.f32 %v3591, %v3672
    %v3676 = vmax.f32 %v3675, 0.0
    %v3677 = vld [vmem:[%s9] sm:$0xff]
    %v3678 = vld [vmem:[%s9 + $0x8] sm:$0xff]
    %v3679 = vld [vmem:[%s9 + $0x10] sm:$0xff]
    %v3680 = vld [vmem:[%s9 + $0x18] sm:$0xff]
    %v3681 = vld [vmem:[%s9 + $0x20] sm:$0xff]
    %v3682 = vld [vmem:[%s9 + $0x28] sm:$0xff]
    %v3683 = vld [vmem:[%s9 + $0x30] sm:$0xff]
    %v3684 = vld [vmem:[%s9 + $0x38] sm:$0xff]
    %v3685 = vld [vmem:[%s9 + $0x40] sm:$0xff]
    %v3686 = vld [vmem:[%s9 + $0x48] sm:$0xff]
    %v3687 = vld [vmem:[%s9 + $0x50] sm:$0xff]
    %v3688 = vld [vmem:[%s9 + $0x58] sm:$0xff]
    %v3689 = vld [vmem:[%s9 + $0x60] sm:$0xff]
    %v3690 = vld [vmem:[%s9 + $0x68] sm:$0xff]
    %v3691 = vld [vmem:[%s9 + $0x70] sm:$0xff]
    %v3692 = vld [vmem:[%s10] sm:$0x1]
    %v3694 = vlaneseq
    %v3695 = vshrl.u32 %v3694, 7
    %v3696 = vsub.s32 0, %v3695
    %v3697 = vrot.slane %v3692, %v3696
    %vm3699 = vcmask 982016
    %v3701 = vsel %vm3699, %v3676, 0
    %3703 = vmatprep.subr.mxu0 0.0
    %3704 = vmatpush1.msra.mxu0 0.0
    %3705 = vmatprep.subr.mxu0 0.0
    %3706 = vmatpush1.msra.mxu0 %v3691
    %3707 = vmatprep.subr.mxu0 0.0
    %3708 = vmatpush1.msra.mxu0 %v3690
    %3709 = vmatprep.subr.mxu0 0.0
    %3710 = vmatpush1.msra.mxu0 %v3689
    %3711 = vmatprep.subr.mxu0 0.0
    %3712 = vmatpush1.msra.mxu0 %v3688
    %3713 = vmatprep.subr.mxu0 0.0
    %3714 = vmatpush1.msra.mxu0 %v3687
    %3715 = vmatprep.subr.mxu0 0.0
    %3716 = vmatpush1.msra.mxu0 %v3686
    %3717 = vmatprep.subr.mxu0 0.0
    %3718 = vmatpush1.msra.mxu0 %v3685
    %3719 = vmatprep.subr.mxu0 0.0
    %3720 = vmatpush1.msra.mxu0 %v3684
    %3721 = vmatprep.subr.mxu0 0.0
    %3722 = vmatpush1.msra.mxu0 %v3683
    %3723 = vmatprep.subr.mxu0 0.0
    %3724 = vmatpush1.msra.mxu0 %v3682
    %3725 = vmatprep.subr.mxu0 0.0
    %3726 = vmatpush1.msra.mxu0 %v3681
    %3727 = vmatprep.subr.mxu0 0.0
    %3728 = vmatpush1.msra.mxu0 %v3680
    %3729 = vmatprep.subr.mxu0 0.0
    %3730 = vmatpush1.msra.mxu0 %v3679
    %3731 = vmatprep.subr.mxu0 0.0
    %3732 = vmatpush1.msra.mxu0 %v3678
    %3733 = vmatprep.subr.mxu0 0.0
    %3734 = vmatpush1.msra.mxu0 %v3677
    %3735 = vmatprep.subr.mxu0 0.0
    %3736 = vmatpush2.msra.mxu0 0.0
    %3737 = vmatprep.subr.mxu0 0.0
    %3738 = vmatpush2.msra.mxu0 0.0
    %3739 = vmatprep.subr.mxu0 0.0
    %3740 = vmatpush2.msra.mxu0 0.0
    %3741 = vmatprep.subr.mxu0 0.0
    %3742 = vmatpush2.msra.mxu0 0.0
    %3743 = vmatprep.subr.mxu0 0.0
    %3744 = vmatpush2.msra.mxu0 0.0
    %3745 = vmatprep.subr.mxu0 0.0
    %3746 = vmatpush2.msra.mxu0 0.0
    %3747 = vmatprep.subr.mxu0 0.0
    %3748 = vmatpush2.msra.mxu0 0.0
    %3749 = vmatprep.subr.mxu0 0.0
    %3750 = vmatpush2.msra.mxu0 0.0
    %3751 = vmatprep.subr.mxu0 0.0
    %3752 = vmatpush2.msra.mxu0 0.0
    %3753 = vmatprep.subr.mxu0 0.0
    %3754 = vmatpush2.msra.mxu0 0.0
    %3755 = vmatprep.subr.mxu0 0.0
    %3756 = vmatpush2.msra.mxu0 0.0
    %3757 = vmatprep.subr.mxu0 0.0
    %3758 = vmatpush2.msra.mxu0 0.0
    %3759 = vmatprep.subr.mxu0 0.0
    %3760 = vmatpush2.msra.mxu0 0.0
    %3761 = vmatprep.subr.mxu0 0.0
    %3762 = vmatpush2.msra.mxu0 0.0
    %3763 = vmatprep.subr.mxu0 0.0
    %3764 = vmatpush2.msra.mxu0 0.0
    %3765 = vmatprep.subr.mxu0 0.0
    %3766 = vmatpush2.msra.mxu0 0.0
    %3767 = vmatprep.mubr.f32.mxu0 0.0
    %3768 = vmatmul.mubr.f32.gmra.mxu0 %v3701
    %v3769 = vpop.f32.mrf.mxu0
    %v3770 = vadd.f32 %v3697, %v3769
    %v3771 = vpop.f32.mrf.mxu0
    %3772 = vdwg.mxu0
    %v3773 = vmax.f32 %v3770, 0.0
    %v3774 = vld [vmem:[%s11] sm:$0xff]
    %v3775 = vld [vmem:[%s11 + $0x8] sm:$0xff]
    %v3776 = vld [vmem:[%s11 + $0x10] sm:$0xff]
    %v3777 = vld [vmem:[%s11 + $0x18] sm:$0xff]
    %v3778 = vld [vmem:[%s11 + $0x20] sm:$0xff]
    %v3779 = vld [vmem:[%s11 + $0x28] sm:$0xff]
    %v3780 = vld [vmem:[%s11 + $0x30] sm:$0xff]
    %v3781 = vld [vmem:[%s11 + $0x38] sm:$0xff]
    %v3782 = vld [vmem:[%s11 + $0x40] sm:$0xff]
    %v3783 = vld [vmem:[%s11 + $0x48] sm:$0xff]
    %v3784 = vld [vmem:[%s11 + $0x50] sm:$0xf]
    %v3785 = vld [vmem:[%s12] sm:$0x1]
    %v3787 = vlaneseq
    %v3788 = vshrl.u32 %v3787, 7
    %v3789 = vsub.s32 0, %v3788
    %v3790 = vrot.slane %v3785, %v3789
    %v3793 = vsel %vm2118, %v3773, 0
    %v3796 = vsel %vm2149, %v3784, 0
    %3798 = vmatprep.subr.mxu0 0.0
    %3799 = vmatpush1.msra.mxu0 0.0
    %3800 = vmatprep.subr.mxu0 0.0
    %3801 = vmatpush1.msra.mxu0 0.0
    %3802 = vmatprep.subr.mxu0 0.0
    %3803 = vmatpush1.msra.mxu0 0.0
    %3804 = vmatprep.subr.mxu0 0.0
    %3805 = vmatpush1.msra.mxu0 0.0
    %3806 = vmatprep.subr.mxu0 0.0
    %3807 = vmatpush1.msra.mxu0 0.0
    %3808 = vmatprep.subr.mxu0 0.0
    %3809 = vmatpush1.msra.mxu0 %v3796
    %3810 = vmatprep.subr.mxu0 0.0
    %3811 = vmatpush1.msra.mxu0 %v3783
    %3812 = vmatprep.subr.mxu0 0.0
    %3813 = vmatpush1.msra.mxu0 %v3782
    %3814 = vmatprep.subr.mxu0 0.0
    %3815 = vmatpush1.msra.mxu0 %v3781
    %3816 = vmatprep.subr.mxu0 0.0
    %3817 = vmatpush1.msra.mxu0 %v3780
    %3818 = vmatprep.subr.mxu0 0.0
    %3819 = vmatpush1.msra.mxu0 %v3779
    %3820 = vmatprep.subr.mxu0 0.0
    %3821 = vmatpush1.msra.mxu0 %v3778
    %3822 = vmatprep.subr.mxu0 0.0
    %3823 = vmatpush1.msra.mxu0 %v3777
    %3824 = vmatprep.subr.mxu0 0.0
    %3825 = vmatpush1.msra.mxu0 %v3776
    %3826 = vmatprep.subr.mxu0 0.0
    %3827 = vmatpush1.msra.mxu0 %v3775
    %3828 = vmatprep.subr.mxu0 0.0
    %3829 = vmatpush1.msra.mxu0 %v3774
    %3830 = vmatprep.subr.mxu0 0.0
    %3831 = vmatpush2.msra.mxu0 0.0
    %3832 = vmatprep.subr.mxu0 0.0
    %3833 = vmatpush2.msra.mxu0 0.0
    %3834 = vmatprep.subr.mxu0 0.0
    %3835 = vmatpush2.msra.mxu0 0.0
    %3836 = vmatprep.subr.mxu0 0.0
    %3837 = vmatpush2.msra.mxu0 0.0
    %3838 = vmatprep.subr.mxu0 0.0
    %3839 = vmatpush2.msra.mxu0 0.0
    %3840 = vmatprep.subr.mxu0 0.0
    %3841 = vmatpush2.msra.mxu0 0.0
    %3842 = vmatprep.subr.mxu0 0.0
    %3843 = vmatpush2.msra.mxu0 0.0
    %3844 = vmatprep.subr.mxu0 0.0
    %3845 = vmatpush2.msra.mxu0 0.0
    %3846 = vmatprep.subr.mxu0 0.0
    %3847 = vmatpush2.msra.mxu0 0.0
    %3848 = vmatprep.subr.mxu0 0.0
    %3849 = vmatpush2.msra.mxu0 0.0
    %3850 = vmatprep.subr.mxu0 0.0
    %3851 = vmatpush2.msra.mxu0 0.0
    %3852 = vmatprep.subr.mxu0 0.0
    %3853 = vmatpush2.msra.mxu0 0.0
    %3854 = vmatprep.subr.mxu0 0.0
    %3855 = vmatpush2.msra.mxu0 0.0
    %3856 = vmatprep.subr.mxu0 0.0
    %3857 = vmatpush2.msra.mxu0 0.0
    %3858 = vmatprep.subr.mxu0 0.0
    %3859 = vmatpush2.msra.mxu0 0.0
    %3860 = vmatprep.subr.mxu0 0.0
    %3861 = vmatpush2.msra.mxu0 0.0
    %3862 = vmatprep.mubr.f32.mxu0 0.0
    %3863 = vmatmul.mubr.f32.gmra.mxu0 %v3793
    %v3864 = vpop.f32.mrf.mxu0
    %v3865 = vadd.f32 %v3790, %v3864
    %v3866 = vpop.f32.mrf.mxu0
    %3867 = vdwg.mxu0
    %3868 = vst [vmem:[#allocation2] sm:$0xff] %v3865
    // Predicated region
    $region54: #{_net_forward_padded.1} parent=1 // pred_check
      _
    $region55: #{_net_forward_padded.1} parent=1 // pred_check_branch
      %3870 = sbr.rel (0) target = $region57
    $region56: #{_net_forward_padded.1} parent=1 // pred_region
      %s3872 = ssub.s32 128, 128
      %3873 = vsyncadd [#allocation3], %s3872
      %s3875 = sshll.u32 [#allocation2], 4
      %s3876 = int_to_ptr.vmem [resolvable:$true] %s3875
      %3878 = dma.vmem_to_hbm [thread:$0]  %s3876, 128, %s13, [#allocation3]
    $region57: #{_net_forward_padded.1} parent=1 // pred_fallthru
      _
    // Predicated region
    $region58: #{_net_forward_padded.1} parent=1 // pred_check
      _
    $region59: #{_net_forward_padded.1} parent=1 // pred_check_branch
      %3880 = sbr.rel (0) target = $region61
    $region60: #{_net_forward_padded.1} parent=1 // pred_region
      %3881 = dma.done [#allocation3], 128
    $region61: #{_net_forward_padded.1} parent=1 // pred_fallthru
      _
    %3882 = vsyncpa [#allocation3], 1

</llo_original>
